<compile_context>
chip_gen: v5e
topology: v5e:2x2
jax: 0.10.0
libtpu: 0.0.40
codegen_flags: <defaults>
</compile_context>

<pallas_src>
import functools

import jax
import jax.numpy as jnp
import numpy as np
from jax.experimental import pallas as pl
from jax.experimental.pallas import tpu as pltpu

BN_EPS = 1e-5


# ---------------------------------------------------------------------------
# in-kernel helpers
# ---------------------------------------------------------------------------
def _zero_halo(pad_ref):
    """Zero only the 1-pixel halo border of the (H+2, W+2, C) pad scratch."""
    Hp, Wp, C = pad_ref.shape
    zrow = jnp.zeros((1, Wp, C), pad_ref.dtype)
    zcol = jnp.zeros((Hp, 1, C), pad_ref.dtype)
    pad_ref[0:1, :, :] = zrow
    pad_ref[Hp - 1:Hp, :, :] = zrow
    pad_ref[:, 0:1, :] = zcol
    pad_ref[:, Wp - 1:Wp, :] = zcol


def _conv3x3_im2col(pad_ref, col_ref, w_ref):
    """3x3 'same' conv of the image held in pad_ref's interior.

    pad_ref: (H+2, W+2, C) scratch (halo zeros + image interior).
    col_ref: (H*W, 9*C) im2col scratch.
    w_ref:   (9*C, C) weights, rows ordered (dy, dx, ci).
    Returns (H*W, C) float32 (single MXU matmul, f32 accumulation).
    """
    Hp, Wp, C = pad_ref.shape
    H, W = Hp - 2, Wp - 2
    for dy in range(3):
        for dx in range(3):
            k = dy * 3 + dx
            col_ref[:, k * C:(k + 1) * C] = (
                pad_ref[dy:dy + H, dx:dx + W, :].reshape(H * W, C))
    return jnp.dot(col_ref[...], w_ref[...],
                   preferred_element_type=jnp.float32)


# ---------------------------------------------------------------------------
# kernels
# ---------------------------------------------------------------------------
def _conv1_stats_kernel(x_ref, w_ref, y_ref, s_ref, sq_ref, pad_ref, col_ref):
    """conv1 on one image tile + partial BN1 statistics (sum, sum-of-squares)."""
    _, H, W, C = x_ref.shape
    _zero_halo(pad_ref)
    pad_ref[1:H + 1, 1:W + 1, :] = x_ref[...].reshape(H, W, C).astype(pad_ref.dtype)
    y = _conv3x3_im2col(pad_ref, col_ref, w_ref)            # (H*W, C) f32
    y_ref[...] = y.reshape(1, H, W, C)
    s_ref[...] = jnp.sum(y, axis=0, keepdims=True).reshape(1, 1, C)
    sq_ref[...] = jnp.sum(y * y, axis=0, keepdims=True).reshape(1, 1, C)


def _bn1_prelu_conv2_stats_kernel(y1_ref, w_ref, scale_ref, shift_ref, a_ref,
                                  y2_ref, s_ref, sq_ref, pad_ref, col_ref):
    """Fused BN1 (pre-folded scale/shift) + PReLU -> conv2 + partial BN2 stats."""
    _, H, W, C = y1_ref.shape
    z = y1_ref[...].reshape(H * W, C)
    z = z * scale_ref[...] + shift_ref[...]                       # BN1: one FMA
    z = jnp.maximum(z, 0.0) + a_ref[...] * jnp.minimum(z, 0.0)    # fused PReLU
    _zero_halo(pad_ref)
    pad_ref[1:H + 1, 1:W + 1, :] = z.reshape(H, W, C).astype(pad_ref.dtype)
    y = _conv3x3_im2col(pad_ref, col_ref, w_ref)
    y2_ref[...] = y.reshape(1, H, W, C)
    s_ref[...] = jnp.sum(y, axis=0, keepdims=True).reshape(1, 1, C)
    sq_ref[...] = jnp.sum(y * y, axis=0, keepdims=True).reshape(1, 1, C)


def _bn2_residual_kernel(y2_ref, x_ref, scale_ref, shift_ref, o_ref):
    """BN2 (folded scale/shift) + residual add; lane-dense last dim = W*C."""
    o_ref[...] = (y2_ref[...] * scale_ref[...] + shift_ref[...] +
                  x_ref[...]).astype(o_ref.dtype)


# ---------------------------------------------------------------------------
# host-side glue
# ---------------------------------------------------------------------------
def _finalize_bn(s, sq, gamma, beta, count):
    """Reduce per-image partials; fold BN into per-channel scale + shift."""
    mean = jnp.sum(s, axis=(0, 1)) / count
    var = jnp.sum(sq, axis=(0, 1)) / count - mean * mean   # f32 accumulation
    inv = jax.lax.rsqrt(var + BN_EPS)
    scale = gamma * inv
    shift = beta - mean * scale
    return scale, shift


def _tpu_params(vmem_bytes_needed):
    limit = int(min(max(vmem_bytes_needed + (2 << 20), 16 << 20), 48 << 20))
    return pltpu.CompilerParams(dimension_semantics=("parallel",),
                                vmem_limit_bytes=limit)


@functools.partial(jax.jit, static_argnames=("compute_dtype",))
def residual_conv_block(x_nchw, w1_oihw, w2_oihw, g1, b1, g2, b2, prelu_a,
                        compute_dtype=jnp.bfloat16):
    """Pallas forward of _ResidualConvBlock (train-mode BatchNorm).

    x_nchw: (B, C, H, W) f32 (PyTorch layout), conv weights OIHW, bias=False.
    compute_dtype: matmul operand dtype (bf16 recommended on v6e/v7x); all
    accumulation and BN / PReLU math stays in f32.
    """
    B, C, H, W = x_nchw.shape
    N = B * H * W
    f32 = jnp.float32

    # Layout conversions. In a real model do these once at parameter-load time
    # (kept here so the wrapper is drop-in for PyTorch-layout tensors).
    x = jnp.transpose(x_nchw, (0, 2, 3, 1)).astype(f32)                  # NHWC
    w1 = jnp.transpose(w1_oihw, (2, 3, 1, 0)).reshape(9 * C, C).astype(compute_dtype)
    w2 = jnp.transpose(w2_oihw, (2, 3, 1, 0)).reshape(9 * C, C).astype(compute_dtype)
    # PReLU slope as a (1, C) vector (PyTorch default num_parameters=1 is a
    # shared scalar; per-channel slopes would drop in unchanged).
    a_vec = jnp.full((1, C), jnp.asarray(prelu_a, f32), f32)

    cd_bytes = jnp.dtype(compute_dtype).itemsize
    tile_b = H * W * C * 4                                  # one f32 image tile
    scratch_b = (H + 2) * (W + 2) * C * cd_bytes + H * W * 9 * C * cd_bytes
    w_b = 9 * C * C * cd_bytes
    conv_cost = pl.CostEstimate(flops=2 * N * 9 * C * C, transcendentals=0,
                                bytes_accessed=2 * B * tile_b + w_b)

    img_block = pl.BlockSpec((1, H, W, C), lambda b: (b, 0, 0, 0))
    stat_block = pl.BlockSpec((1, 1, C), lambda b: (b, 0, 0))
    full2d = lambda shape: pl.BlockSpec(shape, lambda b: (0, 0))
    conv_scratch = [pltpu.VMEM((H + 2, W + 2, C), compute_dtype),
                    pltpu.VMEM((H * W, 9 * C), compute_dtype)]
    stat_shape = jax.ShapeDtypeStruct((B, 1, C), f32)

    # ---- pass 1: conv1 + per-image partial BN1 stats -----------------------
    y1, s1, sq1 = pl.pallas_call(
        _conv1_stats_kernel,
        grid=(B,),
        in_specs=[img_block, full2d((9 * C, C))],
        out_specs=[img_block, stat_block, stat_block],
        out_shape=[jax.ShapeDtypeStruct((B, H, W, C), f32), stat_shape, stat_shape],
        scratch_shapes=conv_scratch,
        compiler_params=_tpu_params(4 * tile_b + scratch_b + w_b),
        cost_estimate=conv_cost,
    )(x, w1)
    scale1, shift1 = _finalize_bn(s1, sq1, g1.astype(f32), b1.astype(f32), N)

    # ---- pass 2: BN1 + PReLU (folded) -> conv2 + partial BN2 stats ----------
    y2, s2, sq2 = pl.pallas_call(
        _bn1_prelu_conv2_stats_kernel,
        grid=(B,),
        in_specs=[img_block, full2d((9 * C, C)), full2d((1, C)),
                  full2d((1, C)), full2d((1, C))],
        out_specs=[img_block, stat_block, stat_block],
        out_shape=[jax.ShapeDtypeStruct((B, H, W, C), f32), stat_shape, stat_shape],
        scratch_shapes=conv_scratch,
        compiler_params=_tpu_params(6 * tile_b + scratch_b + w_b),
        cost_estimate=conv_cost,
    )(y1, w2, scale1.reshape(1, C), shift1.reshape(1, C), a_vec)
    scale2, shift2 = _finalize_bn(s2, sq2, g2.astype(f32), b2.astype(f32), N)

    # ---- pass 3: BN2 (folded) + residual add, lane-dense (B, H, W*C) --------
    WC = W * C
    row_block = pl.BlockSpec((1, H, WC), lambda b: (b, 0, 0))
    out = pl.pallas_call(
        _bn2_residual_kernel,
        grid=(B,),
        in_specs=[row_block, row_block, full2d((1, WC)), full2d((1, WC))],
        out_specs=row_block,
        out_shape=jax.ShapeDtypeStruct((B, H, WC), f32),
        compiler_params=_tpu_params(6 * tile_b),
        cost_estimate=pl.CostEstimate(flops=3 * B * H * WC, transcendentals=0,
                                      bytes_accessed=3 * B * tile_b),
    )(y2.reshape(B, H, WC), x.reshape(B, H, WC),
      jnp.tile(scale2, W).reshape(1, WC), jnp.tile(shift2, W).reshape(1, WC))

    return jnp.transpose(out.reshape(B, H, W, C), (0, 3, 1, 2))          # NCHW


# ---------------------------------------------------------------------------
# pure-JAX reference (same math as the PyTorch module in train() mode)
# ---------------------------------------------------------------------------
def _reference_forward(x_nchw, w1_oihw, w2_oihw, g1, b1, g2, b2, prelu_a):
    x = jnp.transpose(x_nchw, (0, 2, 3, 1)).astype(jnp.float32)
    w1 = jnp.transpose(w1_oihw, (2, 3, 1, 0)).astype(jnp.float32)
    w2 = jnp.transpose(w2_oihw, (2, 3, 1, 0)).astype(jnp.float32)

    def conv(y, w):
        return jax.lax.conv_general_dilated(
            y, w, window_strides=(1, 1), padding="SAME",
            dimension_numbers=("NHWC", "HWIO", "NHWC"))

    def bn(y, g, b):
        mean = jnp.mean(y, axis=(0, 1, 2), keepdims=True)
        var = jnp.mean((y - mean) ** 2, axis=(0, 1, 2), keepdims=True)
        return (y - mean) * jax.lax.rsqrt(var + BN_EPS) * g.reshape(1, 1, 1, -1) \
            + b.reshape(1, 1, 1, -1)

    y = conv(x, w1)
    y = bn(y, g1, b1)
    y = jnp.maximum(y, 0.0) + prelu_a * jnp.minimum(y, 0.0)
    y = conv(y, w2)
    y = bn(y, g2, b2)
    y = y + x
    return jnp.transpose(y, (0, 3, 1, 2))


if __name__ == "__main__":
    B, C, H, W = 2, 4, 16, 16
    key = jax.random.PRNGKey(0)
    kx, kw1, kw2, kg1, kb1, kg2, kb2 = jax.random.split(key, 7)

    x = jax.random.normal(kx, (B, C, H, W), jnp.float32)
    w1 = jax.random.normal(kw1, (C, C, 3, 3), jnp.float32) * 0.1    # OIHW, bias=False
    w2 = jax.random.normal(kw2, (C, C, 3, 3), jnp.float32) * 0.1
    g1 = jax.random.uniform(kg1, (C,), jnp.float32, 0.5, 1.5)
    b1 = jax.random.normal(kb1, (C,), jnp.float32) * 0.1
    g2 = jax.random.uniform(kg2, (C,), jnp.float32, 0.5, 1.5)
    b2 = jax.random.normal(kb2, (C,), jnp.float32) * 0.1
    prelu_a = 0.25                                                  # PyTorch default

    ref = _reference_forward(x, w1, w2, g1, b1, g2, b2, prelu_a)

    # f32 matmul-operand path: tight check against the pure-JAX reference.
    out_f32 = residual_conv_block(x, w1, w2, g1, b1, g2, b2, prelu_a,
                                  compute_dtype=jnp.float32)
    out_f32 = jax.block_until_ready(out_f32)
    np.testing.assert_allclose(np.asarray(out_f32), np.asarray(ref),
                               rtol=1e-3, atol=1e-3)

    # bf16 matmul-operand path (f32 accumulation) — recommended on v6e/v7x.
    # Looser tolerance accounts for bf16 rounding of the conv operands.
    out_bf16 = residual_conv_block(x, w1, w2, g1, b1, g2, b2, prelu_a,
                                   compute_dtype=jnp.bfloat16)
    out_bf16 = jax.block_until_ready(out_bf16)
    np.testing.assert_allclose(np.asarray(out_bf16), np.asarray(ref),
                               rtol=2e-2, atol=2e-2)

    assert out_f32.shape == (B, C, H, W)
    print("KERNEL_OK")
</pallas_src>

<mosaic_0001>
module attributes {stable_mosaic.version = 11 : i64} {
  func.func @_conv1_stats_kernel(%arg0: i32, %arg1: memref<1x16x16x4xf32, #tpu.memory_space<vmem>>, %arg2: memref<36x4xf32, #tpu.memory_space<vmem>>, %arg3: memref<1x16x16x4xf32, #tpu.memory_space<vmem>>, %arg4: memref<1x1x4xf32, #tpu.memory_space<vmem>>, %arg5: memref<1x1x4xf32, #tpu.memory_space<vmem>>, %arg6: memref<18x18x4xf32, #tpu.memory_space<vmem>>, %arg7: memref<256x36xf32, #tpu.memory_space<vmem>>) attributes {dimension_semantics = [#tpu.dimension_semantics<parallel>], iteration_bounds = array<i64: 2>, scalar_prefetch = 0 : i64, scratch_operands = 2 : i64, tpu.core_type = #tpu.core_type<tc>, window_params = [{transform_indices = @transform_0, window_bounds = array<i64: 1, 16, 16, 4>}, {pipeline_mode = #tpu.pipeline_mode<synchronous>, transform_indices = @transform_1, window_bounds = array<i64: 36, 4>}, {transform_indices = @transform_2, window_bounds = array<i64: 1, 16, 16, 4>}, {transform_indices = @transform_3, window_bounds = array<i64: 1, 1, 4>}, {transform_indices = @transform_4, window_bounds = array<i64: 1, 1, 4>}]} {
    %cst = arith.constant 0.000000e+00 : f32
    %0 = vector.broadcast %cst : f32 to vector<1x18x4xf32>
    %cst_0 = arith.constant 0.000000e+00 : f32
    %1 = vector.broadcast %cst_0 : f32 to vector<18x1x4xf32>
    %c0 = arith.constant 0 : index
    %c0_1 = arith.constant 0 : index
    %c0_2 = arith.constant 0 : index
    %2 = vector.load %arg6[%c0, %c0_1, %c0_2] : memref<18x18x4xf32, #tpu.memory_space<vmem>>, vector<1x18x4xf32>
    tpu.vector_store %arg6[%c0, %c0_1, %c0_2], %0 {strides = array<i32>} : memref<18x18x4xf32, #tpu.memory_space<vmem>>, vector<1x18x4xf32>,
    %c17 = arith.constant 17 : index
    %c0_3 = arith.constant 0 : index
    %c0_4 = arith.constant 0 : index
    %3 = vector.load %arg6[%c17, %c0_3, %c0_4] : memref<18x18x4xf32, #tpu.memory_space<vmem>>, vector<1x18x4xf32>
    tpu.vector_store %arg6[%c17, %c0_3, %c0_4], %0 {strides = array<i32>} : memref<18x18x4xf32, #tpu.memory_space<vmem>>, vector<1x18x4xf32>,
    %c0_5 = arith.constant 0 : index
    %c0_6 = arith.constant 0 : index
    %c0_7 = arith.constant 0 : index
    %4 = vector.load %arg6[%c0_5, %c0_6, %c0_7] : memref<18x18x4xf32, #tpu.memory_space<vmem>>, vector<18x1x4xf32>
    tpu.vector_store %arg6[%c0_5, %c0_6, %c0_7], %1 {strides = array<i32>} : memref<18x18x4xf32, #tpu.memory_space<vmem>>, vector<18x1x4xf32>,
    %c0_8 = arith.constant 0 : index
    %c17_9 = arith.constant 17 : index
    %c0_10 = arith.constant 0 : index
    %5 = vector.load %arg6[%c0_8, %c17_9, %c0_10] : memref<18x18x4xf32, #tpu.memory_space<vmem>>, vector<18x1x4xf32>
    tpu.vector_store %arg6[%c0_8, %c17_9, %c0_10], %1 {strides = array<i32>} : memref<18x18x4xf32, #tpu.memory_space<vmem>>, vector<18x1x4xf32>,
    %c0_11 = arith.constant 0 : index
    %c0_12 = arith.constant 0 : index
    %c0_13 = arith.constant 0 : index
    %c0_14 = arith.constant 0 : index
    %6 = vector.load %arg1[%c0_11, %c0_12, %c0_13, %c0_14] : memref<1x16x16x4xf32, #tpu.memory_space<vmem>>, vector<1x16x16x4xf32>
    %7 = vector.shape_cast %6 : vector<1x16x16x4xf32> to vector<16x16x4xf32>
    %c1 = arith.constant 1 : index
    %c1_15 = arith.constant 1 : index
    %c0_16 = arith.constant 0 : index
    %8 = vector.load %arg6[%c1, %c1_15, %c0_16] : memref<18x18x4xf32, #tpu.memory_space<vmem>>, vector<16x16x4xf32>
    tpu.vector_store %arg6[%c1, %c1_15, %c0_16], %7 {strides = array<i32>} : memref<18x18x4xf32, #tpu.memory_space<vmem>>, vector<16x16x4xf32>,
    %c0_17 = arith.constant 0 : index
    %c0_18 = arith.constant 0 : index
    %c0_19 = arith.constant 0 : index
    %9 = vector.load %arg6[%c0_17, %c0_18, %c0_19] : memref<18x18x4xf32, #tpu.memory_space<vmem>>, vector<16x16x4xf32>
    %10 = vector.shape_cast %9 : vector<16x16x4xf32> to vector<256x4xf32>
    %c0_20 = arith.constant 0 : index
    %c0_21 = arith.constant 0 : index
    %11 = vector.load %arg7[%c0_20, %c0_21] : memref<256x36xf32, #tpu.memory_space<vmem>>, vector<256x4xf32>
    tpu.vector_store %arg7[%c0_20, %c0_21], %10 {strides = array<i32>} : memref<256x36xf32, #tpu.memory_space<vmem>>, vector<256x4xf32>,
    %c0_22 = arith.constant 0 : index
    %c1_23 = arith.constant 1 : index
    %c0_24 = arith.constant 0 : index
    %12 = vector.load %arg6[%c0_22, %c1_23, %c0_24] : memref<18x18x4xf32, #tpu.memory_space<vmem>>, vector<16x16x4xf32>
    %13 = vector.shape_cast %12 : vector<16x16x4xf32> to vector<256x4xf32>
    %c0_25 = arith.constant 0 : index
    %c4 = arith.constant 4 : index
    %14 = vector.load %arg7[%c0_25, %c4] : memref<256x36xf32, #tpu.memory_space<vmem>>, vector<256x4xf32>
    tpu.vector_store %arg7[%c0_25, %c4], %13 {strides = array<i32>} : memref<256x36xf32, #tpu.memory_space<vmem>>, vector<256x4xf32>,
    %c0_26 = arith.constant 0 : index
    %c2 = arith.constant 2 : index
    %c0_27 = arith.constant 0 : index
    %15 = vector.load %arg6[%c0_26, %c2, %c0_27] : memref<18x18x4xf32, #tpu.memory_space<vmem>>, vector<16x16x4xf32>
    %16 = vector.shape_cast %15 : vector<16x16x4xf32> to vector<256x4xf32>
    %c0_28 = arith.constant 0 : index
    %c8 = arith.constant 8 : index
    %17 = vector.load %arg7[%c0_28, %c8] : memref<256x36xf32, #tpu.memory_space<vmem>>, vector<256x4xf32>
    tpu.vector_store %arg7[%c0_28, %c8], %16 {strides = array<i32>} : memref<256x36xf32, #tpu.memory_space<vmem>>, vector<256x4xf32>,
    %c1_29 = arith.constant 1 : index
    %c0_30 = arith.constant 0 : index
    %c0_31 = arith.constant 0 : index
    %18 = vector.load %arg6[%c1_29, %c0_30, %c0_31] : memref<18x18x4xf32, #tpu.memory_space<vmem>>, vector<16x16x4xf32>
    %19 = vector.shape_cast %18 : vector<16x16x4xf32> to vector<256x4xf32>
    %c0_32 = arith.constant 0 : index
    %c12 = arith.constant 12 : index
    %20 = vector.load %arg7[%c0_32, %c12] : memref<256x36xf32, #tpu.memory_space<vmem>>, vector<256x4xf32>
    tpu.vector_store %arg7[%c0_32, %c12], %19 {strides = array<i32>} : memref<256x36xf32, #tpu.memory_space<vmem>>, vector<256x4xf32>,
    %c1_33 = arith.constant 1 : index
    %c1_34 = arith.constant 1 : index
    %c0_35 = arith.constant 0 : index
    %21 = vector.load %arg6[%c1_33, %c1_34, %c0_35] : memref<18x18x4xf32, #tpu.memory_space<vmem>>, vector<16x16x4xf32>
    %22 = vector.shape_cast %21 : vector<16x16x4xf32> to vector<256x4xf32>
    %c0_36 = arith.constant 0 : index
    %c16 = arith.constant 16 : index
    %23 = vector.load %arg7[%c0_36, %c16] : memref<256x36xf32, #tpu.memory_space<vmem>>, vector<256x4xf32>
    tpu.vector_store %arg7[%c0_36, %c16], %22 {strides = array<i32>} : memref<256x36xf32, #tpu.memory_space<vmem>>, vector<256x4xf32>,
    %c1_37 = arith.constant 1 : index
    %c2_38 = arith.constant 2 : index
    %c0_39 = arith.constant 0 : index
    %24 = vector.load %arg6[%c1_37, %c2_38, %c0_39] : memref<18x18x4xf32, #tpu.memory_space<vmem>>, vector<16x16x4xf32>
    %25 = vector.shape_cast %24 : vector<16x16x4xf32> to vector<256x4xf32>
    %c0_40 = arith.constant 0 : index
    %c20 = arith.constant 20 : index
    %26 = vector.load %arg7[%c0_40, %c20] : memref<256x36xf32, #tpu.memory_space<vmem>>, vector<256x4xf32>
    tpu.vector_store %arg7[%c0_40, %c20], %25 {strides = array<i32>} : memref<256x36xf32, #tpu.memory_space<vmem>>, vector<256x4xf32>,
    %c2_41 = arith.constant 2 : index
    %c0_42 = arith.constant 0 : index
    %c0_43 = arith.constant 0 : index
    %27 = vector.load %arg6[%c2_41, %c0_42, %c0_43] : memref<18x18x4xf32, #tpu.memory_space<vmem>>, vector<16x16x4xf32>
    %28 = vector.shape_cast %27 : vector<16x16x4xf32> to vector<256x4xf32>
    %c0_44 = arith.constant 0 : index
    %c24 = arith.constant 24 : index
    %29 = vector.load %arg7[%c0_44, %c24] : memref<256x36xf32, #tpu.memory_space<vmem>>, vector<256x4xf32>
    tpu.vector_store %arg7[%c0_44, %c24], %28 {strides = array<i32>} : memref<256x36xf32, #tpu.memory_space<vmem>>, vector<256x4xf32>,
    %c2_45 = arith.constant 2 : index
    %c1_46 = arith.constant 1 : index
    %c0_47 = arith.constant 0 : index
    %30 = vector.load %arg6[%c2_45, %c1_46, %c0_47] : memref<18x18x4xf32, #tpu.memory_space<vmem>>, vector<16x16x4xf32>
    %31 = vector.shape_cast %30 : vector<16x16x4xf32> to vector<256x4xf32>
    %c0_48 = arith.constant 0 : index
    %c28 = arith.constant 28 : index
    %32 = vector.load %arg7[%c0_48, %c28] : memref<256x36xf32, #tpu.memory_space<vmem>>, vector<256x4xf32>
    tpu.vector_store %arg7[%c0_48, %c28], %31 {strides = array<i32>} : memref<256x36xf32, #tpu.memory_space<vmem>>, vector<256x4xf32>,
    %c2_49 = arith.constant 2 : index
    %c2_50 = arith.constant 2 : index
    %c0_51 = arith.constant 0 : index
    %33 = vector.load %arg6[%c2_49, %c2_50, %c0_51] : memref<18x18x4xf32, #tpu.memory_space<vmem>>, vector<16x16x4xf32>
    %34 = vector.shape_cast %33 : vector<16x16x4xf32> to vector<256x4xf32>
    %c0_52 = arith.constant 0 : index
    %c32 = arith.constant 32 : index
    %35 = vector.load %arg7[%c0_52, %c32] : memref<256x36xf32, #tpu.memory_space<vmem>>, vector<256x4xf32>
    tpu.vector_store %arg7[%c0_52, %c32], %34 {strides = array<i32>} : memref<256x36xf32, #tpu.memory_space<vmem>>, vector<256x4xf32>,
    %c0_53 = arith.constant 0 : index
    %c0_54 = arith.constant 0 : index
    %36 = vector.load %arg7[%c0_53, %c0_54] : memref<256x36xf32, #tpu.memory_space<vmem>>, vector<256x36xf32>
    %c0_55 = arith.constant 0 : index
    %c0_56 = arith.constant 0 : index
    %37 = vector.load %arg2[%c0_55, %c0_56] : memref<36x4xf32, #tpu.memory_space<vmem>>, vector<36x4xf32>
    %cst_57 = arith.constant dense<0.000000e+00> : vector<256x4xf32>
    %38 = tpu.matmul %36, %37, %cst_57 {dimension_numbers = #tpu.dot_dimension_numbers<[1], [0], [0], [1], [0, 0, 1, 1], [], []>} : vector<256x36xf32>, vector<36x4xf32>, vector<256x4xf32> -> vector<256x4xf32>
    %39 = vector.shape_cast %38 : vector<256x4xf32> to vector<1x16x16x4xf32>
    %c0_58 = arith.constant 0 : index
    %c0_59 = arith.constant 0 : index
    %c0_60 = arith.constant 0 : index
    %c0_61 = arith.constant 0 : index
    %40 = vector.load %arg3[%c0_58, %c0_59, %c0_60, %c0_61] : memref<1x16x16x4xf32, #tpu.memory_space<vmem>>, vector<1x16x16x4xf32>
    tpu.vector_store %arg3[%c0_58, %c0_59, %c0_60, %c0_61], %39 {strides = array<i32>} : memref<1x16x16x4xf32, #tpu.memory_space<vmem>>, vector<1x16x16x4xf32>,
    %cst_62 = arith.constant dense<0.000000e+00> : vector<4xf32>
    %41 = vector.multi_reduction <add>, %38, %cst_62 [0] : vector<256x4xf32> to vector<4xf32>
    %42 = vector.shape_cast %41 : vector<4xf32> to vector<1x4xf32>
    %43 = vector.shape_cast %42 : vector<1x4xf32> to vector<1x1x4xf32>
    %c0_63 = arith.constant 0 : index
    %c0_64 = arith.constant 0 : index
    %c0_65 = arith.constant 0 : index
    %44 = vector.load %arg4[%c0_63, %c0_64, %c0_65] : memref<1x1x4xf32, #tpu.memory_space<vmem>>, vector<1x1x4xf32>
    tpu.vector_store %arg4[%c0_63, %c0_64, %c0_65], %43 {strides = array<i32>} : memref<1x1x4xf32, #tpu.memory_space<vmem>>, vector<1x1x4xf32>,
    %45 = arith.mulf %38, %38 : vector<256x4xf32>
    %cst_66 = arith.constant dense<0.000000e+00> : vector<4xf32>
    %46 = vector.multi_reduction <add>, %45, %cst_66 [0] : vector<256x4xf32> to vector<4xf32>
    %47 = vector.shape_cast %46 : vector<4xf32> to vector<1x4xf32>
    %48 = vector.shape_cast %47 : vector<1x4xf32> to vector<1x1x4xf32>
    %c0_67 = arith.constant 0 : index
    %c0_68 = arith.constant 0 : index
    %c0_69 = arith.constant 0 : index
    %49 = vector.load %arg5[%c0_67, %c0_68, %c0_69] : memref<1x1x4xf32, #tpu.memory_space<vmem>>, vector<1x1x4xf32>
    tpu.vector_store %arg5[%c0_67, %c0_68, %c0_69], %48 {strides = array<i32>} : memref<1x1x4xf32, #tpu.memory_space<vmem>>, vector<1x1x4xf32>,
    return
  }
  func.func @transform_0(%arg0: i32) -> (i32, i32, i32, i32) {
    %c0_i32 = arith.constant 0 : i32
    %c0_i32_0 = arith.constant 0 : i32
    %c0_i32_1 = arith.constant 0 : i32
    %c0_i32_2 = arith.constant 0 : i32
    return %arg0, %c0_i32, %c0_i32_0, %c0_i32_1 : i32, i32, i32, i32
  }
  func.func @transform_1(%arg0: i32) -> (i32, i32) {
    %c0_i32 = arith.constant 0 : i32
    %c0_i32_0 = arith.constant 0 : i32
    %c0_i32_1 = arith.constant 0 : i32
    return %c0_i32, %c0_i32_0 : i32, i32
  }
  func.func @transform_2(%arg0: i32) -> (i32, i32, i32, i32) {
    %c0_i32 = arith.constant 0 : i32
    %c0_i32_0 = arith.constant 0 : i32
    %c0_i32_1 = arith.constant 0 : i32
    %c0_i32_2 = arith.constant 0 : i32
    return %arg0, %c0_i32, %c0_i32_0, %c0_i32_1 : i32, i32, i32, i32
  }
  func.func @transform_3(%arg0: i32) -> (i32, i32, i32) {
    %c0_i32 = arith.constant 0 : i32
    %c0_i32_0 = arith.constant 0 : i32
    %c0_i32_1 = arith.constant 0 : i32
    return %arg0, %c0_i32, %c0_i32_0 : i32, i32, i32
  }
  func.func @transform_4(%arg0: i32) -> (i32, i32, i32) {
    %c0_i32 = arith.constant 0 : i32
    %c0_i32_0 = arith.constant 0 : i32
    %c0_i32_1 = arith.constant 0 : i32
    return %arg0, %c0_i32, %c0_i32_0 : i32, i32, i32
  }
}

module attributes {stable_mosaic.version = 11 : i64} {
  func.func @_bn1_prelu_conv2_stats_kernel(%arg0: i32, %arg1: memref<1x16x16x4xf32, #tpu.memory_space<vmem>>, %arg2: memref<36x4xf32, #tpu.memory_space<vmem>>, %arg3: memref<1x4xf32, #tpu.memory_space<vmem>>, %arg4: memref<1x4xf32, #tpu.memory_space<vmem>>, %arg5: memref<1x4xf32, #tpu.memory_space<vmem>>, %arg6: memref<1x16x16x4xf32, #tpu.memory_space<vmem>>, %arg7: memref<1x1x4xf32, #tpu.memory_space<vmem>>, %arg8: memref<1x1x4xf32, #tpu.memory_space<vmem>>, %arg9: memref<18x18x4xf32, #tpu.memory_space<vmem>>, %arg10: memref<256x36xf32, #tpu.memory_space<vmem>>) attributes {dimension_semantics = [#tpu.dimension_semantics<parallel>], iteration_bounds = array<i64: 2>, scalar_prefetch = 0 : i64, scratch_operands = 2 : i64, tpu.core_type = #tpu.core_type<tc>, window_params = [{transform_indices = @transform_0, window_bounds = array<i64: 1, 16, 16, 4>}, {pipeline_mode = #tpu.pipeline_mode<synchronous>, transform_indices = @transform_1, window_bounds = array<i64: 36, 4>}, {pipeline_mode = #tpu.pipeline_mode<synchronous>, transform_indices = @transform_2, window_bounds = array<i64: 1, 4>}, {pipeline_mode = #tpu.pipeline_mode<synchronous>, transform_indices = @transform_3, window_bounds = array<i64: 1, 4>}, {pipeline_mode = #tpu.pipeline_mode<synchronous>, transform_indices = @transform_4, window_bounds = array<i64: 1, 4>}, {transform_indices = @transform_5, window_bounds = array<i64: 1, 16, 16, 4>}, {transform_indices = @transform_6, window_bounds = array<i64: 1, 1, 4>}, {transform_indices = @transform_7, window_bounds = array<i64: 1, 1, 4>}]} {
    %c0 = arith.constant 0 : index
    %c0_0 = arith.constant 0 : index
    %c0_1 = arith.constant 0 : index
    %c0_2 = arith.constant 0 : index
    %0 = vector.load %arg1[%c0, %c0_0, %c0_1, %c0_2] : memref<1x16x16x4xf32, #tpu.memory_space<vmem>>, vector<1x16x16x4xf32>
    %1 = vector.shape_cast %0 : vector<1x16x16x4xf32> to vector<256x4xf32>
    %c0_3 = arith.constant 0 : index
    %c0_4 = arith.constant 0 : index
    %2 = vector.load %arg3[%c0_3, %c0_4] : memref<1x4xf32, #tpu.memory_space<vmem>>, vector<1x4xf32>
    %3 = vector.broadcast %2 : vector<1x4xf32> to vector<256x4xf32>
    %4 = arith.mulf %1, %3 : vector<256x4xf32>
    %c0_5 = arith.constant 0 : index
    %c0_6 = arith.constant 0 : index
    %5 = vector.load %arg4[%c0_5, %c0_6] : memref<1x4xf32, #tpu.memory_space<vmem>>, vector<1x4xf32>
    %6 = vector.broadcast %5 : vector<1x4xf32> to vector<256x4xf32>
    %7 = arith.addf %4, %6 : vector<256x4xf32>
    %cst = arith.constant 0.000000e+00 : f32
    %8 = vector.broadcast %cst : f32 to vector<256x4xf32>
    %9 = arith.maximumf %7, %8 : vector<256x4xf32>
    %c0_7 = arith.constant 0 : index
    %c0_8 = arith.constant 0 : index
    %10 = vector.load %arg5[%c0_7, %c0_8] : memref<1x4xf32, #tpu.memory_space<vmem>>, vector<1x4xf32>
    %cst_9 = arith.constant 0.000000e+00 : f32
    %11 = vector.broadcast %cst_9 : f32 to vector<256x4xf32>
    %12 = arith.minimumf %7, %11 : vector<256x4xf32>
    %13 = vector.broadcast %10 : vector<1x4xf32> to vector<256x4xf32>
    %14 = arith.mulf %13, %12 : vector<256x4xf32>
    %15 = arith.addf %9, %14 : vector<256x4xf32>
    %cst_10 = arith.constant 0.000000e+00 : f32
    %16 = vector.broadcast %cst_10 : f32 to vector<1x18x4xf32>
    %cst_11 = arith.constant 0.000000e+00 : f32
    %17 = vector.broadcast %cst_11 : f32 to vector<18x1x4xf32>
    %c0_12 = arith.constant 0 : index
    %c0_13 = arith.constant 0 : index
    %c0_14 = arith.constant 0 : index
    %18 = vector.load %arg9[%c0_12, %c0_13, %c0_14] : memref<18x18x4xf32, #tpu.memory_space<vmem>>, vector<1x18x4xf32>
    tpu.vector_store %arg9[%c0_12, %c0_13, %c0_14], %16 {strides = array<i32>} : memref<18x18x4xf32, #tpu.memory_space<vmem>>, vector<1x18x4xf32>,
    %c17 = arith.constant 17 : index
    %c0_15 = arith.constant 0 : index
    %c0_16 = arith.constant 0 : index
    %19 = vector.load %arg9[%c17, %c0_15, %c0_16] : memref<18x18x4xf32, #tpu.memory_space<vmem>>, vector<1x18x4xf32>
    tpu.vector_store %arg9[%c17, %c0_15, %c0_16], %16 {strides = array<i32>} : memref<18x18x4xf32, #tpu.memory_space<vmem>>, vector<1x18x4xf32>,
    %c0_17 = arith.constant 0 : index
    %c0_18 = arith.constant 0 : index
    %c0_19 = arith.constant 0 : index
    %20 = vector.load %arg9[%c0_17, %c0_18, %c0_19] : memref<18x18x4xf32, #tpu.memory_space<vmem>>, vector<18x1x4xf32>
    tpu.vector_store %arg9[%c0_17, %c0_18, %c0_19], %17 {strides = array<i32>} : memref<18x18x4xf32, #tpu.memory_space<vmem>>, vector<18x1x4xf32>,
    %c0_20 = arith.constant 0 : index
    %c17_21 = arith.constant 17 : index
    %c0_22 = arith.constant 0 : index
    %21 = vector.load %arg9[%c0_20, %c17_21, %c0_22] : memref<18x18x4xf32, #tpu.memory_space<vmem>>, vector<18x1x4xf32>
    tpu.vector_store %arg9[%c0_20, %c17_21, %c0_22], %17 {strides = array<i32>} : memref<18x18x4xf32, #tpu.memory_space<vmem>>, vector<18x1x4xf32>,
    %22 = vector.shape_cast %15 : vector<256x4xf32> to vector<16x16x4xf32>
    %c1 = arith.constant 1 : index
    %c1_23 = arith.constant 1 : index
    %c0_24 = arith.constant 0 : index
    %23 = vector.load %arg9[%c1, %c1_23, %c0_24] : memref<18x18x4xf32, #tpu.memory_space<vmem>>, vector<16x16x4xf32>
    tpu.vector_store %arg9[%c1, %c1_23, %c0_24], %22 {strides = array<i32>} : memref<18x18x4xf32, #tpu.memory_space<vmem>>, vector<16x16x4xf32>,
    %c0_25 = arith.constant 0 : index
    %c0_26 = arith.constant 0 : index
    %c0_27 = arith.constant 0 : index
    %24 = vector.load %arg9[%c0_25, %c0_26, %c0_27] : memref<18x18x4xf32, #tpu.memory_space<vmem>>, vector<16x16x4xf32>
    %25 = vector.shape_cast %24 : vector<16x16x4xf32> to vector<256x4xf32>
    %c0_28 = arith.constant 0 : index
    %c0_29 = arith.constant 0 : index
    %26 = vector.load %arg10[%c0_28, %c0_29] : memref<256x36xf32, #tpu.memory_space<vmem>>, vector<256x4xf32>
    tpu.vector_store %arg10[%c0_28, %c0_29], %25 {strides = array<i32>} : memref<256x36xf32, #tpu.memory_space<vmem>>, vector<256x4xf32>,
    %c0_30 = arith.constant 0 : index
    %c1_31 = arith.constant 1 : index
    %c0_32 = arith.constant 0 : index
    %27 = vector.load %arg9[%c0_30, %c1_31, %c0_32] : memref<18x18x4xf32, #tpu.memory_space<vmem>>, vector<16x16x4xf32>
    %28 = vector.shape_cast %27 : vector<16x16x4xf32> to vector<256x4xf32>
    %c0_33 = arith.constant 0 : index
    %c4 = arith.constant 4 : index
    %29 = vector.load %arg10[%c0_33, %c4] : memref<256x36xf32, #tpu.memory_space<vmem>>, vector<256x4xf32>
    tpu.vector_store %arg10[%c0_33, %c4], %28 {strides = array<i32>} : memref<256x36xf32, #tpu.memory_space<vmem>>, vector<256x4xf32>,
    %c0_34 = arith.constant 0 : index
    %c2 = arith.constant 2 : index
    %c0_35 = arith.constant 0 : index
    %30 = vector.load %arg9[%c0_34, %c2, %c0_35] : memref<18x18x4xf32, #tpu.memory_space<vmem>>, vector<16x16x4xf32>
    %31 = vector.shape_cast %30 : vector<16x16x4xf32> to vector<256x4xf32>
    %c0_36 = arith.constant 0 : index
    %c8 = arith.constant 8 : index
    %32 = vector.load %arg10[%c0_36, %c8] : memref<256x36xf32, #tpu.memory_space<vmem>>, vector<256x4xf32>
    tpu.vector_store %arg10[%c0_36, %c8], %31 {strides = array<i32>} : memref<256x36xf32, #tpu.memory_space<vmem>>, vector<256x4xf32>,
    %c1_37 = arith.constant 1 : index
    %c0_38 = arith.constant 0 : index
    %c0_39 = arith.constant 0 : index
    %33 = vector.load %arg9[%c1_37, %c0_38, %c0_39] : memref<18x18x4xf32, #tpu.memory_space<vmem>>, vector<16x16x4xf32>
    %34 = vector.shape_cast %33 : vector<16x16x4xf32> to vector<256x4xf32>
    %c0_40 = arith.constant 0 : index
    %c12 = arith.constant 12 : index
    %35 = vector.load %arg10[%c0_40, %c12] : memref<256x36xf32, #tpu.memory_space<vmem>>, vector<256x4xf32>
    tpu.vector_store %arg10[%c0_40, %c12], %34 {strides = array<i32>} : memref<256x36xf32, #tpu.memory_space<vmem>>, vector<256x4xf32>,
    %c1_41 = arith.constant 1 : index
    %c1_42 = arith.constant 1 : index
    %c0_43 = arith.constant 0 : index
    %36 = vector.load %arg9[%c1_41, %c1_42, %c0_43] : memref<18x18x4xf32, #tpu.memory_space<vmem>>, vector<16x16x4xf32>
    %37 = vector.shape_cast %36 : vector<16x16x4xf32> to vector<256x4xf32>
    %c0_44 = arith.constant 0 : index
    %c16 = arith.constant 16 : index
    %38 = vector.load %arg10[%c0_44, %c16] : memref<256x36xf32, #tpu.memory_space<vmem>>, vector<256x4xf32>
    tpu.vector_store %arg10[%c0_44, %c16], %37 {strides = array<i32>} : memref<256x36xf32, #tpu.memory_space<vmem>>, vector<256x4xf32>,
    %c1_45 = arith.constant 1 : index
    %c2_46 = arith.constant 2 : index
    %c0_47 = arith.constant 0 : index
    %39 = vector.load %arg9[%c1_45, %c2_46, %c0_47] : memref<18x18x4xf32, #tpu.memory_space<vmem>>, vector<16x16x4xf32>
    %40 = vector.shape_cast %39 : vector<16x16x4xf32> to vector<256x4xf32>
    %c0_48 = arith.constant 0 : index
    %c20 = arith.constant 20 : index
    %41 = vector.load %arg10[%c0_48, %c20] : memref<256x36xf32, #tpu.memory_space<vmem>>, vector<256x4xf32>
    tpu.vector_store %arg10[%c0_48, %c20], %40 {strides = array<i32>} : memref<256x36xf32, #tpu.memory_space<vmem>>, vector<256x4xf32>,
    %c2_49 = arith.constant 2 : index
    %c0_50 = arith.constant 0 : index
    %c0_51 = arith.constant 0 : index
    %42 = vector.load %arg9[%c2_49, %c0_50, %c0_51] : memref<18x18x4xf32, #tpu.memory_space<vmem>>, vector<16x16x4xf32>
    %43 = vector.shape_cast %42 : vector<16x16x4xf32> to vector<256x4xf32>
    %c0_52 = arith.constant 0 : index
    %c24 = arith.constant 24 : index
    %44 = vector.load %arg10[%c0_52, %c24] : memref<256x36xf32, #tpu.memory_space<vmem>>, vector<256x4xf32>
    tpu.vector_store %arg10[%c0_52, %c24], %43 {strides = array<i32>} : memref<256x36xf32, #tpu.memory_space<vmem>>, vector<256x4xf32>,
    %c2_53 = arith.constant 2 : index
    %c1_54 = arith.constant 1 : index
    %c0_55 = arith.constant 0 : index
    %45 = vector.load %arg9[%c2_53, %c1_54, %c0_55] : memref<18x18x4xf32, #tpu.memory_space<vmem>>, vector<16x16x4xf32>
    %46 = vector.shape_cast %45 : vector<16x16x4xf32> to vector<256x4xf32>
    %c0_56 = arith.constant 0 : index
    %c28 = arith.constant 28 : index
    %47 = vector.load %arg10[%c0_56, %c28] : memref<256x36xf32, #tpu.memory_space<vmem>>, vector<256x4xf32>
    tpu.vector_store %arg10[%c0_56, %c28], %46 {strides = array<i32>} : memref<256x36xf32, #tpu.memory_space<vmem>>, vector<256x4xf32>,
    %c2_57 = arith.constant 2 : index
    %c2_58 = arith.constant 2 : index
    %c0_59 = arith.constant 0 : index
    %48 = vector.load %arg9[%c2_57, %c2_58, %c0_59] : memref<18x18x4xf32, #tpu.memory_space<vmem>>, vector<16x16x4xf32>
    %49 = vector.shape_cast %48 : vector<16x16x4xf32> to vector<256x4xf32>
    %c0_60 = arith.constant 0 : index
    %c32 = arith.constant 32 : index
    %50 = vector.load %arg10[%c0_60, %c32] : memref<256x36xf32, #tpu.memory_space<vmem>>, vector<256x4xf32>
    tpu.vector_store %arg10[%c0_60, %c32], %49 {strides = array<i32>} : memref<256x36xf32, #tpu.memory_space<vmem>>, vector<256x4xf32>,
    %c0_61 = arith.constant 0 : index
    %c0_62 = arith.constant 0 : index
    %51 = vector.load %arg10[%c0_61, %c0_62] : memref<256x36xf32, #tpu.memory_space<vmem>>, vector<256x36xf32>
    %c0_63 = arith.constant 0 : index
    %c0_64 = arith.constant 0 : index
    %52 = vector.load %arg2[%c0_63, %c0_64] : memref<36x4xf32, #tpu.memory_space<vmem>>, vector<36x4xf32>
    %cst_65 = arith.constant dense<0.000000e+00> : vector<256x4xf32>
    %53 = tpu.matmul %51, %52, %cst_65 {dimension_numbers = #tpu.dot_dimension_numbers<[1], [0], [0], [1], [0, 0, 1, 1], [], []>} : vector<256x36xf32>, vector<36x4xf32>, vector<256x4xf32> -> vector<256x4xf32>
    %54 = vector.shape_cast %53 : vector<256x4xf32> to vector<1x16x16x4xf32>
    %c0_66 = arith.constant 0 : index
    %c0_67 = arith.constant 0 : index
    %c0_68 = arith.constant 0 : index
    %c0_69 = arith.constant 0 : index
    %55 = vector.load %arg6[%c0_66, %c0_67, %c0_68, %c0_69] : memref<1x16x16x4xf32, #tpu.memory_space<vmem>>, vector<1x16x16x4xf32>
    tpu.vector_store %arg6[%c0_66, %c0_67, %c0_68, %c0_69], %54 {strides = array<i32>} : memref<1x16x16x4xf32, #tpu.memory_space<vmem>>, vector<1x16x16x4xf32>,
    %cst_70 = arith.constant dense<0.000000e+00> : vector<4xf32>
    %56 = vector.multi_reduction <add>, %53, %cst_70 [0] : vector<256x4xf32> to vector<4xf32>
    %57 = vector.shape_cast %56 : vector<4xf32> to vector<1x4xf32>
    %58 = vector.shape_cast %57 : vector<1x4xf32> to vector<1x1x4xf32>
    %c0_71 = arith.constant 0 : index
    %c0_72 = arith.constant 0 : index
    %c0_73 = arith.constant 0 : index
    %59 = vector.load %arg7[%c0_71, %c0_72, %c0_73] : memref<1x1x4xf32, #tpu.memory_space<vmem>>, vector<1x1x4xf32>
    tpu.vector_store %arg7[%c0_71, %c0_72, %c0_73], %58 {strides = array<i32>} : memref<1x1x4xf32, #tpu.memory_space<vmem>>, vector<1x1x4xf32>,
    %60 = arith.mulf %53, %53 : vector<256x4xf32>
    %cst_74 = arith.constant dense<0.000000e+00> : vector<4xf32>
    %61 = vector.multi_reduction <add>, %60, %cst_74 [0] : vector<256x4xf32> to vector<4xf32>
    %62 = vector.shape_cast %61 : vector<4xf32> to vector<1x4xf32>
    %63 = vector.shape_cast %62 : vector<1x4xf32> to vector<1x1x4xf32>
    %c0_75 = arith.constant 0 : index
    %c0_76 = arith.constant 0 : index
    %c0_77 = arith.constant 0 : index
    %64 = vector.load %arg8[%c0_75, %c0_76, %c0_77] : memref<1x1x4xf32, #tpu.memory_space<vmem>>, vector<1x1x4xf32>
    tpu.vector_store %arg8[%c0_75, %c0_76, %c0_77], %63 {strides = array<i32>} : memref<1x1x4xf32, #tpu.memory_space<vmem>>, vector<1x1x4xf32>,
    return
  }
  func.func @transform_0(%arg0: i32) -> (i32, i32, i32, i32) {
    %c0_i32 = arith.constant 0 : i32
    %c0_i32_0 = arith.constant 0 : i32
    %c0_i32_1 = arith.constant 0 : i32
    %c0_i32_2 = arith.constant 0 : i32
    return %arg0, %c0_i32, %c0_i32_0, %c0_i32_1 : i32, i32, i32, i32
  }
  func.func @transform_1(%arg0: i32) -> (i32, i32) {
    %c0_i32 = arith.constant 0 : i32
    %c0_i32_0 = arith.constant 0 : i32
    %c0_i32_1 = arith.constant 0 : i32
    return %c0_i32, %c0_i32_0 : i32, i32
  }
  func.func @transform_2(%arg0: i32) -> (i32, i32) {
    %c0_i32 = arith.constant 0 : i32
    %c0_i32_0 = arith.constant 0 : i32
    %c0_i32_1 = arith.constant 0 : i32
    return %c0_i32, %c0_i32_0 : i32, i32
  }
  func.func @transform_3(%arg0: i32) -> (i32, i32) {
    %c0_i32 = arith.constant 0 : i32
    %c0_i32_0 = arith.constant 0 : i32
    %c0_i32_1 = arith.constant 0 : i32
    return %c0_i32, %c0_i32_0 : i32, i32
  }
  func.func @transform_4(%arg0: i32) -> (i32, i32) {
    %c0_i32 = arith.constant 0 : i32
    %c0_i32_0 = arith.constant 0 : i32
    %c0_i32_1 = arith.constant 0 : i32
    return %c0_i32, %c0_i32_0 : i32, i32
  }
  func.func @transform_5(%arg0: i32) -> (i32, i32, i32, i32) {
    %c0_i32 = arith.constant 0 : i32
    %c0_i32_0 = arith.constant 0 : i32
    %c0_i32_1 = arith.constant 0 : i32
    %c0_i32_2 = arith.constant 0 : i32
    return %arg0, %c0_i32, %c0_i32_0, %c0_i32_1 : i32, i32, i32, i32
  }
  func.func @transform_6(%arg0: i32) -> (i32, i32, i32) {
    %c0_i32 = arith.constant 0 : i32
    %c0_i32_0 = arith.constant 0 : i32
    %c0_i32_1 = arith.constant 0 : i32
    return %arg0, %c0_i32, %c0_i32_0 : i32, i32, i32
  }
  func.func @transform_7(%arg0: i32) -> (i32, i32, i32) {
    %c0_i32 = arith.constant 0 : i32
    %c0_i32_0 = arith.constant 0 : i32
    %c0_i32_1 = arith.constant 0 : i32
    return %arg0, %c0_i32, %c0_i32_0 : i32, i32, i32
  }
}

module attributes {stable_mosaic.version = 11 : i64} {
  func.func @_bn2_residual_kernel(%arg0: i32, %arg1: memref<1x16x64xf32, #tpu.memory_space<vmem>>, %arg2: memref<1x16x64xf32, #tpu.memory_space<vmem>>, %arg3: memref<1x64xf32, #tpu.memory_space<vmem>>, %arg4: memref<1x64xf32, #tpu.memory_space<vmem>>, %arg5: memref<1x16x64xf32, #tpu.memory_space<vmem>>) attributes {dimension_semantics = [#tpu.dimension_semantics<parallel>], iteration_bounds = array<i64: 2>, scalar_prefetch = 0 : i64, scratch_operands = 0 : i64, tpu.core_type = #tpu.core_type<tc>, window_params = [{transform_indices = @transform_0, window_bounds = array<i64: 1, 16, 64>}, {transform_indices = @transform_1, window_bounds = array<i64: 1, 16, 64>}, {pipeline_mode = #tpu.pipeline_mode<synchronous>, transform_indices = @transform_2, window_bounds = array<i64: 1, 64>}, {pipeline_mode = #tpu.pipeline_mode<synchronous>, transform_indices = @transform_3, window_bounds = array<i64: 1, 64>}, {transform_indices = @transform_4, window_bounds = array<i64: 1, 16, 64>}]} {
    %c0 = arith.constant 0 : index
    %c0_0 = arith.constant 0 : index
    %c0_1 = arith.constant 0 : index
    %0 = vector.load %arg1[%c0, %c0_0, %c0_1] : memref<1x16x64xf32, #tpu.memory_space<vmem>>, vector<1x16x64xf32>
    %c0_2 = arith.constant 0 : index
    %c0_3 = arith.constant 0 : index
    %1 = vector.load %arg3[%c0_2, %c0_3] : memref<1x64xf32, #tpu.memory_space<vmem>>, vector<1x64xf32>
    %2 = vector.shape_cast %1 : vector<1x64xf32> to vector<1x1x64xf32>
    %3 = vector.broadcast %2 : vector<1x1x64xf32> to vector<1x16x64xf32>
    %4 = arith.mulf %0, %3 : vector<1x16x64xf32>
    %c0_4 = arith.constant 0 : index
    %c0_5 = arith.constant 0 : index
    %5 = vector.load %arg4[%c0_4, %c0_5] : memref<1x64xf32, #tpu.memory_space<vmem>>, vector<1x64xf32>
    %6 = vector.shape_cast %5 : vector<1x64xf32> to vector<1x1x64xf32>
    %7 = vector.broadcast %6 : vector<1x1x64xf32> to vector<1x16x64xf32>
    %8 = arith.addf %4, %7 : vector<1x16x64xf32>
    %c0_6 = arith.constant 0 : index
    %c0_7 = arith.constant 0 : index
    %c0_8 = arith.constant 0 : index
    %9 = vector.load %arg2[%c0_6, %c0_7, %c0_8] : memref<1x16x64xf32, #tpu.memory_space<vmem>>, vector<1x16x64xf32>
    %10 = arith.addf %8, %9 : vector<1x16x64xf32>
    %c0_9 = arith.constant 0 : index
    %c0_10 = arith.constant 0 : index
    %c0_11 = arith.constant 0 : index
    %11 = vector.load %arg5[%c0_9, %c0_10, %c0_11] : memref<1x16x64xf32, #tpu.memory_space<vmem>>, vector<1x16x64xf32>
    tpu.vector_store %arg5[%c0_9, %c0_10, %c0_11], %10 {strides = array<i32>} : memref<1x16x64xf32, #tpu.memory_space<vmem>>, vector<1x16x64xf32>,
    return
  }
  func.func @transform_0(%arg0: i32) -> (i32, i32, i32) {
    %c0_i32 = arith.constant 0 : i32
    %c0_i32_0 = arith.constant 0 : i32
    %c0_i32_1 = arith.constant 0 : i32
    return %arg0, %c0_i32, %c0_i32_0 : i32, i32, i32
  }
  func.func @transform_1(%arg0: i32) -> (i32, i32, i32) {
    %c0_i32 = arith.constant 0 : i32
    %c0_i32_0 = arith.constant 0 : i32
    %c0_i32_1 = arith.constant 0 : i32
    return %arg0, %c0_i32, %c0_i32_0 : i32, i32, i32
  }
  func.func @transform_2(%arg0: i32) -> (i32, i32) {
    %c0_i32 = arith.constant 0 : i32
    %c0_i32_0 = arith.constant 0 : i32
    %c0_i32_1 = arith.constant 0 : i32
    return %c0_i32, %c0_i32_0 : i32, i32
  }
  func.func @transform_3(%arg0: i32) -> (i32, i32) {
    %c0_i32 = arith.constant 0 : i32
    %c0_i32_0 = arith.constant 0 : i32
    %c0_i32_1 = arith.constant 0 : i32
    return %c0_i32, %c0_i32_0 : i32, i32
  }
  func.func @transform_4(%arg0: i32) -> (i32, i32, i32) {
    %c0_i32 = arith.constant 0 : i32
    %c0_i32_0 = arith.constant 0 : i32
    %c0_i32_1 = arith.constant 0 : i32
    return %arg0, %c0_i32, %c0_i32_0 : i32, i32, i32
  }
}

</mosaic_0001>

<llo_original>
// kernel: tile.13
$region0: #{tile.13}
  #allocation0 [shape = 's32[1]{0}', space=sflag, size = 0x4, scoped, tag = 'scoped memory for tile.13']
  %s0 = inlined_call_operand.vmem [shape: f32[4], index: 0, kind: input, shape index: {}]
  %s1 = inlined_call_operand.vmem [shape: f32[16,4], index: 1, kind: output, shape index: {}]
  // Predicated region
  $region2: #{tile.13} parent=0 // pred_check
    _
  $region3: #{tile.13} parent=0 // pred_check_branch
    %3 = sbr.rel (0) target = $region5
  $region4: #{tile.13} parent=0 // pred_region
    _
  $region5: #{tile.13} parent=0 // pred_fallthru
    _
  %v4 = vld [vmem:[%s0] ss:$0 sm:$0xff]
  %5 = vst [vmem:[%s1] sm:$0xff] %v4
  %s6 = scalar_lea.vmem %s1, 8
  %7 = vst [vmem:[%s6] sm:$0xff] %v4

// kernel: tile.14
$region0: #{tile.14}
  %s0 = inlined_call_operand.vmem [shape: f32[16,4], index: 0, kind: input, shape index: {}]
  %s1 = inlined_call_operand.vmem [shape: f32[1,64], index: 1, kind: output, shape index: {}]
  $region1: #{tile.14} parent=0
    #allocation0 [shape = 'u8[4096]{0}', space=vmem, size = 0x1000, scoped, tag = 'scoped mem for output reshape']
    %v2 = vld [vmem:[%s0] sm:$0x1]
    %vm3 = vcmask 31744
    %4 = vst.msk [vmem:[#allocation0] sm:$0x1] %vm3, %v2
    %s5 = scalar_lea.vmem %s0, 15
    %v6 = vld [vmem:[%s5] sm:$0x1]
    %7 = vrot.lane.b32.xlu0 %v6, 60
    %v8 = vpop.permute.xlu0 %7
    %vm9 = vcmask 523744
    %10 = vst.msk [vmem:[#allocation0] sm:$0x1] %vm9, %v8
    %s11 = scalar_lea.vmem %s0, 14
    %v12 = vld [vmem:[%s11] sm:$0x1]
    %13 = vrot.lane.b32.xlu0 %v12, 56
    %v14 = vpop.permute.xlu0 %13
    %vm15 = vcmask 490944
    %16 = vst.msk [vmem:[#allocation0] sm:$0x1] %vm15, %v14
    %s17 = scalar_lea.vmem %s0, 13
    %v18 = vld [vmem:[%s17] sm:$0x1]
    %19 = vrot.lane.b32.xlu0 %v18, 52
    %v20 = vpop.permute.xlu0 %19
    %vm21 = vcmask 458144
    %22 = vst.msk [vmem:[#allocation0] sm:$0x1] %vm21, %v20
    %s23 = scalar_lea.vmem %s0, 12
    %v24 = vld [vmem:[%s23] sm:$0x1]
    %25 = vrot.lane.b32.xlu0 %v24, 48
    %v26 = vpop.permute.xlu0 %25
    %vm27 = vcmask 425344
    %28 = vst.msk [vmem:[#allocation0] sm:$0x1] %vm27, %v26
    %s29 = scalar_lea.vmem %s0, 11
    %v30 = vld [vmem:[%s29] sm:$0x1]
    %31 = vrot.lane.b32.xlu0 %v30, 44
    %v32 = vpop.permute.xlu0 %31
    %vm33 = vcmask 392544
    %34 = vst.msk [vmem:[#allocation0] sm:$0x1] %vm33, %v32
    %s35 = scalar_lea.vmem %s0, 10
    %v36 = vld [vmem:[%s35] sm:$0x1]
    %37 = vrot.lane.b32.xlu0 %v36, 40
    %v38 = vpop.permute.xlu0 %37
    %vm39 = vcmask 359744
    %40 = vst.msk [vmem:[#allocation0] sm:$0x1] %vm39, %v38
    %s41 = scalar_lea.vmem %s0, 9
    %v42 = vld [vmem:[%s41] sm:$0x1]
    %43 = vrot.lane.b32.xlu0 %v42, 36
    %v44 = vpop.permute.xlu0 %43
    %vm45 = vcmask 326944
    %46 = vst.msk [vmem:[#allocation0] sm:$0x1] %vm45, %v44
    %s47 = scalar_lea.vmem %s0, 8
    %v48 = vld [vmem:[%s47] sm:$0x1]
    %49 = vrot.lane.b32.xlu0 %v48, 32
    %v50 = vpop.permute.xlu0 %49
    %vm51 = vcmask 294144
    %52 = vst.msk [vmem:[#allocation0] sm:$0x1] %vm51, %v50
    %s53 = scalar_lea.vmem %s0, 7
    %v54 = vld [vmem:[%s53] sm:$0x1]
    %55 = vrot.lane.b32.xlu0 %v54, 28
    %v56 = vpop.permute.xlu0 %55
    %vm57 = vcmask 261344
    %58 = vst.msk [vmem:[#allocation0] sm:$0x1] %vm57, %v56
    %s59 = scalar_lea.vmem %s0, 6
    %v60 = vld [vmem:[%s59] sm:$0x1]
    %61 = vrot.lane.b32.xlu0 %v60, 24
    %v62 = vpop.permute.xlu0 %61
    %vm63 = vcmask 228544
    %64 = vst.msk [vmem:[#allocation0] sm:$0x1] %vm63, %v62
    %s65 = scalar_lea.vmem %s0, 5
    %v66 = vld [vmem:[%s65] sm:$0x1]
    %67 = vrot.lane.b32.xlu0 %v66, 20
    %v68 = vpop.permute.xlu0 %67
    %vm69 = vcmask 195744
    %70 = vst.msk [vmem:[#allocation0] sm:$0x1] %vm69, %v68
    %s71 = scalar_lea.vmem %s0, 4
    %v72 = vld [vmem:[%s71] sm:$0x1]
    %73 = vrot.lane.b32.xlu0 %v72, 16
    %v74 = vpop.permute.xlu0 %73
    %vm75 = vcmask 162944
    %76 = vst.msk [vmem:[#allocation0] sm:$0x1] %vm75, %v74
    %s77 = scalar_lea.vmem %s0, 3
    %v78 = vld [vmem:[%s77] sm:$0x1]
    %79 = vrot.lane.b32.xlu0 %v78, 12
    %v80 = vpop.permute.xlu0 %79
    %vm81 = vcmask 130144
    %82 = vst.msk [vmem:[#allocation0] sm:$0x1] %vm81, %v80
    %s83 = scalar_lea.vmem %s0, 2
    %v84 = vld [vmem:[%s83] sm:$0x1]
    %85 = vrot.lane.b32.xlu0 %v84, 8
    %v86 = vpop.permute.xlu0 %85
    %vm87 = vcmask 97344
    %88 = vst.msk [vmem:[#allocation0] sm:$0x1] %vm87, %v86
    %s89 = scalar_lea.vmem %s0, 1
    %v90 = vld [vmem:[%s89] sm:$0x1]
    %91 = vrot.lane.b32.xlu0 %v90, 4
    %v92 = vpop.permute.xlu0 %91
    %vm93 = vcmask 64544
    %94 = vst.msk [vmem:[#allocation0] sm:$0x1] %vm93, %v92
    %s96 = ssub.s32 2, 1
    %v97 = vld [vmem:[#allocation0] sm:%s96]
    %s99 = ssub.s32 2, 1
    %100 = vst [vmem:[%s1] sm:%s99] %v97

// kernel: residual_conv_block.5
$region0: #{residual_conv_block.5}
  #allocation0 [shape = 'u32[]', space=smem, size = 0x4, offset = 0x4, fixed_abs, tag = 'smem constant byte address 0x4 - core index']
  #allocation1 [shape = 'u32[72,128]{1,0:T(1,128)}', space=vmem, size = 0x9000, scoped, tag = 'internal scratch']
  %s0 = inlined_call_operand.vmem [shape: f32[2,16,64], index: 0, kind: input, shape index: {}]
  %s1 = inlined_call_operand.vmem [shape: f32[2,16,64], index: 1, kind: input, shape index: {}]
  %s2 = inlined_call_operand.vmem [shape: f32[1,64], index: 2, kind: input, shape index: {}]
  %s3 = inlined_call_operand.vmem [shape: f32[1,64], index: 3, kind: input, shape index: {}]
  %s4 = inlined_call_operand.vmem [shape: f32[2,16,64], index: 4, kind: output, shape index: {}]
  %s5 = sld [smem:[#allocation0]]
  $region49: #{residual_conv_block.5} parent=0
    _
  %s7 = ssub.s32 1, %s5
  %s8 = scalar_select 0, %s7, %s5
  loop: start=0, step=1, limit=4
  $region2: #{residual_conv_block.5} parent=0 // loop_pre_header
    _
  $region3: #{residual_conv_block.5} parent=0 // loop_header
    %s10 = sphi 0, %s14
    %p11 = scmp.ge.s32.totalorder %s10, 4
    %s20 = sphi 0, %s22
    %s23 = sphi 0, %s20
    %s24 = sphi 0, %s23
    %s40 = sphi 0, %s24
    %s46 = sphi 0, %s48
    %s49 = sphi 0, %s46
    %s50 = sphi 0, %s49
    %s66 = sphi 0, %s50
    %s70 = sphi 0, %s70
    %s72 = sphi 0, %s70
    %s73 = sphi 0, %s72
    %s87 = sphi 0, %s73
    %s91 = sphi 0, %s91
    %s93 = sphi 0, %s91
    %s94 = sphi 0, %s93
    %s108 = sphi 0, %s94
    %s114 = sphi 0, %s116
    %s117 = sphi 0, %s114
    %s118 = sphi 0, %s117
    %s134 = sphi 0, %s118
  $region4: #{residual_conv_block.5} parent=0 // loop_header_branch
    %13 = sbr.rel (%p11) target = $region8
  $region5: #{residual_conv_block.5} parent=0 // loop_body
    %s15 = ssub.s32 %s10, 1
    %s16 = ssub.s32 %s10, 2
    %s17 = sadd.s32 %s10, 1
    %s18 = ssub.s32 %s10, %s17
    %p19 = scmp.eq.s32.totalorder %s18, 0
    %s21 = sadd.s32 %s20, 1
    %s22 = scalar_select %p19, %s20, %s21
    %p25 = pneg %p19
    %p26 = scmp.eq.s32.totalorder %s10, 1
    %p27 = por %p25, %p26
    %p28 = scmp.ne.s32.totalorder %s20, %s23
    %p29 = scmp.eq.s32.totalorder %s10, 0
    %p30 = por %p28, %p29
    %p31 = scmp.ne.s32.totalorder %s20, %s23
    %p32 = scmp.eq.s32.totalorder %s15, 1
    %p33 = por %p31, %p32
    %p34 = scmp.ne.s32.totalorder %s23, %s24
    %p35 = scmp.eq.s32.totalorder %s15, 0
    %p36 = por %p34, %p35
    %p37 = scmp.ne.s32.totalorder %s23, %s24
    %p38 = scmp.eq.s32.totalorder %s16, 1
    %p39 = por %p37, %p38
    %p41 = scmp.ne.s32.totalorder %s24, %s40
    %p42 = scmp.eq.s32.totalorder %s16, 0
    %p43 = por %p41, %p42
    %s44 = ssub.s32 %s10, %s17
    %p45 = scmp.eq.s32.totalorder %s44, 0
    %s47 = sadd.s32 %s46, 1
    %s48 = scalar_select %p45, %s46, %s47
    %p51 = pneg %p45
    %p52 = scmp.eq.s32.totalorder %s10, 1
    %p53 = por %p51, %p52
    %p54 = scmp.ne.s32.totalorder %s46, %s49
    %p55 = scmp.eq.s32.totalorder %s10, 0
    %p56 = por %p54, %p55
    %p57 = scmp.ne.s32.totalorder %s46, %s49
    %p58 = scmp.eq.s32.totalorder %s15, 1
    %p59 = por %p57, %p58
    %p60 = scmp.ne.s32.totalorder %s49, %s50
    %p61 = scmp.eq.s32.totalorder %s15, 0
    %p62 = por %p60, %p61
    %p63 = scmp.ne.s32.totalorder %s49, %s50
    %p64 = scmp.eq.s32.totalorder %s16, 1
    %p65 = por %p63, %p64
    %p67 = scmp.ne.s32.totalorder %s50, %s66
    %p68 = scmp.eq.s32.totalorder %s16, 0
    %p69 = por %p67, %p68
    %s71 = sadd.s32 %s70, 1
    %p74 = scmp.eq.s32.totalorder %s10, 1
    %p75 = scmp.ne.s32.totalorder %s70, %s72
    %p76 = scmp.eq.s32.totalorder %s10, 0
    %p77 = por %p75, %p76
    %p78 = scmp.ne.s32.totalorder %s70, %s72
    %p79 = scmp.eq.s32.totalorder %s15, 1
    %p80 = por %p78, %p79
    %p81 = scmp.ne.s32.totalorder %s72, %s73
    %p82 = scmp.eq.s32.totalorder %s15, 0
    %p83 = por %p81, %p82
    %p84 = scmp.ne.s32.totalorder %s72, %s73
    %p85 = scmp.eq.s32.totalorder %s16, 1
    %p86 = por %p84, %p85
    %p88 = scmp.ne.s32.totalorder %s73, %s87
    %p89 = scmp.eq.s32.totalorder %s16, 0
    %p90 = por %p88, %p89
    %s92 = sadd.s32 %s91, 1
    %p95 = scmp.eq.s32.totalorder %s10, 1
    %p96 = scmp.ne.s32.totalorder %s91, %s93
    %p97 = scmp.eq.s32.totalorder %s10, 0
    %p98 = por %p96, %p97
    %p99 = scmp.ne.s32.totalorder %s91, %s93
    %p100 = scmp.eq.s32.totalorder %s15, 1
    %p101 = por %p99, %p100
    %p102 = scmp.ne.s32.totalorder %s93, %s94
    %p103 = scmp.eq.s32.totalorder %s15, 0
    %p104 = por %p102, %p103
    %p105 = scmp.ne.s32.totalorder %s93, %s94
    %p106 = scmp.eq.s32.totalorder %s16, 1
    %p107 = por %p105, %p106
    %p109 = scmp.ne.s32.totalorder %s94, %s108
    %p110 = scmp.eq.s32.totalorder %s16, 0
    %p111 = por %p109, %p110
    %s112 = ssub.s32 %s10, %s17
    %p113 = scmp.eq.s32.totalorder %s112, 0
    %s115 = sadd.s32 %s114, 1
    %s116 = scalar_select %p113, %s114, %s115
    %p119 = pneg %p113
    %p120 = scmp.eq.s32.totalorder %s10, 1
    %p121 = por %p119, %p120
    %p122 = scmp.ne.s32.totalorder %s114, %s117
    %p123 = scmp.eq.s32.totalorder %s10, 0
    %p124 = por %p122, %p123
    %p125 = scmp.ne.s32.totalorder %s114, %s117
    %p126 = scmp.eq.s32.totalorder %s15, 1
    %p127 = por %p125, %p126
    %p128 = scmp.ne.s32.totalorder %s117, %s118
    %p129 = scmp.eq.s32.totalorder %s15, 0
    %p130 = por %p128, %p129
    %p131 = scmp.ne.s32.totalorder %s117, %s118
    %p132 = scmp.eq.s32.totalorder %s16, 1
    %p133 = por %p131, %p132
    %p135 = scmp.ne.s32.totalorder %s118, %s134
    %p136 = scmp.eq.s32.totalorder %s16, 0
    %p137 = por %p135, %p136
    %p138 = scmp.le.s32.totalorder 1, %s10
    %p139 = scmp.lt.s32.totalorder %s10, 3
    %p140 = pnand %p138, %p139
    %p141 = pneg %p140
    // Predicated region
    $region9: #{residual_conv_block.5} parent=5 // pred_check
      _
    $region10: #{residual_conv_block.5} parent=5 // pred_check_branch
      %143 = sbr.rel (%p140) target = $region12
    $region11: #{residual_conv_block.5} parent=5 // pred_region
      %s144 = ssub.s32 %s10, 1
      // Predicated region
      $region13: #{residual_conv_block.5} parent=11 // pred_check
        %p145 = pneg %p83
      $region14: #{residual_conv_block.5} parent=11 // pred_check_branch
        %147 = sbr.rel (%p145) target = $region16
      $region15: #{residual_conv_block.5} parent=11 // pred_region
        _
      $region16: #{residual_conv_block.5} parent=11 // pred_fallthru
        _
      // Predicated region
      $region17: #{residual_conv_block.5} parent=11 // pred_check
        %p148 = pneg %p104
      $region18: #{residual_conv_block.5} parent=11 // pred_check_branch
        %150 = sbr.rel (%p148) target = $region20
      $region19: #{residual_conv_block.5} parent=11 // pred_region
        _
      $region20: #{residual_conv_block.5} parent=11 // pred_fallthru
        _
    $region12: #{residual_conv_block.5} parent=5 // pred_fallthru
      _
    %p151 = scmp.lt.s32.totalorder %s10, 2
    // Predicated region
    $region21: #{residual_conv_block.5} parent=5 // pred_check
      %p152 = pneg %p151
    $region22: #{residual_conv_block.5} parent=5 // pred_check_branch
      %154 = sbr.rel (%p152) target = $region24
    $region23: #{residual_conv_block.5} parent=5 // pred_region
      // Predicated region
      $region25: #{residual_conv_block.5} parent=23 // pred_check
        %p155 = pneg %p30
      $region26: #{residual_conv_block.5} parent=23 // pred_check_branch
        %157 = sbr.rel (%p155) target = $region28
      $region27: #{residual_conv_block.5} parent=23 // pred_region
        %p158 = scmp.lt.s32.totalorder %s10, 1
        %s159 = scalar_select %p158, %s10, 1
        %s160 = smul.addr %s159, 2
        %s161 = smul.addr %s160, 8
        %s162 = scalar_lea.vmem %s0, %s161
      $region28: #{residual_conv_block.5} parent=23 // pred_fallthru
        _
      // Predicated region
      $region29: #{residual_conv_block.5} parent=23 // pred_check
        %p163 = pneg %p56
      $region30: #{residual_conv_block.5} parent=23 // pred_check_branch
        %165 = sbr.rel (%p163) target = $region32
      $region31: #{residual_conv_block.5} parent=23 // pred_region
        %p166 = scmp.lt.s32.totalorder %s10, 1
        %s167 = scalar_select %p166, %s10, 1
        %s168 = smul.addr %s167, 2
        %s169 = smul.addr %s168, 8
        %s170 = scalar_lea.vmem %s1, %s169
      $region32: #{residual_conv_block.5} parent=23 // pred_fallthru
        _
    $region24: #{residual_conv_block.5} parent=5 // pred_fallthru
      _
    %p171 = scmp.le.s32.totalorder 1, %s10
    %p172 = scmp.lt.s32.totalorder %s10, 3
    %p173 = pnand %p171, %p172
    %p174 = pneg %p173
    // Predicated region
    $region33: #{residual_conv_block.5} parent=5 // pred_check
      _
    $region34: #{residual_conv_block.5} parent=5 // pred_check_branch
      %176 = sbr.rel (%p173) target = $region36
    $region35: #{residual_conv_block.5} parent=5 // pred_region
      %s177 = ssub.s32 %s10, 1
      %p178 = scmp.lt.s32.totalorder %s15, 1
      %s179 = scalar_select %p178, %s15, 1
      %s180 = smul.addr %s179, 2
      %s181 = smul.addr %s180, 8
      %s182 = scalar_lea.vmem %s0, %s181
      %p183 = pneg %p36
      %p184 = pneg %p33
      %p185 = scmp.lt.s32.totalorder %s15, 1
      %s186 = scalar_select %p185, %s15, 1
      %s187 = smul.addr %s186, 2
      %s188 = smul.addr %s187, 8
      %s189 = scalar_lea.vmem %s1, %s188
      %p190 = pneg %p62
      %p191 = pneg %p59
      %p192 = pneg %p83
      %p193 = pneg %p80
      %p194 = pneg %p104
      %p195 = pneg %p101
      %p196 = pneg %p130
      %p197 = pneg %p127
      %p198 = scmp.lt.s32.totalorder %s15, 1
      %s199 = scalar_select %p198, %s15, 1
      %s200 = smul.addr %s199, 2
      %s201 = smul.addr %s200, 8
      %s202 = scalar_lea.vmem %s4, %s201
      %p203 = scmp.lt.s32.totalorder %s15, 1
      %s204 = scalar_select %p203, %s15, 1
      %s205 = smul.addr %s204, 2
      %s206 = smul.addr %s205, 8
      %s207 = scalar_lea.vmem %s0, %s206
      %p208 = scmp.lt.s32.totalorder %s15, 1
      %s209 = scalar_select %p208, %s15, 1
      %s210 = smul.addr %s209, 2
      %s211 = smul.addr %s210, 8
      %s212 = scalar_lea.vmem %s1, %s211
      %p213 = scmp.lt.s32.totalorder %s15, 1
      %s214 = scalar_select %p213, %s15, 1
      %s215 = smul.addr %s214, 2
      %s216 = smul.addr %s215, 8
      %s217 = scalar_lea.vmem %s4, %s216
      %v218 = vld [vmem:[%s207] sm:$0xff]
      %v219 = vld [vmem:[%s207 + $0x8] sm:$0xff]
      %v220 = vld [vmem:[%s2] sm:$0x1]
      %v222 = vperm.slane %v220, 0
      %v224 = vmul.f32 %v218, %v222
      %v225 = vmul.f32 %v219, %v222
      %v226 = vld [vmem:[%s3] sm:$0x1]
      %v228 = vperm.slane %v226, 0
      %v230 = vadd.f32 %v224, %v228
      %v231 = vadd.f32 %v225, %v228
      %v232 = vld [vmem:[%s212] sm:$0xff]
      %v233 = vld [vmem:[%s212 + $0x8] sm:$0xff]
      %v234 = vadd.f32 %v230, %v232
      %v235 = vadd.f32 %v231, %v233
      %vm236 = vcmask 523264
      %237 = vst.msk [vmem:[%s217] sm:$0xff] %vm236, %v234
      %238 = vst.msk [vmem:[%s217 + $0x8] sm:$0xff] %vm236, %v235
      %p239 = scmp.lt.s32.totalorder %s15, 1
      %s240 = scalar_select %p239, %s15, 1
      %s241 = smul.addr %s240, 2
      %s242 = smul.addr %s241, 8
      %s243 = scalar_lea.vmem %s4, %s242
      // Predicated region
      $region37: #{residual_conv_block.5} parent=35 // pred_check
        %p244 = pneg %p127
      $region38: #{residual_conv_block.5} parent=35 // pred_check_branch
        %246 = sbr.rel (%p244) target = $region40
      $region39: #{residual_conv_block.5} parent=35 // pred_region
        _
      $region40: #{residual_conv_block.5} parent=35 // pred_fallthru
        _
    $region36: #{residual_conv_block.5} parent=5 // pred_fallthru
      _
    %p247 = scmp.le.s32.totalorder 2, %s10
    // Predicated region
    $region41: #{residual_conv_block.5} parent=5 // pred_check
      %p248 = pneg %p247
    $region42: #{residual_conv_block.5} parent=5 // pred_check_branch
      %250 = sbr.rel (%p248) target = $region44
    $region43: #{residual_conv_block.5} parent=5 // pred_region
      %s251 = ssub.s32 %s10, 2
      // Predicated region
      $region45: #{residual_conv_block.5} parent=43 // pred_check
        %p252 = pneg %p133
      $region46: #{residual_conv_block.5} parent=43 // pred_check_branch
        %254 = sbr.rel (%p252) target = $region48
      $region47: #{residual_conv_block.5} parent=43 // pred_region
        %p255 = scmp.lt.s32.totalorder %s16, 1
        %s256 = scalar_select %p255, %s16, 1
        %s257 = smul.addr %s256, 2
        %s258 = smul.addr %s257, 8
        %s259 = scalar_lea.vmem %s4, %s258
      $region48: #{residual_conv_block.5} parent=43 // pred_fallthru
        _
    $region44: #{residual_conv_block.5} parent=5 // pred_fallthru
      _
  $region6: #{residual_conv_block.5} parent=0 // loop_footer
    %s14 = sadd.s32 1, %s10
  $region7: #{residual_conv_block.5} parent=0 // loop_footer_branch
    %9 = sbr.rel target = $region3
  $region8: #{residual_conv_block.5} parent=0 // loop_exit
    _

// kernel: residual_conv_block.3
$region0: #{residual_conv_block.3}
  #allocation0 [shape = 'u32[]', space=smem, size = 0x4, offset = 0x4, fixed_abs, tag = 'smem constant byte address 0x4 - core index']
  #allocation1 [shape = 'u32[72,128]{1,0:T(1,128)}', space=vmem, size = 0x9000, scoped, tag = 'internal scratch']
  #allocation2 [shape = 'f32[18,18,4]{2,1,0:T(8,128)}', space=vmem, size = 0x36000, scoped, tag = 'scratch operand']
  #allocation3 [shape = 'f32[256,36]{1,0:T(8,128)}', space=vmem, size = 0x20000, scoped, tag = 'scratch operand']
  %s0 = inlined_call_operand.vmem [shape: f32[2,16,16,4], index: 0, kind: input, shape index: {}]
  %s1 = inlined_call_operand.vmem [shape: f32[36,4], index: 1, kind: input, shape index: {}]
  %s2 = inlined_call_operand.vmem [shape: f32[2,16,16,4], index: 2, kind: output, shape index: {0}]
  %s3 = inlined_call_operand.vmem [shape: f32[2,1,4], index: 3, kind: output, shape index: {1}]
  %s4 = inlined_call_operand.vmem [shape: f32[2,1,4], index: 4, kind: output, shape index: {2}]
  %5 = xla_tuple %s2, %s3, %s4
  %s6 = sld [smem:[#allocation0]]
  $region57: #{residual_conv_block.3} parent=0
    _
  %s8 = ssub.s32 1, %s6
  %s9 = scalar_select 0, %s8, %s6
  loop: start=0, step=1, limit=4
  $region2: #{residual_conv_block.3} parent=0 // loop_pre_header
    _
  $region3: #{residual_conv_block.3} parent=0 // loop_header
    %s11 = sphi 0, %s15
    %p12 = scmp.ge.s32.totalorder %s11, 4
    %s21 = sphi 0, %s23
    %s24 = sphi 0, %s21
    %s25 = sphi 0, %s24
    %s41 = sphi 0, %s25
    %s45 = sphi 0, %s45
    %s47 = sphi 0, %s45
    %s48 = sphi 0, %s47
    %s62 = sphi 0, %s48
    %s68 = sphi 0, %s70
    %s71 = sphi 0, %s68
    %s72 = sphi 0, %s71
    %s88 = sphi 0, %s72
    %s94 = sphi 0, %s96
    %s97 = sphi 0, %s94
    %s98 = sphi 0, %s97
    %s114 = sphi 0, %s98
    %s120 = sphi 0, %s122
    %s123 = sphi 0, %s120
    %s124 = sphi 0, %s123
    %s140 = sphi 0, %s124
  $region4: #{residual_conv_block.3} parent=0 // loop_header_branch
    %14 = sbr.rel (%p12) target = $region8
  $region5: #{residual_conv_block.3} parent=0 // loop_body
    %s16 = ssub.s32 %s11, 1
    %s17 = ssub.s32 %s11, 2
    %s18 = sadd.s32 %s11, 1
    %s19 = ssub.s32 %s11, %s18
    %p20 = scmp.eq.s32.totalorder %s19, 0
    %s22 = sadd.s32 %s21, 1
    %s23 = scalar_select %p20, %s21, %s22
    %p26 = pneg %p20
    %p27 = scmp.eq.s32.totalorder %s11, 1
    %p28 = por %p26, %p27
    %p29 = scmp.ne.s32.totalorder %s21, %s24
    %p30 = scmp.eq.s32.totalorder %s11, 0
    %p31 = por %p29, %p30
    %p32 = scmp.ne.s32.totalorder %s21, %s24
    %p33 = scmp.eq.s32.totalorder %s16, 1
    %p34 = por %p32, %p33
    %p35 = scmp.ne.s32.totalorder %s24, %s25
    %p36 = scmp.eq.s32.totalorder %s16, 0
    %p37 = por %p35, %p36
    %p38 = scmp.ne.s32.totalorder %s24, %s25
    %p39 = scmp.eq.s32.totalorder %s17, 1
    %p40 = por %p38, %p39
    %p42 = scmp.ne.s32.totalorder %s25, %s41
    %p43 = scmp.eq.s32.totalorder %s17, 0
    %p44 = por %p42, %p43
    %s46 = sadd.s32 %s45, 1
    %p49 = scmp.eq.s32.totalorder %s11, 1
    %p50 = scmp.ne.s32.totalorder %s45, %s47
    %p51 = scmp.eq.s32.totalorder %s11, 0
    %p52 = por %p50, %p51
    %p53 = scmp.ne.s32.totalorder %s45, %s47
    %p54 = scmp.eq.s32.totalorder %s16, 1
    %p55 = por %p53, %p54
    %p56 = scmp.ne.s32.totalorder %s47, %s48
    %p57 = scmp.eq.s32.totalorder %s16, 0
    %p58 = por %p56, %p57
    %p59 = scmp.ne.s32.totalorder %s47, %s48
    %p60 = scmp.eq.s32.totalorder %s17, 1
    %p61 = por %p59, %p60
    %p63 = scmp.ne.s32.totalorder %s48, %s62
    %p64 = scmp.eq.s32.totalorder %s17, 0
    %p65 = por %p63, %p64
    %s66 = ssub.s32 %s11, %s18
    %p67 = scmp.eq.s32.totalorder %s66, 0
    %s69 = sadd.s32 %s68, 1
    %s70 = scalar_select %p67, %s68, %s69
    %p73 = pneg %p67
    %p74 = scmp.eq.s32.totalorder %s11, 1
    %p75 = por %p73, %p74
    %p76 = scmp.ne.s32.totalorder %s68, %s71
    %p77 = scmp.eq.s32.totalorder %s11, 0
    %p78 = por %p76, %p77
    %p79 = scmp.ne.s32.totalorder %s68, %s71
    %p80 = scmp.eq.s32.totalorder %s16, 1
    %p81 = por %p79, %p80
    %p82 = scmp.ne.s32.totalorder %s71, %s72
    %p83 = scmp.eq.s32.totalorder %s16, 0
    %p84 = por %p82, %p83
    %p85 = scmp.ne.s32.totalorder %s71, %s72
    %p86 = scmp.eq.s32.totalorder %s17, 1
    %p87 = por %p85, %p86
    %p89 = scmp.ne.s32.totalorder %s72, %s88
    %p90 = scmp.eq.s32.totalorder %s17, 0
    %p91 = por %p89, %p90
    %s92 = ssub.s32 %s11, %s18
    %p93 = scmp.eq.s32.totalorder %s92, 0
    %s95 = sadd.s32 %s94, 1
    %s96 = scalar_select %p93, %s94, %s95
    %p99 = pneg %p93
    %p100 = scmp.eq.s32.totalorder %s11, 1
    %p101 = por %p99, %p100
    %p102 = scmp.ne.s32.totalorder %s94, %s97
    %p103 = scmp.eq.s32.totalorder %s11, 0
    %p104 = por %p102, %p103
    %p105 = scmp.ne.s32.totalorder %s94, %s97
    %p106 = scmp.eq.s32.totalorder %s16, 1
    %p107 = por %p105, %p106
    %p108 = scmp.ne.s32.totalorder %s97, %s98
    %p109 = scmp.eq.s32.totalorder %s16, 0
    %p110 = por %p108, %p109
    %p111 = scmp.ne.s32.totalorder %s97, %s98
    %p112 = scmp.eq.s32.totalorder %s17, 1
    %p113 = por %p111, %p112
    %p115 = scmp.ne.s32.totalorder %s98, %s114
    %p116 = scmp.eq.s32.totalorder %s17, 0
    %p117 = por %p115, %p116
    %s118 = ssub.s32 %s11, %s18
    %p119 = scmp.eq.s32.totalorder %s118, 0
    %s121 = sadd.s32 %s120, 1
    %s122 = scalar_select %p119, %s120, %s121
    %p125 = pneg %p119
    %p126 = scmp.eq.s32.totalorder %s11, 1
    %p127 = por %p125, %p126
    %p128 = scmp.ne.s32.totalorder %s120, %s123
    %p129 = scmp.eq.s32.totalorder %s11, 0
    %p130 = por %p128, %p129
    %p131 = scmp.ne.s32.totalorder %s120, %s123
    %p132 = scmp.eq.s32.totalorder %s16, 1
    %p133 = por %p131, %p132
    %p134 = scmp.ne.s32.totalorder %s123, %s124
    %p135 = scmp.eq.s32.totalorder %s16, 0
    %p136 = por %p134, %p135
    %p137 = scmp.ne.s32.totalorder %s123, %s124
    %p138 = scmp.eq.s32.totalorder %s17, 1
    %p139 = por %p137, %p138
    %p141 = scmp.ne.s32.totalorder %s124, %s140
    %p142 = scmp.eq.s32.totalorder %s17, 0
    %p143 = por %p141, %p142
    %p144 = scmp.le.s32.totalorder 1, %s11
    %p145 = scmp.lt.s32.totalorder %s11, 3
    %p146 = pnand %p144, %p145
    %p147 = pneg %p146
    // Predicated region
    $region9: #{residual_conv_block.3} parent=5 // pred_check
      _
    $region10: #{residual_conv_block.3} parent=5 // pred_check_branch
      %149 = sbr.rel (%p146) target = $region12
    $region11: #{residual_conv_block.3} parent=5 // pred_region
      %s150 = ssub.s32 %s11, 1
      // Predicated region
      $region13: #{residual_conv_block.3} parent=11 // pred_check
        %p151 = pneg %p58
      $region14: #{residual_conv_block.3} parent=11 // pred_check_branch
        %153 = sbr.rel (%p151) target = $region16
      $region15: #{residual_conv_block.3} parent=11 // pred_region
        _
      $region16: #{residual_conv_block.3} parent=11 // pred_fallthru
        _
    $region12: #{residual_conv_block.3} parent=5 // pred_fallthru
      _
    %p154 = scmp.lt.s32.totalorder %s11, 2
    // Predicated region
    $region17: #{residual_conv_block.3} parent=5 // pred_check
      %p155 = pneg %p154
    $region18: #{residual_conv_block.3} parent=5 // pred_check_branch
      %157 = sbr.rel (%p155) target = $region20
    $region19: #{residual_conv_block.3} parent=5 // pred_region
      // Predicated region
      $region21: #{residual_conv_block.3} parent=19 // pred_check
        %p158 = pneg %p31
      $region22: #{residual_conv_block.3} parent=19 // pred_check_branch
        %160 = sbr.rel (%p158) target = $region24
      $region23: #{residual_conv_block.3} parent=19 // pred_region
        %p161 = scmp.lt.s32.totalorder %s11, 1
        %s162 = scalar_select %p161, %s11, 1
        %s163 = smul.addr %s162, 32
        %s164 = smul.addr %s163, 8
        %s165 = scalar_lea.vmem %s0, %s164
      $region24: #{residual_conv_block.3} parent=19 // pred_fallthru
        _
    $region20: #{residual_conv_block.3} parent=5 // pred_fallthru
      _
    %p166 = scmp.le.s32.totalorder 1, %s11
    %p167 = scmp.lt.s32.totalorder %s11, 3
    %p168 = pnand %p166, %p167
    %p169 = pneg %p168
    // Predicated region
    $region25: #{residual_conv_block.3} parent=5 // pred_check
      _
    $region26: #{residual_conv_block.3} parent=5 // pred_check_branch
      %171 = sbr.rel (%p168) target = $region28
    $region27: #{residual_conv_block.3} parent=5 // pred_region
      %s172 = ssub.s32 %s11, 1
      %p173 = scmp.lt.s32.totalorder %s16, 1
      %s174 = scalar_select %p173, %s16, 1
      %s175 = smul.addr %s174, 32
      %s176 = smul.addr %s175, 8
      %s177 = scalar_lea.vmem %s0, %s176
      %p178 = pneg %p37
      %p179 = pneg %p34
      %p180 = pneg %p58
      %p181 = pneg %p55
      %p182 = pneg %p84
      %p183 = pneg %p81
      %p184 = scmp.lt.s32.totalorder %s16, 1
      %s185 = scalar_select %p184, %s16, 1
      %s186 = smul.addr %s185, 32
      %s187 = smul.addr %s186, 8
      %s188 = scalar_lea.vmem %s2, %s187
      %p189 = pneg %p110
      %p190 = pneg %p107
      %p191 = scmp.lt.s32.totalorder %s16, 1
      %s192 = scalar_select %p191, %s16, 1
      %s193 = scalar_lea.vmem %s3, %s192
      %p194 = pneg %p136
      %p195 = pneg %p133
      %p196 = scmp.lt.s32.totalorder %s16, 1
      %s197 = scalar_select %p196, %s16, 1
      %s198 = scalar_lea.vmem %s4, %s197
      %p199 = scmp.lt.s32.totalorder %s16, 1
      %s200 = scalar_select %p199, %s16, 1
      %s201 = smul.addr %s200, 32
      %s202 = smul.addr %s201, 8
      %s203 = scalar_lea.vmem %s0, %s202
      %p204 = scmp.lt.s32.totalorder %s16, 1
      %s205 = scalar_select %p204, %s16, 1
      %s206 = smul.addr %s205, 32
      %s207 = smul.addr %s206, 8
      %s208 = scalar_lea.vmem %s2, %s207
      %p209 = scmp.lt.s32.totalorder %s16, 1
      %s210 = scalar_select %p209, %s16, 1
      %s211 = scalar_lea.vmem %s3, %s210
      %p212 = scmp.lt.s32.totalorder %s16, 1
      %s213 = scalar_select %p212, %s16, 1
      %s214 = scalar_lea.vmem %s4, %s213
      %vm215 = vcmask 31744
      %216 = vst.msk [vmem:[#allocation2] sm:$0xff] %vm215, 0.0
      %217 = vst.msk [vmem:[#allocation2 + $0x8] sm:$0xff] %vm215, 0.0
      %vm218 = vcmask 25600
      %219 = vst.msk [vmem:[#allocation2 + $0x10] sm:$0x3] %vm218, 0.0
      %s220 = scalar_lea.vmem [#allocation2], 408
      %221 = vst.msk [vmem:[%s220] sm:$0xff] %vm215, 0.0
      %222 = vst.msk [vmem:[%s220 + $0x8] sm:$0xff] %vm215, 0.0
      %223 = vst.msk [vmem:[%s220 + $0x10] sm:$0x3] %vm218, 0.0
      %vm224 = vcmask 24576
      %225 = vst.msk [vmem:[#allocation2] sm:$0x1] %vm224, 0.0
      %226 = vst.msk [vmem:[#allocation2 + $0x18] sm:$0x1] %vm224, 0.0
      %227 = vst.msk [vmem:[#allocation2 + $0x30] sm:$0x1] %vm224, 0.0
      %228 = vst.msk [vmem:[#allocation2 + $0x48] sm:$0x1] %vm224, 0.0
      %229 = vst.msk [vmem:[#allocation2 + $0x60] sm:$0x1] %vm224, 0.0
      %230 = vst.msk [vmem:[#allocation2 + $0x78] sm:$0x1] %vm224, 0.0
      %231 = vst.msk [vmem:[#allocation2 + $0x90] sm:$0x1] %vm224, 0.0
      %232 = vst.msk [vmem:[#allocation2 + $0xa8] sm:$0x1] %vm224, 0.0
      %233 = vst.msk [vmem:[#allocation2 + $0xc0] sm:$0x1] %vm224, 0.0
      %234 = vst.msk [vmem:[#allocation2 + $0xd8] sm:$0x1] %vm224, 0.0
      %235 = vst.msk [vmem:[#allocation2 + $0xf0] sm:$0x1] %vm224, 0.0
      %236 = vst.msk [vmem:[#allocation2 + $0x108] sm:$0x1] %vm224, 0.0
      %237 = vst.msk [vmem:[#allocation2 + $0x120] sm:$0x1] %vm224, 0.0
      %238 = vst.msk [vmem:[#allocation2 + $0x138] sm:$0x1] %vm224, 0.0
      %239 = vst.msk [vmem:[#allocation2 + $0x150] sm:$0x1] %vm224, 0.0
      %240 = vst.msk [vmem:[#allocation2 + $0x168] sm:$0x1] %vm224, 0.0
      %241 = vst.msk [vmem:[#allocation2 + $0x180] sm:$0x1] %vm224, 0.0
      %242 = vst.msk [vmem:[#allocation2 + $0x198] sm:$0x1] %vm224, 0.0
      %243 = vst.msk [vmem:[#allocation2 + $0x11] sm:$0x1] %vm224, 0.0
      %244 = vst.msk [vmem:[#allocation2 + $0x29] sm:$0x1] %vm224, 0.0
      %245 = vst.msk [vmem:[#allocation2 + $0x41] sm:$0x1] %vm224, 0.0
      %246 = vst.msk [vmem:[#allocation2 + $0x59] sm:$0x1] %vm224, 0.0
      %247 = vst.msk [vmem:[#allocation2 + $0x71] sm:$0x1] %vm224, 0.0
      %248 = vst.msk [vmem:[#allocation2 + $0x89] sm:$0x1] %vm224, 0.0
      %249 = vst.msk [vmem:[#allocation2 + $0xa1] sm:$0x1] %vm224, 0.0
      %250 = vst.msk [vmem:[#allocation2 + $0xb9] sm:$0x1] %vm224, 0.0
      %251 = vst.msk [vmem:[#allocation2 + $0xd1] sm:$0x1] %vm224, 0.0
      %252 = vst.msk [vmem:[#allocation2 + $0xe9] sm:$0x1] %vm224, 0.0
      %253 = vst.msk [vmem:[#allocation2 + $0x101] sm:$0x1] %vm224, 0.0
      %254 = vst.msk [vmem:[#allocation2 + $0x119] sm:$0x1] %vm224, 0.0
      %255 = vst.msk [vmem:[#allocation2 + $0x131] sm:$0x1] %vm224, 0.0
      %256 = vst.msk [vmem:[#allocation2 + $0x149] sm:$0x1] %vm224, 0.0
      %257 = vst.msk [vmem:[#allocation2 + $0x161] sm:$0x1] %vm224, 0.0
      %258 = vst.msk [vmem:[#allocation2 + $0x179] sm:$0x1] %vm224, 0.0
      %259 = vst.msk [vmem:[#allocation2 + $0x191] sm:$0x1] %vm224, 0.0
      %260 = vst.msk [vmem:[#allocation2 + $0x1a9] sm:$0x1] %vm224, 0.0
      %v261 = vld [vmem:[%s203] sm:$0xff]
      %v262 = vld [vmem:[%s203 + $0x8] sm:$0xff]
      %v263 = vld [vmem:[%s203 + $0x10] sm:$0xff]
      %v264 = vld [vmem:[%s203 + $0x18] sm:$0xff]
      %v265 = vld [vmem:[%s203 + $0x20] sm:$0xff]
      %v266 = vld [vmem:[%s203 + $0x28] sm:$0xff]
      %v267 = vld [vmem:[%s203 + $0x30] sm:$0xff]
      %v268 = vld [vmem:[%s203 + $0x38] sm:$0xff]
      %v269 = vld [vmem:[%s203 + $0x40] sm:$0xff]
      %v270 = vld [vmem:[%s203 + $0x48] sm:$0xff]
      %v271 = vld [vmem:[%s203 + $0x50] sm:$0xff]
      %v272 = vld [vmem:[%s203 + $0x58] sm:$0xff]
      %v273 = vld [vmem:[%s203 + $0x60] sm:$0xff]
      %v274 = vld [vmem:[%s203 + $0x68] sm:$0xff]
      %v275 = vld [vmem:[%s203 + $0x70] sm:$0xff]
      %v276 = vld [vmem:[%s203 + $0x78] sm:$0xff]
      %v277 = vld [vmem:[%s203 + $0x80] sm:$0xff]
      %v278 = vld [vmem:[%s203 + $0x88] sm:$0xff]
      %v279 = vld [vmem:[%s203 + $0x90] sm:$0xff]
      %v280 = vld [vmem:[%s203 + $0x98] sm:$0xff]
      %v281 = vld [vmem:[%s203 + $0xa0] sm:$0xff]
      %v282 = vld [vmem:[%s203 + $0xa8] sm:$0xff]
      %v283 = vld [vmem:[%s203 + $0xb0] sm:$0xff]
      %v284 = vld [vmem:[%s203 + $0xb8] sm:$0xff]
      %v285 = vld [vmem:[%s203 + $0xc0] sm:$0xff]
      %v286 = vld [vmem:[%s203 + $0xc8] sm:$0xff]
      %v287 = vld [vmem:[%s203 + $0xd0] sm:$0xff]
      %v288 = vld [vmem:[%s203 + $0xd8] sm:$0xff]
      %v289 = vld [vmem:[%s203 + $0xe0] sm:$0xff]
      %v290 = vld [vmem:[%s203 + $0xe8] sm:$0xff]
      %v291 = vld [vmem:[%s203 + $0xf0] sm:$0xff]
      %v292 = vld [vmem:[%s203 + $0xf8] sm:$0xff]
      %s293 = scalar_lea.vmem [#allocation2], 24
      %294 = vst.msk [vmem:[%s293 + $0x1] sm:$0xff] %vm215, %v261
      %295 = vst.msk [vmem:[%s293 + $0x9] sm:$0xff] %vm215, %v262
      %296 = vst.msk [vmem:[%s293 + $0x19] sm:$0xff] %vm215, %v263
      %297 = vst.msk [vmem:[%s293 + $0x21] sm:$0xff] %vm215, %v264
      %298 = vst.msk [vmem:[%s293 + $0x31] sm:$0xff] %vm215, %v265
      %299 = vst.msk [vmem:[%s293 + $0x39] sm:$0xff] %vm215, %v266
      %300 = vst.msk [vmem:[%s293 + $0x49] sm:$0xff] %vm215, %v267
      %301 = vst.msk [vmem:[%s293 + $0x51] sm:$0xff] %vm215, %v268
      %302 = vst.msk [vmem:[%s293 + $0x61] sm:$0xff] %vm215, %v269
      %303 = vst.msk [vmem:[%s293 + $0x69] sm:$0xff] %vm215, %v270
      %304 = vst.msk [vmem:[%s293 + $0x79] sm:$0xff] %vm215, %v271
      %305 = vst.msk [vmem:[%s293 + $0x81] sm:$0xff] %vm215, %v272
      %306 = vst.msk [vmem:[%s293 + $0x91] sm:$0xff] %vm215, %v273
      %307 = vst.msk [vmem:[%s293 + $0x99] sm:$0xff] %vm215, %v274
      %308 = vst.msk [vmem:[%s293 + $0xa9] sm:$0xff] %vm215, %v275
      %309 = vst.msk [vmem:[%s293 + $0xb1] sm:$0xff] %vm215, %v276
      %310 = vst.msk [vmem:[%s293 + $0xc1] sm:$0xff] %vm215, %v277
      %311 = vst.msk [vmem:[%s293 + $0xc9] sm:$0xff] %vm215, %v278
      %312 = vst.msk [vmem:[%s293 + $0xd9] sm:$0xff] %vm215, %v279
      %313 = vst.msk [vmem:[%s293 + $0xe1] sm:$0xff] %vm215, %v280
      %314 = vst.msk [vmem:[%s293 + $0xf1] sm:$0xff] %vm215, %v281
      %315 = vst.msk [vmem:[%s293 + $0xf9] sm:$0xff] %vm215, %v282
      %316 = vst.msk [vmem:[%s293 + $0x109] sm:$0xff] %vm215, %v283
      %317 = vst.msk [vmem:[%s293 + $0x111] sm:$0xff] %vm215, %v284
      %318 = vst.msk [vmem:[%s293 + $0x121] sm:$0xff] %vm215, %v285
      %319 = vst.msk [vmem:[%s293 + $0x129] sm:$0xff] %vm215, %v286
      %320 = vst.msk [vmem:[%s293 + $0x139] sm:$0xff] %vm215, %v287
      %321 = vst.msk [vmem:[%s293 + $0x141] sm:$0xff] %vm215, %v288
      %322 = vst.msk [vmem:[%s293 + $0x151] sm:$0xff] %vm215, %v289
      %323 = vst.msk [vmem:[%s293 + $0x159] sm:$0xff] %vm215, %v290
      %324 = vst.msk [vmem:[%s293 + $0x169] sm:$0xff] %vm215, %v291
      %325 = vst.msk [vmem:[%s293 + $0x171] sm:$0xff] %vm215, %v292
      %v326 = vld [vmem:[#allocation2] sm:$0xff]
      %v327 = vld [vmem:[#allocation2 + $0x8] sm:$0xff]
      %v328 = vld [vmem:[#allocation2 + $0x18] sm:$0xff]
      %v329 = vld [vmem:[#allocation2 + $0x20] sm:$0xff]
      %v330 = vld [vmem:[#allocation2 + $0x30] sm:$0xff]
      %v331 = vld [vmem:[#allocation2 + $0x38] sm:$0xff]
      %v332 = vld [vmem:[#allocation2 + $0x48] sm:$0xff]
      %v333 = vld [vmem:[#allocation2 + $0x50] sm:$0xff]
      %v334 = vld [vmem:[#allocation2 + $0x60] sm:$0xff]
      %v335 = vld [vmem:[#allocation2 + $0x68] sm:$0xff]
      %v336 = vld [vmem:[#allocation2 + $0x78] sm:$0xff]
      %v337 = vld [vmem:[#allocation2 + $0x80] sm:$0xff]
      %v338 = vld [vmem:[#allocation2 + $0x90] sm:$0xff]
      %v339 = vld [vmem:[#allocation2 + $0x98] sm:$0xff]
      %v340 = vld [vmem:[#allocation2 + $0xa8] sm:$0xff]
      %v341 = vld [vmem:[#allocation2 + $0xb0] sm:$0xff]
      %v342 = vld [vmem:[#allocation2 + $0xc0] sm:$0xff]
      %v343 = vld [vmem:[#allocation2 + $0xc8] sm:$0xff]
      %v344 = vld [vmem:[#allocation2 + $0xd8] sm:$0xff]
      %v345 = vld [vmem:[#allocation2 + $0xe0] sm:$0xff]
      %v346 = vld [vmem:[#allocation2 + $0xf0] sm:$0xff]
      %v347 = vld [vmem:[#allocation2 + $0xf8] sm:$0xff]
      %v348 = vld [vmem:[#allocation2 + $0x108] sm:$0xff]
      %v349 = vld [vmem:[#allocation2 + $0x110] sm:$0xff]
      %v350 = vld [vmem:[#allocation2 + $0x120] sm:$0xff]
      %v351 = vld [vmem:[#allocation2 + $0x128] sm:$0xff]
      %v352 = vld [vmem:[#allocation2 + $0x138] sm:$0xff]
      %v353 = vld [vmem:[#allocation2 + $0x140] sm:$0xff]
      %v354 = vld [vmem:[#allocation2 + $0x150] sm:$0xff]
      %v355 = vld [vmem:[#allocation2 + $0x158] sm:$0xff]
      %v356 = vld [vmem:[#allocation2 + $0x168] sm:$0xff]
      %v357 = vld [vmem:[#allocation2 + $0x170] sm:$0xff]
      %358 = vst.msk [vmem:[#allocation3] sm:$0xff] %vm215, %v326
      %359 = vst.msk [vmem:[#allocation3 + $0x8] sm:$0xff] %vm215, %v327
      %360 = vst.msk [vmem:[#allocation3 + $0x10] sm:$0xff] %vm215, %v328
      %361 = vst.msk [vmem:[#allocation3 + $0x18] sm:$0xff] %vm215, %v329
      %362 = vst.msk [vmem:[#allocation3 + $0x20] sm:$0xff] %vm215, %v330
      %363 = vst.msk [vmem:[#allocation3 + $0x28] sm:$0xff] %vm215, %v331
      %364 = vst.msk [vmem:[#allocation3 + $0x30] sm:$0xff] %vm215, %v332
      %365 = vst.msk [vmem:[#allocation3 + $0x38] sm:$0xff] %vm215, %v333
      %366 = vst.msk [vmem:[#allocation3 + $0x40] sm:$0xff] %vm215, %v334
      %367 = vst.msk [vmem:[#allocation3 + $0x48] sm:$0xff] %vm215, %v335
      %368 = vst.msk [vmem:[#allocation3 + $0x50] sm:$0xff] %vm215, %v336
      %369 = vst.msk [vmem:[#allocation3 + $0x58] sm:$0xff] %vm215, %v337
      %370 = vst.msk [vmem:[#allocation3 + $0x60] sm:$0xff] %vm215, %v338
      %371 = vst.msk [vmem:[#allocation3 + $0x68] sm:$0xff] %vm215, %v339
      %372 = vst.msk [vmem:[#allocation3 + $0x70] sm:$0xff] %vm215, %v340
      %373 = vst.msk [vmem:[#allocation3 + $0x78] sm:$0xff] %vm215, %v341
      %374 = vst.msk [vmem:[#allocation3 + $0x80] sm:$0xff] %vm215, %v342
      %375 = vst.msk [vmem:[#allocation3 + $0x88] sm:$0xff] %vm215, %v343
      %376 = vst.msk [vmem:[#allocation3 + $0x90] sm:$0xff] %vm215, %v344
      %377 = vst.msk [vmem:[#allocation3 + $0x98] sm:$0xff] %vm215, %v345
      %378 = vst.msk [vmem:[#allocation3 + $0xa0] sm:$0xff] %vm215, %v346
      %379 = vst.msk [vmem:[#allocation3 + $0xa8] sm:$0xff] %vm215, %v347
      %380 = vst.msk [vmem:[#allocation3 + $0xb0] sm:$0xff] %vm215, %v348
      %381 = vst.msk [vmem:[#allocation3 + $0xb8] sm:$0xff] %vm215, %v349
      %382 = vst.msk [vmem:[#allocation3 + $0xc0] sm:$0xff] %vm215, %v350
      %383 = vst.msk [vmem:[#allocation3 + $0xc8] sm:$0xff] %vm215, %v351
      %384 = vst.msk [vmem:[#allocation3 + $0xd0] sm:$0xff] %vm215, %v352
      %385 = vst.msk [vmem:[#allocation3 + $0xd8] sm:$0xff] %vm215, %v353
      %386 = vst.msk [vmem:[#allocation3 + $0xe0] sm:$0xff] %vm215, %v354
      %387 = vst.msk [vmem:[#allocation3 + $0xe8] sm:$0xff] %vm215, %v355
      %388 = vst.msk [vmem:[#allocation3 + $0xf0] sm:$0xff] %vm215, %v356
      %389 = vst.msk [vmem:[#allocation3 + $0xf8] sm:$0xff] %vm215, %v357
      %v390 = vld [vmem:[#allocation2 + $0x1] sm:$0xff]
      %v391 = vld [vmem:[#allocation2 + $0x9] sm:$0xff]
      %v392 = vld [vmem:[#allocation2 + $0x19] sm:$0xff]
      %v393 = vld [vmem:[#allocation2 + $0x21] sm:$0xff]
      %v394 = vld [vmem:[#allocation2 + $0x31] sm:$0xff]
      %v395 = vld [vmem:[#allocation2 + $0x39] sm:$0xff]
      %v396 = vld [vmem:[#allocation2 + $0x49] sm:$0xff]
      %v397 = vld [vmem:[#allocation2 + $0x51] sm:$0xff]
      %v398 = vld [vmem:[#allocation2 + $0x61] sm:$0xff]
      %v399 = vld [vmem:[#allocation2 + $0x69] sm:$0xff]
      %v400 = vld [vmem:[#allocation2 + $0x79] sm:$0xff]
      %v401 = vld [vmem:[#allocation2 + $0x81] sm:$0xff]
      %v402 = vld [vmem:[#allocation2 + $0x91] sm:$0xff]
      %v403 = vld [vmem:[#allocation2 + $0x99] sm:$0xff]
      %v404 = vld [vmem:[#allocation2 + $0xa9] sm:$0xff]
      %v405 = vld [vmem:[#allocation2 + $0xb1] sm:$0xff]
      %v406 = vld [vmem:[#allocation2 + $0xc1] sm:$0xff]
      %v407 = vld [vmem:[#allocation2 + $0xc9] sm:$0xff]
      %v408 = vld [vmem:[#allocation2 + $0xd9] sm:$0xff]
      %v409 = vld [vmem:[#allocation2 + $0xe1] sm:$0xff]
      %v410 = vld [vmem:[#allocation2 + $0xf1] sm:$0xff]
      %v411 = vld [vmem:[#allocation2 + $0xf9] sm:$0xff]
      %v412 = vld [vmem:[#allocation2 + $0x109] sm:$0xff]
      %v413 = vld [vmem:[#allocation2 + $0x111] sm:$0xff]
      %v414 = vld [vmem:[#allocation2 + $0x121] sm:$0xff]
      %v415 = vld [vmem:[#allocation2 + $0x129] sm:$0xff]
      %v416 = vld [vmem:[#allocation2 + $0x139] sm:$0xff]
      %v417 = vld [vmem:[#allocation2 + $0x141] sm:$0xff]
      %v418 = vld [vmem:[#allocation2 + $0x151] sm:$0xff]
      %v419 = vld [vmem:[#allocation2 + $0x159] sm:$0xff]
      %v420 = vld [vmem:[#allocation2 + $0x169] sm:$0xff]
      %v421 = vld [vmem:[#allocation2 + $0x171] sm:$0xff]
      %454 = vrot.lane.b32.xlu0 %v390, 4
      %v455 = vpop.permute.xlu0 %454
      %456 = vrot.lane.b32.xlu0 %v391, 4
      %v457 = vpop.permute.xlu0 %456
      %458 = vrot.lane.b32.xlu0 %v392, 4
      %v459 = vpop.permute.xlu0 %458
      %460 = vrot.lane.b32.xlu0 %v393, 4
      %v461 = vpop.permute.xlu0 %460
      %462 = vrot.lane.b32.xlu0 %v394, 4
      %v463 = vpop.permute.xlu0 %462
      %464 = vrot.lane.b32.xlu0 %v395, 4
      %v465 = vpop.permute.xlu0 %464
      %466 = vrot.lane.b32.xlu0 %v396, 4
      %v467 = vpop.permute.xlu0 %466
      %468 = vrot.lane.b32.xlu0 %v397, 4
      %v469 = vpop.permute.xlu0 %468
      %470 = vrot.lane.b32.xlu0 %v398, 4
      %v471 = vpop.permute.xlu0 %470
      %472 = vrot.lane.b32.xlu0 %v399, 4
      %v473 = vpop.permute.xlu0 %472
      %474 = vrot.lane.b32.xlu0 %v400, 4
      %v475 = vpop.permute.xlu0 %474
      %476 = vrot.lane.b32.xlu0 %v401, 4
      %v477 = vpop.permute.xlu0 %476
      %478 = vrot.lane.b32.xlu0 %v402, 4
      %v479 = vpop.permute.xlu0 %478
      %480 = vrot.lane.b32.xlu0 %v403, 4
      %v481 = vpop.permute.xlu0 %480
      %482 = vrot.lane.b32.xlu0 %v404, 4
      %v483 = vpop.permute.xlu0 %482
      %484 = vrot.lane.b32.xlu0 %v405, 4
      %v485 = vpop.permute.xlu0 %484
      %486 = vrot.lane.b32.xlu0 %v406, 4
      %v487 = vpop.permute.xlu0 %486
      %488 = vrot.lane.b32.xlu0 %v407, 4
      %v489 = vpop.permute.xlu0 %488
      %490 = vrot.lane.b32.xlu0 %v408, 4
      %v491 = vpop.permute.xlu0 %490
      %492 = vrot.lane.b32.xlu0 %v409, 4
      %v493 = vpop.permute.xlu0 %492
      %494 = vrot.lane.b32.xlu0 %v410, 4
      %v495 = vpop.permute.xlu0 %494
      %496 = vrot.lane.b32.xlu0 %v411, 4
      %v497 = vpop.permute.xlu0 %496
      %498 = vrot.lane.b32.xlu0 %v412, 4
      %v499 = vpop.permute.xlu0 %498
      %500 = vrot.lane.b32.xlu0 %v413, 4
      %v501 = vpop.permute.xlu0 %500
      %502 = vrot.lane.b32.xlu0 %v414, 4
      %v503 = vpop.permute.xlu0 %502
      %504 = vrot.lane.b32.xlu0 %v415, 4
      %v505 = vpop.permute.xlu0 %504
      %506 = vrot.lane.b32.xlu0 %v416, 4
      %v507 = vpop.permute.xlu0 %506
      %508 = vrot.lane.b32.xlu0 %v417, 4
      %v509 = vpop.permute.xlu0 %508
      %510 = vrot.lane.b32.xlu0 %v418, 4
      %v511 = vpop.permute.xlu0 %510
      %512 = vrot.lane.b32.xlu0 %v419, 4
      %v513 = vpop.permute.xlu0 %512
      %514 = vrot.lane.b32.xlu0 %v420, 4
      %v515 = vpop.permute.xlu0 %514
      %516 = vrot.lane.b32.xlu0 %v421, 4
      %v517 = vpop.permute.xlu0 %516
      %vm550 = vcmask 64544
      %551 = vst.msk [vmem:[#allocation3] sm:$0xff] %vm550, %v455
      %552 = vst.msk [vmem:[#allocation3 + $0x8] sm:$0xff] %vm550, %v457
      %553 = vst.msk [vmem:[#allocation3 + $0x10] sm:$0xff] %vm550, %v459
      %554 = vst.msk [vmem:[#allocation3 + $0x18] sm:$0xff] %vm550, %v461
      %555 = vst.msk [vmem:[#allocation3 + $0x20] sm:$0xff] %vm550, %v463
      %556 = vst.msk [vmem:[#allocation3 + $0x28] sm:$0xff] %vm550, %v465
      %557 = vst.msk [vmem:[#allocation3 + $0x30] sm:$0xff] %vm550, %v467
      %558 = vst.msk [vmem:[#allocation3 + $0x38] sm:$0xff] %vm550, %v469
      %559 = vst.msk [vmem:[#allocation3 + $0x40] sm:$0xff] %vm550, %v471
      %560 = vst.msk [vmem:[#allocation3 + $0x48] sm:$0xff] %vm550, %v473
      %561 = vst.msk [vmem:[#allocation3 + $0x50] sm:$0xff] %vm550, %v475
      %562 = vst.msk [vmem:[#allocation3 + $0x58] sm:$0xff] %vm550, %v477
      %563 = vst.msk [vmem:[#allocation3 + $0x60] sm:$0xff] %vm550, %v479
      %564 = vst.msk [vmem:[#allocation3 + $0x68] sm:$0xff] %vm550, %v481
      %565 = vst.msk [vmem:[#allocation3 + $0x70] sm:$0xff] %vm550, %v483
      %566 = vst.msk [vmem:[#allocation3 + $0x78] sm:$0xff] %vm550, %v485
      %567 = vst.msk [vmem:[#allocation3 + $0x80] sm:$0xff] %vm550, %v487
      %568 = vst.msk [vmem:[#allocation3 + $0x88] sm:$0xff] %vm550, %v489
      %569 = vst.msk [vmem:[#allocation3 + $0x90] sm:$0xff] %vm550, %v491
      %570 = vst.msk [vmem:[#allocation3 + $0x98] sm:$0xff] %vm550, %v493
      %571 = vst.msk [vmem:[#allocation3 + $0xa0] sm:$0xff] %vm550, %v495
      %572 = vst.msk [vmem:[#allocation3 + $0xa8] sm:$0xff] %vm550, %v497
      %573 = vst.msk [vmem:[#allocation3 + $0xb0] sm:$0xff] %vm550, %v499
      %574 = vst.msk [vmem:[#allocation3 + $0xb8] sm:$0xff] %vm550, %v501
      %575 = vst.msk [vmem:[#allocation3 + $0xc0] sm:$0xff] %vm550, %v503
      %576 = vst.msk [vmem:[#allocation3 + $0xc8] sm:$0xff] %vm550, %v505
      %577 = vst.msk [vmem:[#allocation3 + $0xd0] sm:$0xff] %vm550, %v507
      %578 = vst.msk [vmem:[#allocation3 + $0xd8] sm:$0xff] %vm550, %v509
      %579 = vst.msk [vmem:[#allocation3 + $0xe0] sm:$0xff] %vm550, %v511
      %580 = vst.msk [vmem:[#allocation3 + $0xe8] sm:$0xff] %vm550, %v513
      %581 = vst.msk [vmem:[#allocation3 + $0xf0] sm:$0xff] %vm550, %v515
      %582 = vst.msk [vmem:[#allocation3 + $0xf8] sm:$0xff] %vm550, %v517
      %v583 = vld [vmem:[#allocation2 + $0x2] sm:$0xff]
      %v584 = vld [vmem:[#allocation2 + $0xa] sm:$0xff]
      %v585 = vld [vmem:[#allocation2 + $0x1a] sm:$0xff]
      %v586 = vld [vmem:[#allocation2 + $0x22] sm:$0xff]
      %v587 = vld [vmem:[#allocation2 + $0x32] sm:$0xff]
      %v588 = vld [vmem:[#allocation2 + $0x3a] sm:$0xff]
      %v589 = vld [vmem:[#allocation2 + $0x4a] sm:$0xff]
      %v590 = vld [vmem:[#allocation2 + $0x52] sm:$0xff]
      %v591 = vld [vmem:[#allocation2 + $0x62] sm:$0xff]
      %v592 = vld [vmem:[#allocation2 + $0x6a] sm:$0xff]
      %v593 = vld [vmem:[#allocation2 + $0x7a] sm:$0xff]
      %v594 = vld [vmem:[#allocation2 + $0x82] sm:$0xff]
      %v595 = vld [vmem:[#allocation2 + $0x92] sm:$0xff]
      %v596 = vld [vmem:[#allocation2 + $0x9a] sm:$0xff]
      %v597 = vld [vmem:[#allocation2 + $0xaa] sm:$0xff]
      %v598 = vld [vmem:[#allocation2 + $0xb2] sm:$0xff]
      %v599 = vld [vmem:[#allocation2 + $0xc2] sm:$0xff]
      %v600 = vld [vmem:[#allocation2 + $0xca] sm:$0xff]
      %v601 = vld [vmem:[#allocation2 + $0xda] sm:$0xff]
      %v602 = vld [vmem:[#allocation2 + $0xe2] sm:$0xff]
      %v603 = vld [vmem:[#allocation2 + $0xf2] sm:$0xff]
      %v604 = vld [vmem:[#allocation2 + $0xfa] sm:$0xff]
      %v605 = vld [vmem:[#allocation2 + $0x10a] sm:$0xff]
      %v606 = vld [vmem:[#allocation2 + $0x112] sm:$0xff]
      %v607 = vld [vmem:[#allocation2 + $0x122] sm:$0xff]
      %v608 = vld [vmem:[#allocation2 + $0x12a] sm:$0xff]
      %v609 = vld [vmem:[#allocation2 + $0x13a] sm:$0xff]
      %v610 = vld [vmem:[#allocation2 + $0x142] sm:$0xff]
      %v611 = vld [vmem:[#allocation2 + $0x152] sm:$0xff]
      %v612 = vld [vmem:[#allocation2 + $0x15a] sm:$0xff]
      %v613 = vld [vmem:[#allocation2 + $0x16a] sm:$0xff]
      %v614 = vld [vmem:[#allocation2 + $0x172] sm:$0xff]
      %647 = vrot.lane.b32.xlu0 %v583, 8
      %v648 = vpop.permute.xlu0 %647
      %649 = vrot.lane.b32.xlu0 %v584, 8
      %v650 = vpop.permute.xlu0 %649
      %651 = vrot.lane.b32.xlu0 %v585, 8
      %v652 = vpop.permute.xlu0 %651
      %653 = vrot.lane.b32.xlu0 %v586, 8
      %v654 = vpop.permute.xlu0 %653
      %655 = vrot.lane.b32.xlu0 %v587, 8
      %v656 = vpop.permute.xlu0 %655
      %657 = vrot.lane.b32.xlu0 %v588, 8
      %v658 = vpop.permute.xlu0 %657
      %659 = vrot.lane.b32.xlu0 %v589, 8
      %v660 = vpop.permute.xlu0 %659
      %661 = vrot.lane.b32.xlu0 %v590, 8
      %v662 = vpop.permute.xlu0 %661
      %663 = vrot.lane.b32.xlu0 %v591, 8
      %v664 = vpop.permute.xlu0 %663
      %665 = vrot.lane.b32.xlu0 %v592, 8
      %v666 = vpop.permute.xlu0 %665
      %667 = vrot.lane.b32.xlu0 %v593, 8
      %v668 = vpop.permute.xlu0 %667
      %669 = vrot.lane.b32.xlu0 %v594, 8
      %v670 = vpop.permute.xlu0 %669
      %671 = vrot.lane.b32.xlu0 %v595, 8
      %v672 = vpop.permute.xlu0 %671
      %673 = vrot.lane.b32.xlu0 %v596, 8
      %v674 = vpop.permute.xlu0 %673
      %675 = vrot.lane.b32.xlu0 %v597, 8
      %v676 = vpop.permute.xlu0 %675
      %677 = vrot.lane.b32.xlu0 %v598, 8
      %v678 = vpop.permute.xlu0 %677
      %679 = vrot.lane.b32.xlu0 %v599, 8
      %v680 = vpop.permute.xlu0 %679
      %681 = vrot.lane.b32.xlu0 %v600, 8
      %v682 = vpop.permute.xlu0 %681
      %683 = vrot.lane.b32.xlu0 %v601, 8
      %v684 = vpop.permute.xlu0 %683
      %685 = vrot.lane.b32.xlu0 %v602, 8
      %v686 = vpop.permute.xlu0 %685
      %687 = vrot.lane.b32.xlu0 %v603, 8
      %v688 = vpop.permute.xlu0 %687
      %689 = vrot.lane.b32.xlu0 %v604, 8
      %v690 = vpop.permute.xlu0 %689
      %691 = vrot.lane.b32.xlu0 %v605, 8
      %v692 = vpop.permute.xlu0 %691
      %693 = vrot.lane.b32.xlu0 %v606, 8
      %v694 = vpop.permute.xlu0 %693
      %695 = vrot.lane.b32.xlu0 %v607, 8
      %v696 = vpop.permute.xlu0 %695
      %697 = vrot.lane.b32.xlu0 %v608, 8
      %v698 = vpop.permute.xlu0 %697
      %699 = vrot.lane.b32.xlu0 %v609, 8
      %v700 = vpop.permute.xlu0 %699
      %701 = vrot.lane.b32.xlu0 %v610, 8
      %v702 = vpop.permute.xlu0 %701
      %703 = vrot.lane.b32.xlu0 %v611, 8
      %v704 = vpop.permute.xlu0 %703
      %705 = vrot.lane.b32.xlu0 %v612, 8
      %v706 = vpop.permute.xlu0 %705
      %707 = vrot.lane.b32.xlu0 %v613, 8
      %v708 = vpop.permute.xlu0 %707
      %709 = vrot.lane.b32.xlu0 %v614, 8
      %v710 = vpop.permute.xlu0 %709
      %vm743 = vcmask 97344
      %744 = vst.msk [vmem:[#allocation3] sm:$0xff] %vm743, %v648
      %745 = vst.msk [vmem:[#allocation3 + $0x8] sm:$0xff] %vm743, %v650
      %746 = vst.msk [vmem:[#allocation3 + $0x10] sm:$0xff] %vm743, %v652
      %747 = vst.msk [vmem:[#allocation3 + $0x18] sm:$0xff] %vm743, %v654
      %748 = vst.msk [vmem:[#allocation3 + $0x20] sm:$0xff] %vm743, %v656
      %749 = vst.msk [vmem:[#allocation3 + $0x28] sm:$0xff] %vm743, %v658
      %750 = vst.msk [vmem:[#allocation3 + $0x30] sm:$0xff] %vm743, %v660
      %751 = vst.msk [vmem:[#allocation3 + $0x38] sm:$0xff] %vm743, %v662
      %752 = vst.msk [vmem:[#allocation3 + $0x40] sm:$0xff] %vm743, %v664
      %753 = vst.msk [vmem:[#allocation3 + $0x48] sm:$0xff] %vm743, %v666
      %754 = vst.msk [vmem:[#allocation3 + $0x50] sm:$0xff] %vm743, %v668
      %755 = vst.msk [vmem:[#allocation3 + $0x58] sm:$0xff] %vm743, %v670
      %756 = vst.msk [vmem:[#allocation3 + $0x60] sm:$0xff] %vm743, %v672
      %757 = vst.msk [vmem:[#allocation3 + $0x68] sm:$0xff] %vm743, %v674
      %758 = vst.msk [vmem:[#allocation3 + $0x70] sm:$0xff] %vm743, %v676
      %759 = vst.msk [vmem:[#allocation3 + $0x78] sm:$0xff] %vm743, %v678
      %760 = vst.msk [vmem:[#allocation3 + $0x80] sm:$0xff] %vm743, %v680
      %761 = vst.msk [vmem:[#allocation3 + $0x88] sm:$0xff] %vm743, %v682
      %762 = vst.msk [vmem:[#allocation3 + $0x90] sm:$0xff] %vm743, %v684
      %763 = vst.msk [vmem:[#allocation3 + $0x98] sm:$0xff] %vm743, %v686
      %764 = vst.msk [vmem:[#allocation3 + $0xa0] sm:$0xff] %vm743, %v688
      %765 = vst.msk [vmem:[#allocation3 + $0xa8] sm:$0xff] %vm743, %v690
      %766 = vst.msk [vmem:[#allocation3 + $0xb0] sm:$0xff] %vm743, %v692
      %767 = vst.msk [vmem:[#allocation3 + $0xb8] sm:$0xff] %vm743, %v694
      %768 = vst.msk [vmem:[#allocation3 + $0xc0] sm:$0xff] %vm743, %v696
      %769 = vst.msk [vmem:[#allocation3 + $0xc8] sm:$0xff] %vm743, %v698
      %770 = vst.msk [vmem:[#allocation3 + $0xd0] sm:$0xff] %vm743, %v700
      %771 = vst.msk [vmem:[#allocation3 + $0xd8] sm:$0xff] %vm743, %v702
      %772 = vst.msk [vmem:[#allocation3 + $0xe0] sm:$0xff] %vm743, %v704
      %773 = vst.msk [vmem:[#allocation3 + $0xe8] sm:$0xff] %vm743, %v706
      %774 = vst.msk [vmem:[#allocation3 + $0xf0] sm:$0xff] %vm743, %v708
      %775 = vst.msk [vmem:[#allocation3 + $0xf8] sm:$0xff] %vm743, %v710
      %v776 = vld [vmem:[%s293] sm:$0xff]
      %v777 = vld [vmem:[%s293 + $0x8] sm:$0xff]
      %v778 = vld [vmem:[%s293 + $0x18] sm:$0xff]
      %v779 = vld [vmem:[%s293 + $0x20] sm:$0xff]
      %v780 = vld [vmem:[%s293 + $0x30] sm:$0xff]
      %v781 = vld [vmem:[%s293 + $0x38] sm:$0xff]
      %v782 = vld [vmem:[%s293 + $0x48] sm:$0xff]
      %v783 = vld [vmem:[%s293 + $0x50] sm:$0xff]
      %v784 = vld [vmem:[%s293 + $0x60] sm:$0xff]
      %v785 = vld [vmem:[%s293 + $0x68] sm:$0xff]
      %v786 = vld [vmem:[%s293 + $0x78] sm:$0xff]
      %v787 = vld [vmem:[%s293 + $0x80] sm:$0xff]
      %v788 = vld [vmem:[%s293 + $0x90] sm:$0xff]
      %v789 = vld [vmem:[%s293 + $0x98] sm:$0xff]
      %v790 = vld [vmem:[%s293 + $0xa8] sm:$0xff]
      %v791 = vld [vmem:[%s293 + $0xb0] sm:$0xff]
      %v792 = vld [vmem:[%s293 + $0xc0] sm:$0xff]
      %v793 = vld [vmem:[%s293 + $0xc8] sm:$0xff]
      %v794 = vld [vmem:[%s293 + $0xd8] sm:$0xff]
      %v795 = vld [vmem:[%s293 + $0xe0] sm:$0xff]
      %v796 = vld [vmem:[%s293 + $0xf0] sm:$0xff]
      %v797 = vld [vmem:[%s293 + $0xf8] sm:$0xff]
      %v798 = vld [vmem:[%s293 + $0x108] sm:$0xff]
      %v799 = vld [vmem:[%s293 + $0x110] sm:$0xff]
      %v800 = vld [vmem:[%s293 + $0x120] sm:$0xff]
      %v801 = vld [vmem:[%s293 + $0x128] sm:$0xff]
      %v802 = vld [vmem:[%s293 + $0x138] sm:$0xff]
      %v803 = vld [vmem:[%s293 + $0x140] sm:$0xff]
      %v804 = vld [vmem:[%s293 + $0x150] sm:$0xff]
      %v805 = vld [vmem:[%s293 + $0x158] sm:$0xff]
      %v806 = vld [vmem:[%s293 + $0x168] sm:$0xff]
      %v807 = vld [vmem:[%s293 + $0x170] sm:$0xff]
      %840 = vrot.lane.b32.xlu0 %v776, 12
      %v841 = vpop.permute.xlu0 %840
      %842 = vrot.lane.b32.xlu0 %v777, 12
      %v843 = vpop.permute.xlu0 %842
      %844 = vrot.lane.b32.xlu0 %v778, 12
      %v845 = vpop.permute.xlu0 %844
      %846 = vrot.lane.b32.xlu0 %v779, 12
      %v847 = vpop.permute.xlu0 %846
      %848 = vrot.lane.b32.xlu0 %v780, 12
      %v849 = vpop.permute.xlu0 %848
      %850 = vrot.lane.b32.xlu0 %v781, 12
      %v851 = vpop.permute.xlu0 %850
      %852 = vrot.lane.b32.xlu0 %v782, 12
      %v853 = vpop.permute.xlu0 %852
      %854 = vrot.lane.b32.xlu0 %v783, 12
      %v855 = vpop.permute.xlu0 %854
      %856 = vrot.lane.b32.xlu0 %v784, 12
      %v857 = vpop.permute.xlu0 %856
      %858 = vrot.lane.b32.xlu0 %v785, 12
      %v859 = vpop.permute.xlu0 %858
      %860 = vrot.lane.b32.xlu0 %v786, 12
      %v861 = vpop.permute.xlu0 %860
      %862 = vrot.lane.b32.xlu0 %v787, 12
      %v863 = vpop.permute.xlu0 %862
      %864 = vrot.lane.b32.xlu0 %v788, 12
      %v865 = vpop.permute.xlu0 %864
      %866 = vrot.lane.b32.xlu0 %v789, 12
      %v867 = vpop.permute.xlu0 %866
      %868 = vrot.lane.b32.xlu0 %v790, 12
      %v869 = vpop.permute.xlu0 %868
      %870 = vrot.lane.b32.xlu0 %v791, 12
      %v871 = vpop.permute.xlu0 %870
      %872 = vrot.lane.b32.xlu0 %v792, 12
      %v873 = vpop.permute.xlu0 %872
      %874 = vrot.lane.b32.xlu0 %v793, 12
      %v875 = vpop.permute.xlu0 %874
      %876 = vrot.lane.b32.xlu0 %v794, 12
      %v877 = vpop.permute.xlu0 %876
      %878 = vrot.lane.b32.xlu0 %v795, 12
      %v879 = vpop.permute.xlu0 %878
      %880 = vrot.lane.b32.xlu0 %v796, 12
      %v881 = vpop.permute.xlu0 %880
      %882 = vrot.lane.b32.xlu0 %v797, 12
      %v883 = vpop.permute.xlu0 %882
      %884 = vrot.lane.b32.xlu0 %v798, 12
      %v885 = vpop.permute.xlu0 %884
      %886 = vrot.lane.b32.xlu0 %v799, 12
      %v887 = vpop.permute.xlu0 %886
      %888 = vrot.lane.b32.xlu0 %v800, 12
      %v889 = vpop.permute.xlu0 %888
      %890 = vrot.lane.b32.xlu0 %v801, 12
      %v891 = vpop.permute.xlu0 %890
      %892 = vrot.lane.b32.xlu0 %v802, 12
      %v893 = vpop.permute.xlu0 %892
      %894 = vrot.lane.b32.xlu0 %v803, 12
      %v895 = vpop.permute.xlu0 %894
      %896 = vrot.lane.b32.xlu0 %v804, 12
      %v897 = vpop.permute.xlu0 %896
      %898 = vrot.lane.b32.xlu0 %v805, 12
      %v899 = vpop.permute.xlu0 %898
      %900 = vrot.lane.b32.xlu0 %v806, 12
      %v901 = vpop.permute.xlu0 %900
      %902 = vrot.lane.b32.xlu0 %v807, 12
      %v903 = vpop.permute.xlu0 %902
      %vm936 = vcmask 130144
      %937 = vst.msk [vmem:[#allocation3] sm:$0xff] %vm936, %v841
      %938 = vst.msk [vmem:[#allocation3 + $0x8] sm:$0xff] %vm936, %v843
      %939 = vst.msk [vmem:[#allocation3 + $0x10] sm:$0xff] %vm936, %v845
      %940 = vst.msk [vmem:[#allocation3 + $0x18] sm:$0xff] %vm936, %v847
      %941 = vst.msk [vmem:[#allocation3 + $0x20] sm:$0xff] %vm936, %v849
      %942 = vst.msk [vmem:[#allocation3 + $0x28] sm:$0xff] %vm936, %v851
      %943 = vst.msk [vmem:[#allocation3 + $0x30] sm:$0xff] %vm936, %v853
      %944 = vst.msk [vmem:[#allocation3 + $0x38] sm:$0xff] %vm936, %v855
      %945 = vst.msk [vmem:[#allocation3 + $0x40] sm:$0xff] %vm936, %v857
      %946 = vst.msk [vmem:[#allocation3 + $0x48] sm:$0xff] %vm936, %v859
      %947 = vst.msk [vmem:[#allocation3 + $0x50] sm:$0xff] %vm936, %v861
      %948 = vst.msk [vmem:[#allocation3 + $0x58] sm:$0xff] %vm936, %v863
      %949 = vst.msk [vmem:[#allocation3 + $0x60] sm:$0xff] %vm936, %v865
      %950 = vst.msk [vmem:[#allocation3 + $0x68] sm:$0xff] %vm936, %v867
      %951 = vst.msk [vmem:[#allocation3 + $0x70] sm:$0xff] %vm936, %v869
      %952 = vst.msk [vmem:[#allocation3 + $0x78] sm:$0xff] %vm936, %v871
      %953 = vst.msk [vmem:[#allocation3 + $0x80] sm:$0xff] %vm936, %v873
      %954 = vst.msk [vmem:[#allocation3 + $0x88] sm:$0xff] %vm936, %v875
      %955 = vst.msk [vmem:[#allocation3 + $0x90] sm:$0xff] %vm936, %v877
      %956 = vst.msk [vmem:[#allocation3 + $0x98] sm:$0xff] %vm936, %v879
      %957 = vst.msk [vmem:[#allocation3 + $0xa0] sm:$0xff] %vm936, %v881
      %958 = vst.msk [vmem:[#allocation3 + $0xa8] sm:$0xff] %vm936, %v883
      %959 = vst.msk [vmem:[#allocation3 + $0xb0] sm:$0xff] %vm936, %v885
      %960 = vst.msk [vmem:[#allocation3 + $0xb8] sm:$0xff] %vm936, %v887
      %961 = vst.msk [vmem:[#allocation3 + $0xc0] sm:$0xff] %vm936, %v889
      %962 = vst.msk [vmem:[#allocation3 + $0xc8] sm:$0xff] %vm936, %v891
      %963 = vst.msk [vmem:[#allocation3 + $0xd0] sm:$0xff] %vm936, %v893
      %964 = vst.msk [vmem:[#allocation3 + $0xd8] sm:$0xff] %vm936, %v895
      %965 = vst.msk [vmem:[#allocation3 + $0xe0] sm:$0xff] %vm936, %v897
      %966 = vst.msk [vmem:[#allocation3 + $0xe8] sm:$0xff] %vm936, %v899
      %967 = vst.msk [vmem:[#allocation3 + $0xf0] sm:$0xff] %vm936, %v901
      %968 = vst.msk [vmem:[#allocation3 + $0xf8] sm:$0xff] %vm936, %v903
      %v969 = vld [vmem:[%s293 + $0x1] sm:$0xff]
      %v970 = vld [vmem:[%s293 + $0x9] sm:$0xff]
      %v971 = vld [vmem:[%s293 + $0x19] sm:$0xff]
      %v972 = vld [vmem:[%s293 + $0x21] sm:$0xff]
      %v973 = vld [vmem:[%s293 + $0x31] sm:$0xff]
      %v974 = vld [vmem:[%s293 + $0x39] sm:$0xff]
      %v975 = vld [vmem:[%s293 + $0x49] sm:$0xff]
      %v976 = vld [vmem:[%s293 + $0x51] sm:$0xff]
      %v977 = vld [vmem:[%s293 + $0x61] sm:$0xff]
      %v978 = vld [vmem:[%s293 + $0x69] sm:$0xff]
      %v979 = vld [vmem:[%s293 + $0x79] sm:$0xff]
      %v980 = vld [vmem:[%s293 + $0x81] sm:$0xff]
      %v981 = vld [vmem:[%s293 + $0x91] sm:$0xff]
      %v982 = vld [vmem:[%s293 + $0x99] sm:$0xff]
      %v983 = vld [vmem:[%s293 + $0xa9] sm:$0xff]
      %v984 = vld [vmem:[%s293 + $0xb1] sm:$0xff]
      %v985 = vld [vmem:[%s293 + $0xc1] sm:$0xff]
      %v986 = vld [vmem:[%s293 + $0xc9] sm:$0xff]
      %v987 = vld [vmem:[%s293 + $0xd9] sm:$0xff]
      %v988 = vld [vmem:[%s293 + $0xe1] sm:$0xff]
      %v989 = vld [vmem:[%s293 + $0xf1] sm:$0xff]
      %v990 = vld [vmem:[%s293 + $0xf9] sm:$0xff]
      %v991 = vld [vmem:[%s293 + $0x109] sm:$0xff]
      %v992 = vld [vmem:[%s293 + $0x111] sm:$0xff]
      %v993 = vld [vmem:[%s293 + $0x121] sm:$0xff]
      %v994 = vld [vmem:[%s293 + $0x129] sm:$0xff]
      %v995 = vld [vmem:[%s293 + $0x139] sm:$0xff]
      %v996 = vld [vmem:[%s293 + $0x141] sm:$0xff]
      %v997 = vld [vmem:[%s293 + $0x151] sm:$0xff]
      %v998 = vld [vmem:[%s293 + $0x159] sm:$0xff]
      %v999 = vld [vmem:[%s293 + $0x169] sm:$0xff]
      %v1000 = vld [vmem:[%s293 + $0x171] sm:$0xff]
      %1033 = vrot.lane.b32.xlu0 %v969, 16
      %v1034 = vpop.permute.xlu0 %1033
      %1035 = vrot.lane.b32.xlu0 %v970, 16
      %v1036 = vpop.permute.xlu0 %1035
      %1037 = vrot.lane.b32.xlu0 %v971, 16
      %v1038 = vpop.permute.xlu0 %1037
      %1039 = vrot.lane.b32.xlu0 %v972, 16
      %v1040 = vpop.permute.xlu0 %1039
      %1041 = vrot.lane.b32.xlu0 %v973, 16
      %v1042 = vpop.permute.xlu0 %1041
      %1043 = vrot.lane.b32.xlu0 %v974, 16
      %v1044 = vpop.permute.xlu0 %1043
      %1045 = vrot.lane.b32.xlu0 %v975, 16
      %v1046 = vpop.permute.xlu0 %1045
      %1047 = vrot.lane.b32.xlu0 %v976, 16
      %v1048 = vpop.permute.xlu0 %1047
      %1049 = vrot.lane.b32.xlu0 %v977, 16
      %v1050 = vpop.permute.xlu0 %1049
      %1051 = vrot.lane.b32.xlu0 %v978, 16
      %v1052 = vpop.permute.xlu0 %1051
      %1053 = vrot.lane.b32.xlu0 %v979, 16
      %v1054 = vpop.permute.xlu0 %1053
      %1055 = vrot.lane.b32.xlu0 %v980, 16
      %v1056 = vpop.permute.xlu0 %1055
      %1057 = vrot.lane.b32.xlu0 %v981, 16
      %v1058 = vpop.permute.xlu0 %1057
      %1059 = vrot.lane.b32.xlu0 %v982, 16
      %v1060 = vpop.permute.xlu0 %1059
      %1061 = vrot.lane.b32.xlu0 %v983, 16
      %v1062 = vpop.permute.xlu0 %1061
      %1063 = vrot.lane.b32.xlu0 %v984, 16
      %v1064 = vpop.permute.xlu0 %1063
      %1065 = vrot.lane.b32.xlu0 %v985, 16
      %v1066 = vpop.permute.xlu0 %1065
      %1067 = vrot.lane.b32.xlu0 %v986, 16
      %v1068 = vpop.permute.xlu0 %1067
      %1069 = vrot.lane.b32.xlu0 %v987, 16
      %v1070 = vpop.permute.xlu0 %1069
      %1071 = vrot.lane.b32.xlu0 %v988, 16
      %v1072 = vpop.permute.xlu0 %1071
      %1073 = vrot.lane.b32.xlu0 %v989, 16
      %v1074 = vpop.permute.xlu0 %1073
      %1075 = vrot.lane.b32.xlu0 %v990, 16
      %v1076 = vpop.permute.xlu0 %1075
      %1077 = vrot.lane.b32.xlu0 %v991, 16
      %v1078 = vpop.permute.xlu0 %1077
      %1079 = vrot.lane.b32.xlu0 %v992, 16
      %v1080 = vpop.permute.xlu0 %1079
      %1081 = vrot.lane.b32.xlu0 %v993, 16
      %v1082 = vpop.permute.xlu0 %1081
      %1083 = vrot.lane.b32.xlu0 %v994, 16
      %v1084 = vpop.permute.xlu0 %1083
      %1085 = vrot.lane.b32.xlu0 %v995, 16
      %v1086 = vpop.permute.xlu0 %1085
      %1087 = vrot.lane.b32.xlu0 %v996, 16
      %v1088 = vpop.permute.xlu0 %1087
      %1089 = vrot.lane.b32.xlu0 %v997, 16
      %v1090 = vpop.permute.xlu0 %1089
      %1091 = vrot.lane.b32.xlu0 %v998, 16
      %v1092 = vpop.permute.xlu0 %1091
      %1093 = vrot.lane.b32.xlu0 %v999, 16
      %v1094 = vpop.permute.xlu0 %1093
      %1095 = vrot.lane.b32.xlu0 %v1000, 16
      %v1096 = vpop.permute.xlu0 %1095
      %vm1129 = vcmask 162944
      %1130 = vst.msk [vmem:[#allocation3] sm:$0xff] %vm1129, %v1034
      %1131 = vst.msk [vmem:[#allocation3 + $0x8] sm:$0xff] %vm1129, %v1036
      %1132 = vst.msk [vmem:[#allocation3 + $0x10] sm:$0xff] %vm1129, %v1038
      %1133 = vst.msk [vmem:[#allocation3 + $0x18] sm:$0xff] %vm1129, %v1040
      %1134 = vst.msk [vmem:[#allocation3 + $0x20] sm:$0xff] %vm1129, %v1042
      %1135 = vst.msk [vmem:[#allocation3 + $0x28] sm:$0xff] %vm1129, %v1044
      %1136 = vst.msk [vmem:[#allocation3 + $0x30] sm:$0xff] %vm1129, %v1046
      %1137 = vst.msk [vmem:[#allocation3 + $0x38] sm:$0xff] %vm1129, %v1048
      %1138 = vst.msk [vmem:[#allocation3 + $0x40] sm:$0xff] %vm1129, %v1050
      %1139 = vst.msk [vmem:[#allocation3 + $0x48] sm:$0xff] %vm1129, %v1052
      %1140 = vst.msk [vmem:[#allocation3 + $0x50] sm:$0xff] %vm1129, %v1054
      %1141 = vst.msk [vmem:[#allocation3 + $0x58] sm:$0xff] %vm1129, %v1056
      %1142 = vst.msk [vmem:[#allocation3 + $0x60] sm:$0xff] %vm1129, %v1058
      %1143 = vst.msk [vmem:[#allocation3 + $0x68] sm:$0xff] %vm1129, %v1060
      %1144 = vst.msk [vmem:[#allocation3 + $0x70] sm:$0xff] %vm1129, %v1062
      %1145 = vst.msk [vmem:[#allocation3 + $0x78] sm:$0xff] %vm1129, %v1064
      %1146 = vst.msk [vmem:[#allocation3 + $0x80] sm:$0xff] %vm1129, %v1066
      %1147 = vst.msk [vmem:[#allocation3 + $0x88] sm:$0xff] %vm1129, %v1068
      %1148 = vst.msk [vmem:[#allocation3 + $0x90] sm:$0xff] %vm1129, %v1070
      %1149 = vst.msk [vmem:[#allocation3 + $0x98] sm:$0xff] %vm1129, %v1072
      %1150 = vst.msk [vmem:[#allocation3 + $0xa0] sm:$0xff] %vm1129, %v1074
      %1151 = vst.msk [vmem:[#allocation3 + $0xa8] sm:$0xff] %vm1129, %v1076
      %1152 = vst.msk [vmem:[#allocation3 + $0xb0] sm:$0xff] %vm1129, %v1078
      %1153 = vst.msk [vmem:[#allocation3 + $0xb8] sm:$0xff] %vm1129, %v1080
      %1154 = vst.msk [vmem:[#allocation3 + $0xc0] sm:$0xff] %vm1129, %v1082
      %1155 = vst.msk [vmem:[#allocation3 + $0xc8] sm:$0xff] %vm1129, %v1084
      %1156 = vst.msk [vmem:[#allocation3 + $0xd0] sm:$0xff] %vm1129, %v1086
      %1157 = vst.msk [vmem:[#allocation3 + $0xd8] sm:$0xff] %vm1129, %v1088
      %1158 = vst.msk [vmem:[#allocation3 + $0xe0] sm:$0xff] %vm1129, %v1090
      %1159 = vst.msk [vmem:[#allocation3 + $0xe8] sm:$0xff] %vm1129, %v1092
      %1160 = vst.msk [vmem:[#allocation3 + $0xf0] sm:$0xff] %vm1129, %v1094
      %1161 = vst.msk [vmem:[#allocation3 + $0xf8] sm:$0xff] %vm1129, %v1096
      %v1162 = vld [vmem:[%s293 + $0x2] sm:$0xff]
      %v1163 = vld [vmem:[%s293 + $0xa] sm:$0xff]
      %v1164 = vld [vmem:[%s293 + $0x1a] sm:$0xff]
      %v1165 = vld [vmem:[%s293 + $0x22] sm:$0xff]
      %v1166 = vld [vmem:[%s293 + $0x32] sm:$0xff]
      %v1167 = vld [vmem:[%s293 + $0x3a] sm:$0xff]
      %v1168 = vld [vmem:[%s293 + $0x4a] sm:$0xff]
      %v1169 = vld [vmem:[%s293 + $0x52] sm:$0xff]
      %v1170 = vld [vmem:[%s293 + $0x62] sm:$0xff]
      %v1171 = vld [vmem:[%s293 + $0x6a] sm:$0xff]
      %v1172 = vld [vmem:[%s293 + $0x7a] sm:$0xff]
      %v1173 = vld [vmem:[%s293 + $0x82] sm:$0xff]
      %v1174 = vld [vmem:[%s293 + $0x92] sm:$0xff]
      %v1175 = vld [vmem:[%s293 + $0x9a] sm:$0xff]
      %v1176 = vld [vmem:[%s293 + $0xaa] sm:$0xff]
      %v1177 = vld [vmem:[%s293 + $0xb2] sm:$0xff]
      %v1178 = vld [vmem:[%s293 + $0xc2] sm:$0xff]
      %v1179 = vld [vmem:[%s293 + $0xca] sm:$0xff]
      %v1180 = vld [vmem:[%s293 + $0xda] sm:$0xff]
      %v1181 = vld [vmem:[%s293 + $0xe2] sm:$0xff]
      %v1182 = vld [vmem:[%s293 + $0xf2] sm:$0xff]
      %v1183 = vld [vmem:[%s293 + $0xfa] sm:$0xff]
      %v1184 = vld [vmem:[%s293 + $0x10a] sm:$0xff]
      %v1185 = vld [vmem:[%s293 + $0x112] sm:$0xff]
      %v1186 = vld [vmem:[%s293 + $0x122] sm:$0xff]
      %v1187 = vld [vmem:[%s293 + $0x12a] sm:$0xff]
      %v1188 = vld [vmem:[%s293 + $0x13a] sm:$0xff]
      %v1189 = vld [vmem:[%s293 + $0x142] sm:$0xff]
      %v1190 = vld [vmem:[%s293 + $0x152] sm:$0xff]
      %v1191 = vld [vmem:[%s293 + $0x15a] sm:$0xff]
      %v1192 = vld [vmem:[%s293 + $0x16a] sm:$0xff]
      %v1193 = vld [vmem:[%s293 + $0x172] sm:$0xff]
      %1226 = vrot.lane.b32.xlu0 %v1162, 20
      %v1227 = vpop.permute.xlu0 %1226
      %1228 = vrot.lane.b32.xlu0 %v1163, 20
      %v1229 = vpop.permute.xlu0 %1228
      %1230 = vrot.lane.b32.xlu0 %v1164, 20
      %v1231 = vpop.permute.xlu0 %1230
      %1232 = vrot.lane.b32.xlu0 %v1165, 20
      %v1233 = vpop.permute.xlu0 %1232
      %1234 = vrot.lane.b32.xlu0 %v1166, 20
      %v1235 = vpop.permute.xlu0 %1234
      %1236 = vrot.lane.b32.xlu0 %v1167, 20
      %v1237 = vpop.permute.xlu0 %1236
      %1238 = vrot.lane.b32.xlu0 %v1168, 20
      %v1239 = vpop.permute.xlu0 %1238
      %1240 = vrot.lane.b32.xlu0 %v1169, 20
      %v1241 = vpop.permute.xlu0 %1240
      %1242 = vrot.lane.b32.xlu0 %v1170, 20
      %v1243 = vpop.permute.xlu0 %1242
      %1244 = vrot.lane.b32.xlu0 %v1171, 20
      %v1245 = vpop.permute.xlu0 %1244
      %1246 = vrot.lane.b32.xlu0 %v1172, 20
      %v1247 = vpop.permute.xlu0 %1246
      %1248 = vrot.lane.b32.xlu0 %v1173, 20
      %v1249 = vpop.permute.xlu0 %1248
      %1250 = vrot.lane.b32.xlu0 %v1174, 20
      %v1251 = vpop.permute.xlu0 %1250
      %1252 = vrot.lane.b32.xlu0 %v1175, 20
      %v1253 = vpop.permute.xlu0 %1252
      %1254 = vrot.lane.b32.xlu0 %v1176, 20
      %v1255 = vpop.permute.xlu0 %1254
      %1256 = vrot.lane.b32.xlu0 %v1177, 20
      %v1257 = vpop.permute.xlu0 %1256
      %1258 = vrot.lane.b32.xlu0 %v1178, 20
      %v1259 = vpop.permute.xlu0 %1258
      %1260 = vrot.lane.b32.xlu0 %v1179, 20
      %v1261 = vpop.permute.xlu0 %1260
      %1262 = vrot.lane.b32.xlu0 %v1180, 20
      %v1263 = vpop.permute.xlu0 %1262
      %1264 = vrot.lane.b32.xlu0 %v1181, 20
      %v1265 = vpop.permute.xlu0 %1264
      %1266 = vrot.lane.b32.xlu0 %v1182, 20
      %v1267 = vpop.permute.xlu0 %1266
      %1268 = vrot.lane.b32.xlu0 %v1183, 20
      %v1269 = vpop.permute.xlu0 %1268
      %1270 = vrot.lane.b32.xlu0 %v1184, 20
      %v1271 = vpop.permute.xlu0 %1270
      %1272 = vrot.lane.b32.xlu0 %v1185, 20
      %v1273 = vpop.permute.xlu0 %1272
      %1274 = vrot.lane.b32.xlu0 %v1186, 20
      %v1275 = vpop.permute.xlu0 %1274
      %1276 = vrot.lane.b32.xlu0 %v1187, 20
      %v1277 = vpop.permute.xlu0 %1276
      %1278 = vrot.lane.b32.xlu0 %v1188, 20
      %v1279 = vpop.permute.xlu0 %1278
      %1280 = vrot.lane.b32.xlu0 %v1189, 20
      %v1281 = vpop.permute.xlu0 %1280
      %1282 = vrot.lane.b32.xlu0 %v1190, 20
      %v1283 = vpop.permute.xlu0 %1282
      %1284 = vrot.lane.b32.xlu0 %v1191, 20
      %v1285 = vpop.permute.xlu0 %1284
      %1286 = vrot.lane.b32.xlu0 %v1192, 20
      %v1287 = vpop.permute.xlu0 %1286
      %1288 = vrot.lane.b32.xlu0 %v1193, 20
      %v1289 = vpop.permute.xlu0 %1288
      %vm1322 = vcmask 195744
      %1323 = vst.msk [vmem:[#allocation3] sm:$0xff] %vm1322, %v1227
      %1324 = vst.msk [vmem:[#allocation3 + $0x8] sm:$0xff] %vm1322, %v1229
      %1325 = vst.msk [vmem:[#allocation3 + $0x10] sm:$0xff] %vm1322, %v1231
      %1326 = vst.msk [vmem:[#allocation3 + $0x18] sm:$0xff] %vm1322, %v1233
      %1327 = vst.msk [vmem:[#allocation3 + $0x20] sm:$0xff] %vm1322, %v1235
      %1328 = vst.msk [vmem:[#allocation3 + $0x28] sm:$0xff] %vm1322, %v1237
      %1329 = vst.msk [vmem:[#allocation3 + $0x30] sm:$0xff] %vm1322, %v1239
      %1330 = vst.msk [vmem:[#allocation3 + $0x38] sm:$0xff] %vm1322, %v1241
      %1331 = vst.msk [vmem:[#allocation3 + $0x40] sm:$0xff] %vm1322, %v1243
      %1332 = vst.msk [vmem:[#allocation3 + $0x48] sm:$0xff] %vm1322, %v1245
      %1333 = vst.msk [vmem:[#allocation3 + $0x50] sm:$0xff] %vm1322, %v1247
      %1334 = vst.msk [vmem:[#allocation3 + $0x58] sm:$0xff] %vm1322, %v1249
      %1335 = vst.msk [vmem:[#allocation3 + $0x60] sm:$0xff] %vm1322, %v1251
      %1336 = vst.msk [vmem:[#allocation3 + $0x68] sm:$0xff] %vm1322, %v1253
      %1337 = vst.msk [vmem:[#allocation3 + $0x70] sm:$0xff] %vm1322, %v1255
      %1338 = vst.msk [vmem:[#allocation3 + $0x78] sm:$0xff] %vm1322, %v1257
      %1339 = vst.msk [vmem:[#allocation3 + $0x80] sm:$0xff] %vm1322, %v1259
      %1340 = vst.msk [vmem:[#allocation3 + $0x88] sm:$0xff] %vm1322, %v1261
      %1341 = vst.msk [vmem:[#allocation3 + $0x90] sm:$0xff] %vm1322, %v1263
      %1342 = vst.msk [vmem:[#allocation3 + $0x98] sm:$0xff] %vm1322, %v1265
      %1343 = vst.msk [vmem:[#allocation3 + $0xa0] sm:$0xff] %vm1322, %v1267
      %1344 = vst.msk [vmem:[#allocation3 + $0xa8] sm:$0xff] %vm1322, %v1269
      %1345 = vst.msk [vmem:[#allocation3 + $0xb0] sm:$0xff] %vm1322, %v1271
      %1346 = vst.msk [vmem:[#allocation3 + $0xb8] sm:$0xff] %vm1322, %v1273
      %1347 = vst.msk [vmem:[#allocation3 + $0xc0] sm:$0xff] %vm1322, %v1275
      %1348 = vst.msk [vmem:[#allocation3 + $0xc8] sm:$0xff] %vm1322, %v1277
      %1349 = vst.msk [vmem:[#allocation3 + $0xd0] sm:$0xff] %vm1322, %v1279
      %1350 = vst.msk [vmem:[#allocation3 + $0xd8] sm:$0xff] %vm1322, %v1281
      %1351 = vst.msk [vmem:[#allocation3 + $0xe0] sm:$0xff] %vm1322, %v1283
      %1352 = vst.msk [vmem:[#allocation3 + $0xe8] sm:$0xff] %vm1322, %v1285
      %1353 = vst.msk [vmem:[#allocation3 + $0xf0] sm:$0xff] %vm1322, %v1287
      %1354 = vst.msk [vmem:[#allocation3 + $0xf8] sm:$0xff] %vm1322, %v1289
      %s1355 = scalar_lea.vmem [#allocation2], 48
      %v1356 = vld [vmem:[%s1355] sm:$0xff]
      %v1357 = vld [vmem:[%s1355 + $0x8] sm:$0xff]
      %v1358 = vld [vmem:[%s1355 + $0x18] sm:$0xff]
      %v1359 = vld [vmem:[%s1355 + $0x20] sm:$0xff]
      %v1360 = vld [vmem:[%s1355 + $0x30] sm:$0xff]
      %v1361 = vld [vmem:[%s1355 + $0x38] sm:$0xff]
      %v1362 = vld [vmem:[%s1355 + $0x48] sm:$0xff]
      %v1363 = vld [vmem:[%s1355 + $0x50] sm:$0xff]
      %v1364 = vld [vmem:[%s1355 + $0x60] sm:$0xff]
      %v1365 = vld [vmem:[%s1355 + $0x68] sm:$0xff]
      %v1366 = vld [vmem:[%s1355 + $0x78] sm:$0xff]
      %v1367 = vld [vmem:[%s1355 + $0x80] sm:$0xff]
      %v1368 = vld [vmem:[%s1355 + $0x90] sm:$0xff]
      %v1369 = vld [vmem:[%s1355 + $0x98] sm:$0xff]
      %v1370 = vld [vmem:[%s1355 + $0xa8] sm:$0xff]
      %v1371 = vld [vmem:[%s1355 + $0xb0] sm:$0xff]
      %v1372 = vld [vmem:[%s1355 + $0xc0] sm:$0xff]
      %v1373 = vld [vmem:[%s1355 + $0xc8] sm:$0xff]
      %v1374 = vld [vmem:[%s1355 + $0xd8] sm:$0xff]
      %v1375 = vld [vmem:[%s1355 + $0xe0] sm:$0xff]
      %v1376 = vld [vmem:[%s1355 + $0xf0] sm:$0xff]
      %v1377 = vld [vmem:[%s1355 + $0xf8] sm:$0xff]
      %v1378 = vld [vmem:[%s1355 + $0x108] sm:$0xff]
      %v1379 = vld [vmem:[%s1355 + $0x110] sm:$0xff]
      %v1380 = vld [vmem:[%s1355 + $0x120] sm:$0xff]
      %v1381 = vld [vmem:[%s1355 + $0x128] sm:$0xff]
      %v1382 = vld [vmem:[%s1355 + $0x138] sm:$0xff]
      %v1383 = vld [vmem:[%s1355 + $0x140] sm:$0xff]
      %v1384 = vld [vmem:[%s1355 + $0x150] sm:$0xff]
      %v1385 = vld [vmem:[%s1355 + $0x158] sm:$0xff]
      %v1386 = vld [vmem:[%s1355 + $0x168] sm:$0xff]
      %v1387 = vld [vmem:[%s1355 + $0x170] sm:$0xff]
      %1420 = vrot.lane.b32.xlu0 %v1356, 24
      %v1421 = vpop.permute.xlu0 %1420
      %1422 = vrot.lane.b32.xlu0 %v1357, 24
      %v1423 = vpop.permute.xlu0 %1422
      %1424 = vrot.lane.b32.xlu0 %v1358, 24
      %v1425 = vpop.permute.xlu0 %1424
      %1426 = vrot.lane.b32.xlu0 %v1359, 24
      %v1427 = vpop.permute.xlu0 %1426
      %1428 = vrot.lane.b32.xlu0 %v1360, 24
      %v1429 = vpop.permute.xlu0 %1428
      %1430 = vrot.lane.b32.xlu0 %v1361, 24
      %v1431 = vpop.permute.xlu0 %1430
      %1432 = vrot.lane.b32.xlu0 %v1362, 24
      %v1433 = vpop.permute.xlu0 %1432
      %1434 = vrot.lane.b32.xlu0 %v1363, 24
      %v1435 = vpop.permute.xlu0 %1434
      %1436 = vrot.lane.b32.xlu0 %v1364, 24
      %v1437 = vpop.permute.xlu0 %1436
      %1438 = vrot.lane.b32.xlu0 %v1365, 24
      %v1439 = vpop.permute.xlu0 %1438
      %1440 = vrot.lane.b32.xlu0 %v1366, 24
      %v1441 = vpop.permute.xlu0 %1440
      %1442 = vrot.lane.b32.xlu0 %v1367, 24
      %v1443 = vpop.permute.xlu0 %1442
      %1444 = vrot.lane.b32.xlu0 %v1368, 24
      %v1445 = vpop.permute.xlu0 %1444
      %1446 = vrot.lane.b32.xlu0 %v1369, 24
      %v1447 = vpop.permute.xlu0 %1446
      %1448 = vrot.lane.b32.xlu0 %v1370, 24
      %v1449 = vpop.permute.xlu0 %1448
      %1450 = vrot.lane.b32.xlu0 %v1371, 24
      %v1451 = vpop.permute.xlu0 %1450
      %1452 = vrot.lane.b32.xlu0 %v1372, 24
      %v1453 = vpop.permute.xlu0 %1452
      %1454 = vrot.lane.b32.xlu0 %v1373, 24
      %v1455 = vpop.permute.xlu0 %1454
      %1456 = vrot.lane.b32.xlu0 %v1374, 24
      %v1457 = vpop.permute.xlu0 %1456
      %1458 = vrot.lane.b32.xlu0 %v1375, 24
      %v1459 = vpop.permute.xlu0 %1458
      %1460 = vrot.lane.b32.xlu0 %v1376, 24
      %v1461 = vpop.permute.xlu0 %1460
      %1462 = vrot.lane.b32.xlu0 %v1377, 24
      %v1463 = vpop.permute.xlu0 %1462
      %1464 = vrot.lane.b32.xlu0 %v1378, 24
      %v1465 = vpop.permute.xlu0 %1464
      %1466 = vrot.lane.b32.xlu0 %v1379, 24
      %v1467 = vpop.permute.xlu0 %1466
      %1468 = vrot.lane.b32.xlu0 %v1380, 24
      %v1469 = vpop.permute.xlu0 %1468
      %1470 = vrot.lane.b32.xlu0 %v1381, 24
      %v1471 = vpop.permute.xlu0 %1470
      %1472 = vrot.lane.b32.xlu0 %v1382, 24
      %v1473 = vpop.permute.xlu0 %1472
      %1474 = vrot.lane.b32.xlu0 %v1383, 24
      %v1475 = vpop.permute.xlu0 %1474
      %1476 = vrot.lane.b32.xlu0 %v1384, 24
      %v1477 = vpop.permute.xlu0 %1476
      %1478 = vrot.lane.b32.xlu0 %v1385, 24
      %v1479 = vpop.permute.xlu0 %1478
      %1480 = vrot.lane.b32.xlu0 %v1386, 24
      %v1481 = vpop.permute.xlu0 %1480
      %1482 = vrot.lane.b32.xlu0 %v1387, 24
      %v1483 = vpop.permute.xlu0 %1482
      %vm1516 = vcmask 228544
      %1517 = vst.msk [vmem:[#allocation3] sm:$0xff] %vm1516, %v1421
      %1518 = vst.msk [vmem:[#allocation3 + $0x8] sm:$0xff] %vm1516, %v1423
      %1519 = vst.msk [vmem:[#allocation3 + $0x10] sm:$0xff] %vm1516, %v1425
      %1520 = vst.msk [vmem:[#allocation3 + $0x18] sm:$0xff] %vm1516, %v1427
      %1521 = vst.msk [vmem:[#allocation3 + $0x20] sm:$0xff] %vm1516, %v1429
      %1522 = vst.msk [vmem:[#allocation3 + $0x28] sm:$0xff] %vm1516, %v1431
      %1523 = vst.msk [vmem:[#allocation3 + $0x30] sm:$0xff] %vm1516, %v1433
      %1524 = vst.msk [vmem:[#allocation3 + $0x38] sm:$0xff] %vm1516, %v1435
      %1525 = vst.msk [vmem:[#allocation3 + $0x40] sm:$0xff] %vm1516, %v1437
      %1526 = vst.msk [vmem:[#allocation3 + $0x48] sm:$0xff] %vm1516, %v1439
      %1527 = vst.msk [vmem:[#allocation3 + $0x50] sm:$0xff] %vm1516, %v1441
      %1528 = vst.msk [vmem:[#allocation3 + $0x58] sm:$0xff] %vm1516, %v1443
      %1529 = vst.msk [vmem:[#allocation3 + $0x60] sm:$0xff] %vm1516, %v1445
      %1530 = vst.msk [vmem:[#allocation3 + $0x68] sm:$0xff] %vm1516, %v1447
      %1531 = vst.msk [vmem:[#allocation3 + $0x70] sm:$0xff] %vm1516, %v1449
      %1532 = vst.msk [vmem:[#allocation3 + $0x78] sm:$0xff] %vm1516, %v1451
      %1533 = vst.msk [vmem:[#allocation3 + $0x80] sm:$0xff] %vm1516, %v1453
      %1534 = vst.msk [vmem:[#allocation3 + $0x88] sm:$0xff] %vm1516, %v1455
      %1535 = vst.msk [vmem:[#allocation3 + $0x90] sm:$0xff] %vm1516, %v1457
      %1536 = vst.msk [vmem:[#allocation3 + $0x98] sm:$0xff] %vm1516, %v1459
      %1537 = vst.msk [vmem:[#allocation3 + $0xa0] sm:$0xff] %vm1516, %v1461
      %1538 = vst.msk [vmem:[#allocation3 + $0xa8] sm:$0xff] %vm1516, %v1463
      %1539 = vst.msk [vmem:[#allocation3 + $0xb0] sm:$0xff] %vm1516, %v1465
      %1540 = vst.msk [vmem:[#allocation3 + $0xb8] sm:$0xff] %vm1516, %v1467
      %1541 = vst.msk [vmem:[#allocation3 + $0xc0] sm:$0xff] %vm1516, %v1469
      %1542 = vst.msk [vmem:[#allocation3 + $0xc8] sm:$0xff] %vm1516, %v1471
      %1543 = vst.msk [vmem:[#allocation3 + $0xd0] sm:$0xff] %vm1516, %v1473
      %1544 = vst.msk [vmem:[#allocation3 + $0xd8] sm:$0xff] %vm1516, %v1475
      %1545 = vst.msk [vmem:[#allocation3 + $0xe0] sm:$0xff] %vm1516, %v1477
      %1546 = vst.msk [vmem:[#allocation3 + $0xe8] sm:$0xff] %vm1516, %v1479
      %1547 = vst.msk [vmem:[#allocation3 + $0xf0] sm:$0xff] %vm1516, %v1481
      %1548 = vst.msk [vmem:[#allocation3 + $0xf8] sm:$0xff] %vm1516, %v1483
      %v1549 = vld [vmem:[%s1355 + $0x1] sm:$0xff]
      %v1550 = vld [vmem:[%s1355 + $0x9] sm:$0xff]
      %v1551 = vld [vmem:[%s1355 + $0x19] sm:$0xff]
      %v1552 = vld [vmem:[%s1355 + $0x21] sm:$0xff]
      %v1553 = vld [vmem:[%s1355 + $0x31] sm:$0xff]
      %v1554 = vld [vmem:[%s1355 + $0x39] sm:$0xff]
      %v1555 = vld [vmem:[%s1355 + $0x49] sm:$0xff]
      %v1556 = vld [vmem:[%s1355 + $0x51] sm:$0xff]
      %v1557 = vld [vmem:[%s1355 + $0x61] sm:$0xff]
      %v1558 = vld [vmem:[%s1355 + $0x69] sm:$0xff]
      %v1559 = vld [vmem:[%s1355 + $0x79] sm:$0xff]
      %v1560 = vld [vmem:[%s1355 + $0x81] sm:$0xff]
      %v1561 = vld [vmem:[%s1355 + $0x91] sm:$0xff]
      %v1562 = vld [vmem:[%s1355 + $0x99] sm:$0xff]
      %v1563 = vld [vmem:[%s1355 + $0xa9] sm:$0xff]
      %v1564 = vld [vmem:[%s1355 + $0xb1] sm:$0xff]
      %v1565 = vld [vmem:[%s1355 + $0xc1] sm:$0xff]
      %v1566 = vld [vmem:[%s1355 + $0xc9] sm:$0xff]
      %v1567 = vld [vmem:[%s1355 + $0xd9] sm:$0xff]
      %v1568 = vld [vmem:[%s1355 + $0xe1] sm:$0xff]
      %v1569 = vld [vmem:[%s1355 + $0xf1] sm:$0xff]
      %v1570 = vld [vmem:[%s1355 + $0xf9] sm:$0xff]
      %v1571 = vld [vmem:[%s1355 + $0x109] sm:$0xff]
      %v1572 = vld [vmem:[%s1355 + $0x111] sm:$0xff]
      %v1573 = vld [vmem:[%s1355 + $0x121] sm:$0xff]
      %v1574 = vld [vmem:[%s1355 + $0x129] sm:$0xff]
      %v1575 = vld [vmem:[%s1355 + $0x139] sm:$0xff]
      %v1576 = vld [vmem:[%s1355 + $0x141] sm:$0xff]
      %v1577 = vld [vmem:[%s1355 + $0x151] sm:$0xff]
      %v1578 = vld [vmem:[%s1355 + $0x159] sm:$0xff]
      %v1579 = vld [vmem:[%s1355 + $0x169] sm:$0xff]
      %v1580 = vld [vmem:[%s1355 + $0x171] sm:$0xff]
      %1613 = vrot.lane.b32.xlu0 %v1549, 28
      %v1614 = vpop.permute.xlu0 %1613
      %1615 = vrot.lane.b32.xlu0 %v1550, 28
      %v1616 = vpop.permute.xlu0 %1615
      %1617 = vrot.lane.b32.xlu0 %v1551, 28
      %v1618 = vpop.permute.xlu0 %1617
      %1619 = vrot.lane.b32.xlu0 %v1552, 28
      %v1620 = vpop.permute.xlu0 %1619
      %1621 = vrot.lane.b32.xlu0 %v1553, 28
      %v1622 = vpop.permute.xlu0 %1621
      %1623 = vrot.lane.b32.xlu0 %v1554, 28
      %v1624 = vpop.permute.xlu0 %1623
      %1625 = vrot.lane.b32.xlu0 %v1555, 28
      %v1626 = vpop.permute.xlu0 %1625
      %1627 = vrot.lane.b32.xlu0 %v1556, 28
      %v1628 = vpop.permute.xlu0 %1627
      %1629 = vrot.lane.b32.xlu0 %v1557, 28
      %v1630 = vpop.permute.xlu0 %1629
      %1631 = vrot.lane.b32.xlu0 %v1558, 28
      %v1632 = vpop.permute.xlu0 %1631
      %1633 = vrot.lane.b32.xlu0 %v1559, 28
      %v1634 = vpop.permute.xlu0 %1633
      %1635 = vrot.lane.b32.xlu0 %v1560, 28
      %v1636 = vpop.permute.xlu0 %1635
      %1637 = vrot.lane.b32.xlu0 %v1561, 28
      %v1638 = vpop.permute.xlu0 %1637
      %1639 = vrot.lane.b32.xlu0 %v1562, 28
      %v1640 = vpop.permute.xlu0 %1639
      %1641 = vrot.lane.b32.xlu0 %v1563, 28
      %v1642 = vpop.permute.xlu0 %1641
      %1643 = vrot.lane.b32.xlu0 %v1564, 28
      %v1644 = vpop.permute.xlu0 %1643
      %1645 = vrot.lane.b32.xlu0 %v1565, 28
      %v1646 = vpop.permute.xlu0 %1645
      %1647 = vrot.lane.b32.xlu0 %v1566, 28
      %v1648 = vpop.permute.xlu0 %1647
      %1649 = vrot.lane.b32.xlu0 %v1567, 28
      %v1650 = vpop.permute.xlu0 %1649
      %1651 = vrot.lane.b32.xlu0 %v1568, 28
      %v1652 = vpop.permute.xlu0 %1651
      %1653 = vrot.lane.b32.xlu0 %v1569, 28
      %v1654 = vpop.permute.xlu0 %1653
      %1655 = vrot.lane.b32.xlu0 %v1570, 28
      %v1656 = vpop.permute.xlu0 %1655
      %1657 = vrot.lane.b32.xlu0 %v1571, 28
      %v1658 = vpop.permute.xlu0 %1657
      %1659 = vrot.lane.b32.xlu0 %v1572, 28
      %v1660 = vpop.permute.xlu0 %1659
      %1661 = vrot.lane.b32.xlu0 %v1573, 28
      %v1662 = vpop.permute.xlu0 %1661
      %1663 = vrot.lane.b32.xlu0 %v1574, 28
      %v1664 = vpop.permute.xlu0 %1663
      %1665 = vrot.lane.b32.xlu0 %v1575, 28
      %v1666 = vpop.permute.xlu0 %1665
      %1667 = vrot.lane.b32.xlu0 %v1576, 28
      %v1668 = vpop.permute.xlu0 %1667
      %1669 = vrot.lane.b32.xlu0 %v1577, 28
      %v1670 = vpop.permute.xlu0 %1669
      %1671 = vrot.lane.b32.xlu0 %v1578, 28
      %v1672 = vpop.permute.xlu0 %1671
      %1673 = vrot.lane.b32.xlu0 %v1579, 28
      %v1674 = vpop.permute.xlu0 %1673
      %1675 = vrot.lane.b32.xlu0 %v1580, 28
      %v1676 = vpop.permute.xlu0 %1675
      %vm1709 = vcmask 261344
      %1710 = vst.msk [vmem:[#allocation3] sm:$0xff] %vm1709, %v1614
      %1711 = vst.msk [vmem:[#allocation3 + $0x8] sm:$0xff] %vm1709, %v1616
      %1712 = vst.msk [vmem:[#allocation3 + $0x10] sm:$0xff] %vm1709, %v1618
      %1713 = vst.msk [vmem:[#allocation3 + $0x18] sm:$0xff] %vm1709, %v1620
      %1714 = vst.msk [vmem:[#allocation3 + $0x20] sm:$0xff] %vm1709, %v1622
      %1715 = vst.msk [vmem:[#allocation3 + $0x28] sm:$0xff] %vm1709, %v1624
      %1716 = vst.msk [vmem:[#allocation3 + $0x30] sm:$0xff] %vm1709, %v1626
      %1717 = vst.msk [vmem:[#allocation3 + $0x38] sm:$0xff] %vm1709, %v1628
      %1718 = vst.msk [vmem:[#allocation3 + $0x40] sm:$0xff] %vm1709, %v1630
      %1719 = vst.msk [vmem:[#allocation3 + $0x48] sm:$0xff] %vm1709, %v1632
      %1720 = vst.msk [vmem:[#allocation3 + $0x50] sm:$0xff] %vm1709, %v1634
      %1721 = vst.msk [vmem:[#allocation3 + $0x58] sm:$0xff] %vm1709, %v1636
      %1722 = vst.msk [vmem:[#allocation3 + $0x60] sm:$0xff] %vm1709, %v1638
      %1723 = vst.msk [vmem:[#allocation3 + $0x68] sm:$0xff] %vm1709, %v1640
      %1724 = vst.msk [vmem:[#allocation3 + $0x70] sm:$0xff] %vm1709, %v1642
      %1725 = vst.msk [vmem:[#allocation3 + $0x78] sm:$0xff] %vm1709, %v1644
      %1726 = vst.msk [vmem:[#allocation3 + $0x80] sm:$0xff] %vm1709, %v1646
      %1727 = vst.msk [vmem:[#allocation3 + $0x88] sm:$0xff] %vm1709, %v1648
      %1728 = vst.msk [vmem:[#allocation3 + $0x90] sm:$0xff] %vm1709, %v1650
      %1729 = vst.msk [vmem:[#allocation3 + $0x98] sm:$0xff] %vm1709, %v1652
      %1730 = vst.msk [vmem:[#allocation3 + $0xa0] sm:$0xff] %vm1709, %v1654
      %1731 = vst.msk [vmem:[#allocation3 + $0xa8] sm:$0xff] %vm1709, %v1656
      %1732 = vst.msk [vmem:[#allocation3 + $0xb0] sm:$0xff] %vm1709, %v1658
      %1733 = vst.msk [vmem:[#allocation3 + $0xb8] sm:$0xff] %vm1709, %v1660
      %1734 = vst.msk [vmem:[#allocation3 + $0xc0] sm:$0xff] %vm1709, %v1662
      %1735 = vst.msk [vmem:[#allocation3 + $0xc8] sm:$0xff] %vm1709, %v1664
      %1736 = vst.msk [vmem:[#allocation3 + $0xd0] sm:$0xff] %vm1709, %v1666
      %1737 = vst.msk [vmem:[#allocation3 + $0xd8] sm:$0xff] %vm1709, %v1668
      %1738 = vst.msk [vmem:[#allocation3 + $0xe0] sm:$0xff] %vm1709, %v1670
      %1739 = vst.msk [vmem:[#allocation3 + $0xe8] sm:$0xff] %vm1709, %v1672
      %1740 = vst.msk [vmem:[#allocation3 + $0xf0] sm:$0xff] %vm1709, %v1674
      %1741 = vst.msk [vmem:[#allocation3 + $0xf8] sm:$0xff] %vm1709, %v1676
      %v1742 = vld [vmem:[%s1355 + $0x2] sm:$0xff]
      %v1743 = vld [vmem:[%s1355 + $0xa] sm:$0xff]
      %v1744 = vld [vmem:[%s1355 + $0x1a] sm:$0xff]
      %v1745 = vld [vmem:[%s1355 + $0x22] sm:$0xff]
      %v1746 = vld [vmem:[%s1355 + $0x32] sm:$0xff]
      %v1747 = vld [vmem:[%s1355 + $0x3a] sm:$0xff]
      %v1748 = vld [vmem:[%s1355 + $0x4a] sm:$0xff]
      %v1749 = vld [vmem:[%s1355 + $0x52] sm:$0xff]
      %v1750 = vld [vmem:[%s1355 + $0x62] sm:$0xff]
      %v1751 = vld [vmem:[%s1355 + $0x6a] sm:$0xff]
      %v1752 = vld [vmem:[%s1355 + $0x7a] sm:$0xff]
      %v1753 = vld [vmem:[%s1355 + $0x82] sm:$0xff]
      %v1754 = vld [vmem:[%s1355 + $0x92] sm:$0xff]
      %v1755 = vld [vmem:[%s1355 + $0x9a] sm:$0xff]
      %v1756 = vld [vmem:[%s1355 + $0xaa] sm:$0xff]
      %v1757 = vld [vmem:[%s1355 + $0xb2] sm:$0xff]
      %v1758 = vld [vmem:[%s1355 + $0xc2] sm:$0xff]
      %v1759 = vld [vmem:[%s1355 + $0xca] sm:$0xff]
      %v1760 = vld [vmem:[%s1355 + $0xda] sm:$0xff]
      %v1761 = vld [vmem:[%s1355 + $0xe2] sm:$0xff]
      %v1762 = vld [vmem:[%s1355 + $0xf2] sm:$0xff]
      %v1763 = vld [vmem:[%s1355 + $0xfa] sm:$0xff]
      %v1764 = vld [vmem:[%s1355 + $0x10a] sm:$0xff]
      %v1765 = vld [vmem:[%s1355 + $0x112] sm:$0xff]
      %v1766 = vld [vmem:[%s1355 + $0x122] sm:$0xff]
      %v1767 = vld [vmem:[%s1355 + $0x12a] sm:$0xff]
      %v1768 = vld [vmem:[%s1355 + $0x13a] sm:$0xff]
      %v1769 = vld [vmem:[%s1355 + $0x142] sm:$0xff]
      %v1770 = vld [vmem:[%s1355 + $0x152] sm:$0xff]
      %v1771 = vld [vmem:[%s1355 + $0x15a] sm:$0xff]
      %v1772 = vld [vmem:[%s1355 + $0x16a] sm:$0xff]
      %v1773 = vld [vmem:[%s1355 + $0x172] sm:$0xff]
      %1806 = vrot.lane.b32.xlu0 %v1742, 32
      %v1807 = vpop.permute.xlu0 %1806
      %1808 = vrot.lane.b32.xlu0 %v1743, 32
      %v1809 = vpop.permute.xlu0 %1808
      %1810 = vrot.lane.b32.xlu0 %v1744, 32
      %v1811 = vpop.permute.xlu0 %1810
      %1812 = vrot.lane.b32.xlu0 %v1745, 32
      %v1813 = vpop.permute.xlu0 %1812
      %1814 = vrot.lane.b32.xlu0 %v1746, 32
      %v1815 = vpop.permute.xlu0 %1814
      %1816 = vrot.lane.b32.xlu0 %v1747, 32
      %v1817 = vpop.permute.xlu0 %1816
      %1818 = vrot.lane.b32.xlu0 %v1748, 32
      %v1819 = vpop.permute.xlu0 %1818
      %1820 = vrot.lane.b32.xlu0 %v1749, 32
      %v1821 = vpop.permute.xlu0 %1820
      %1822 = vrot.lane.b32.xlu0 %v1750, 32
      %v1823 = vpop.permute.xlu0 %1822
      %1824 = vrot.lane.b32.xlu0 %v1751, 32
      %v1825 = vpop.permute.xlu0 %1824
      %1826 = vrot.lane.b32.xlu0 %v1752, 32
      %v1827 = vpop.permute.xlu0 %1826
      %1828 = vrot.lane.b32.xlu0 %v1753, 32
      %v1829 = vpop.permute.xlu0 %1828
      %1830 = vrot.lane.b32.xlu0 %v1754, 32
      %v1831 = vpop.permute.xlu0 %1830
      %1832 = vrot.lane.b32.xlu0 %v1755, 32
      %v1833 = vpop.permute.xlu0 %1832
      %1834 = vrot.lane.b32.xlu0 %v1756, 32
      %v1835 = vpop.permute.xlu0 %1834
      %1836 = vrot.lane.b32.xlu0 %v1757, 32
      %v1837 = vpop.permute.xlu0 %1836
      %1838 = vrot.lane.b32.xlu0 %v1758, 32
      %v1839 = vpop.permute.xlu0 %1838
      %1840 = vrot.lane.b32.xlu0 %v1759, 32
      %v1841 = vpop.permute.xlu0 %1840
      %1842 = vrot.lane.b32.xlu0 %v1760, 32
      %v1843 = vpop.permute.xlu0 %1842
      %1844 = vrot.lane.b32.xlu0 %v1761, 32
      %v1845 = vpop.permute.xlu0 %1844
      %1846 = vrot.lane.b32.xlu0 %v1762, 32
      %v1847 = vpop.permute.xlu0 %1846
      %1848 = vrot.lane.b32.xlu0 %v1763, 32
      %v1849 = vpop.permute.xlu0 %1848
      %1850 = vrot.lane.b32.xlu0 %v1764, 32
      %v1851 = vpop.permute.xlu0 %1850
      %1852 = vrot.lane.b32.xlu0 %v1765, 32
      %v1853 = vpop.permute.xlu0 %1852
      %1854 = vrot.lane.b32.xlu0 %v1766, 32
      %v1855 = vpop.permute.xlu0 %1854
      %1856 = vrot.lane.b32.xlu0 %v1767, 32
      %v1857 = vpop.permute.xlu0 %1856
      %1858 = vrot.lane.b32.xlu0 %v1768, 32
      %v1859 = vpop.permute.xlu0 %1858
      %1860 = vrot.lane.b32.xlu0 %v1769, 32
      %v1861 = vpop.permute.xlu0 %1860
      %1862 = vrot.lane.b32.xlu0 %v1770, 32
      %v1863 = vpop.permute.xlu0 %1862
      %1864 = vrot.lane.b32.xlu0 %v1771, 32
      %v1865 = vpop.permute.xlu0 %1864
      %1866 = vrot.lane.b32.xlu0 %v1772, 32
      %v1867 = vpop.permute.xlu0 %1866
      %1868 = vrot.lane.b32.xlu0 %v1773, 32
      %v1869 = vpop.permute.xlu0 %1868
      %vm1902 = vcmask 294144
      %1903 = vst.msk [vmem:[#allocation3] sm:$0xff] %vm1902, %v1807
      %1904 = vst.msk [vmem:[#allocation3 + $0x8] sm:$0xff] %vm1902, %v1809
      %1905 = vst.msk [vmem:[#allocation3 + $0x10] sm:$0xff] %vm1902, %v1811
      %1906 = vst.msk [vmem:[#allocation3 + $0x18] sm:$0xff] %vm1902, %v1813
      %1907 = vst.msk [vmem:[#allocation3 + $0x20] sm:$0xff] %vm1902, %v1815
      %1908 = vst.msk [vmem:[#allocation3 + $0x28] sm:$0xff] %vm1902, %v1817
      %1909 = vst.msk [vmem:[#allocation3 + $0x30] sm:$0xff] %vm1902, %v1819
      %1910 = vst.msk [vmem:[#allocation3 + $0x38] sm:$0xff] %vm1902, %v1821
      %1911 = vst.msk [vmem:[#allocation3 + $0x40] sm:$0xff] %vm1902, %v1823
      %1912 = vst.msk [vmem:[#allocation3 + $0x48] sm:$0xff] %vm1902, %v1825
      %1913 = vst.msk [vmem:[#allocation3 + $0x50] sm:$0xff] %vm1902, %v1827
      %1914 = vst.msk [vmem:[#allocation3 + $0x58] sm:$0xff] %vm1902, %v1829
      %1915 = vst.msk [vmem:[#allocation3 + $0x60] sm:$0xff] %vm1902, %v1831
      %1916 = vst.msk [vmem:[#allocation3 + $0x68] sm:$0xff] %vm1902, %v1833
      %1917 = vst.msk [vmem:[#allocation3 + $0x70] sm:$0xff] %vm1902, %v1835
      %1918 = vst.msk [vmem:[#allocation3 + $0x78] sm:$0xff] %vm1902, %v1837
      %1919 = vst.msk [vmem:[#allocation3 + $0x80] sm:$0xff] %vm1902, %v1839
      %1920 = vst.msk [vmem:[#allocation3 + $0x88] sm:$0xff] %vm1902, %v1841
      %1921 = vst.msk [vmem:[#allocation3 + $0x90] sm:$0xff] %vm1902, %v1843
      %1922 = vst.msk [vmem:[#allocation3 + $0x98] sm:$0xff] %vm1902, %v1845
      %1923 = vst.msk [vmem:[#allocation3 + $0xa0] sm:$0xff] %vm1902, %v1847
      %1924 = vst.msk [vmem:[#allocation3 + $0xa8] sm:$0xff] %vm1902, %v1849
      %1925 = vst.msk [vmem:[#allocation3 + $0xb0] sm:$0xff] %vm1902, %v1851
      %1926 = vst.msk [vmem:[#allocation3 + $0xb8] sm:$0xff] %vm1902, %v1853
      %1927 = vst.msk [vmem:[#allocation3 + $0xc0] sm:$0xff] %vm1902, %v1855
      %1928 = vst.msk [vmem:[#allocation3 + $0xc8] sm:$0xff] %vm1902, %v1857
      %1929 = vst.msk [vmem:[#allocation3 + $0xd0] sm:$0xff] %vm1902, %v1859
      %1930 = vst.msk [vmem:[#allocation3 + $0xd8] sm:$0xff] %vm1902, %v1861
      %1931 = vst.msk [vmem:[#allocation3 + $0xe0] sm:$0xff] %vm1902, %v1863
      %1932 = vst.msk [vmem:[#allocation3 + $0xe8] sm:$0xff] %vm1902, %v1865
      %1933 = vst.msk [vmem:[#allocation3 + $0xf0] sm:$0xff] %vm1902, %v1867
      %1934 = vst.msk [vmem:[#allocation3 + $0xf8] sm:$0xff] %vm1902, %v1869
      %v1935 = vld [vmem:[#allocation3] sm:$0xff]
      %v1936 = vld [vmem:[#allocation3 + $0x8] sm:$0xff]
      %v1937 = vld [vmem:[#allocation3 + $0x10] sm:$0xff]
      %v1938 = vld [vmem:[#allocation3 + $0x18] sm:$0xff]
      %v1939 = vld [vmem:[#allocation3 + $0x20] sm:$0xff]
      %v1940 = vld [vmem:[#allocation3 + $0x28] sm:$0xff]
      %v1941 = vld [vmem:[#allocation3 + $0x30] sm:$0xff]
      %v1942 = vld [vmem:[#allocation3 + $0x38] sm:$0xff]
      %v1943 = vld [vmem:[#allocation3 + $0x40] sm:$0xff]
      %v1944 = vld [vmem:[#allocation3 + $0x48] sm:$0xff]
      %v1945 = vld [vmem:[#allocation3 + $0x50] sm:$0xff]
      %v1946 = vld [vmem:[#allocation3 + $0x58] sm:$0xff]
      %v1947 = vld [vmem:[#allocation3 + $0x60] sm:$0xff]
      %v1948 = vld [vmem:[#allocation3 + $0x68] sm:$0xff]
      %v1949 = vld [vmem:[#allocation3 + $0x70] sm:$0xff]
      %v1950 = vld [vmem:[#allocation3 + $0x78] sm:$0xff]
      %v1951 = vld [vmem:[#allocation3 + $0x80] sm:$0xff]
      %v1952 = vld [vmem:[#allocation3 + $0x88] sm:$0xff]
      %v1953 = vld [vmem:[#allocation3 + $0x90] sm:$0xff]
      %v1954 = vld [vmem:[#allocation3 + $0x98] sm:$0xff]
      %v1955 = vld [vmem:[#allocation3 + $0xa0] sm:$0xff]
      %v1956 = vld [vmem:[#allocation3 + $0xa8] sm:$0xff]
      %v1957 = vld [vmem:[#allocation3 + $0xb0] sm:$0xff]
      %v1958 = vld [vmem:[#allocation3 + $0xb8] sm:$0xff]
      %v1959 = vld [vmem:[#allocation3 + $0xc0] sm:$0xff]
      %v1960 = vld [vmem:[#allocation3 + $0xc8] sm:$0xff]
      %v1961 = vld [vmem:[#allocation3 + $0xd0] sm:$0xff]
      %v1962 = vld [vmem:[#allocation3 + $0xd8] sm:$0xff]
      %v1963 = vld [vmem:[#allocation3 + $0xe0] sm:$0xff]
      %v1964 = vld [vmem:[#allocation3 + $0xe8] sm:$0xff]
      %v1965 = vld [vmem:[#allocation3 + $0xf0] sm:$0xff]
      %v1966 = vld [vmem:[#allocation3 + $0xf8] sm:$0xff]
      %v1967 = vld [vmem:[%s1] sm:$0xff]
      %v1968 = vld [vmem:[%s1 + $0x8] sm:$0xff]
      %v1969 = vld [vmem:[%s1 + $0x10] sm:$0xff]
      %v1970 = vld [vmem:[%s1 + $0x18] sm:$0xff]
      %v1971 = vld [vmem:[%s1 + $0x20] sm:$0xf]
      %vm1972 = vcmask 293888
      %v1974 = vsel %vm1972, %v1935, 0
      %v1977 = vsel %vm1972, %v1936, 0
      %v1980 = vsel %vm1972, %v1937, 0
      %v1983 = vsel %vm1972, %v1938, 0
      %v1986 = vsel %vm1972, %v1939, 0
      %v1989 = vsel %vm1972, %v1940, 0
      %v1992 = vsel %vm1972, %v1941, 0
      %v1995 = vsel %vm1972, %v1942, 0
      %v1998 = vsel %vm1972, %v1943, 0
      %v2001 = vsel %vm1972, %v1944, 0
      %v2004 = vsel %vm1972, %v1945, 0
      %v2007 = vsel %vm1972, %v1946, 0
      %v2010 = vsel %vm1972, %v1947, 0
      %v2013 = vsel %vm1972, %v1948, 0
      %v2016 = vsel %vm1972, %v1949, 0
      %v2019 = vsel %vm1972, %v1950, 0
      %v2022 = vsel %vm1972, %v1951, 0
      %v2025 = vsel %vm1972, %v1952, 0
      %v2028 = vsel %vm1972, %v1953, 0
      %v2031 = vsel %vm1972, %v1954, 0
      %v2034 = vsel %vm1972, %v1955, 0
      %v2037 = vsel %vm1972, %v1956, 0
      %v2040 = vsel %vm1972, %v1957, 0
      %v2043 = vsel %vm1972, %v1958, 0
      %v2046 = vsel %vm1972, %v1959, 0
      %v2049 = vsel %vm1972, %v1960, 0
      %v2052 = vsel %vm1972, %v1961, 0
      %v2055 = vsel %vm1972, %v1962, 0
      %v2058 = vsel %vm1972, %v1963, 0
      %v2061 = vsel %vm1972, %v1964, 0
      %v2064 = vsel %vm1972, %v1965, 0
      %v2067 = vsel %vm1972, %v1966, 0
      %vm2069 = vcmask 1043456
      %v2071 = vsel %vm2069, %v1971, 0
      %2073 = vmatpush.msra.mxu0 0.0
      %2074 = vmatpush.msra.mxu0 0.0
      %2075 = vmatpush.msra.mxu0 0.0
      %2076 = vmatpush.msra.mxu0 0.0
      %2077 = vmatpush.msra.mxu0 0.0
      %2078 = vmatpush.msra.mxu0 0.0
      %2079 = vmatpush.msra.mxu0 0.0
      %2080 = vmatpush.msra.mxu0 0.0
      %2081 = vmatpush.msra.mxu0 0.0
      %2082 = vmatpush.msra.mxu0 0.0
      %2083 = vmatpush.msra.mxu0 0.0
      %2084 = vmatpush.msra.mxu0 %v2071
      %2085 = vmatpush.msra.mxu0 %v1970
      %2086 = vmatpush.msra.mxu0 %v1969
      %2087 = vmatpush.msra.mxu0 %v1968
      %2088 = vmatpush.msra.mxu0 %v1967
      %2089 = vmatmul.f32.gmra.mxu0 %v1974
      %v2090 = vpop.f32.mrf.mxu0
      %v2091 = vadd.f32 0.0, %v2090
      %2092 = vmatmul.f32.gmra.mxu0 %v1977
      %v2093 = vpop.f32.mrf.mxu0
      %v2094 = vadd.f32 0.0, %v2093
      %2095 = vmatmul.f32.gmra.mxu0 %v1980
      %v2096 = vpop.f32.mrf.mxu0
      %v2097 = vadd.f32 0.0, %v2096
      %2098 = vmatmul.f32.gmra.mxu0 %v1983
      %v2099 = vpop.f32.mrf.mxu0
      %v2100 = vadd.f32 0.0, %v2099
      %2101 = vmatmul.f32.gmra.mxu0 %v1986
      %v2102 = vpop.f32.mrf.mxu0
      %v2103 = vadd.f32 0.0, %v2102
      %2104 = vmatmul.f32.gmra.mxu0 %v1989
      %v2105 = vpop.f32.mrf.mxu0
      %v2106 = vadd.f32 0.0, %v2105
      %2107 = vmatmul.f32.gmra.mxu0 %v1992
      %v2108 = vpop.f32.mrf.mxu0
      %v2109 = vadd.f32 0.0, %v2108
      %2110 = vmatmul.f32.gmra.mxu0 %v1995
      %v2111 = vpop.f32.mrf.mxu0
      %v2112 = vadd.f32 0.0, %v2111
      %2113 = vmatmul.f32.gmra.mxu0 %v1998
      %v2114 = vpop.f32.mrf.mxu0
      %v2115 = vadd.f32 0.0, %v2114
      %2116 = vmatmul.f32.gmra.mxu0 %v2001
      %v2117 = vpop.f32.mrf.mxu0
      %v2118 = vadd.f32 0.0, %v2117
      %2119 = vmatmul.f32.gmra.mxu0 %v2004
      %v2120 = vpop.f32.mrf.mxu0
      %v2121 = vadd.f32 0.0, %v2120
      %2122 = vmatmul.f32.gmra.mxu0 %v2007
      %v2123 = vpop.f32.mrf.mxu0
      %v2124 = vadd.f32 0.0, %v2123
      %2125 = vmatmul.f32.gmra.mxu0 %v2010
      %v2126 = vpop.f32.mrf.mxu0
      %v2127 = vadd.f32 0.0, %v2126
      %2128 = vmatmul.f32.gmra.mxu0 %v2013
      %v2129 = vpop.f32.mrf.mxu0
      %v2130 = vadd.f32 0.0, %v2129
      %2131 = vmatmul.f32.gmra.mxu0 %v2016
      %v2132 = vpop.f32.mrf.mxu0
      %v2133 = vadd.f32 0.0, %v2132
      %2134 = vmatmul.f32.gmra.mxu0 %v2019
      %v2135 = vpop.f32.mrf.mxu0
      %v2136 = vadd.f32 0.0, %v2135
      %2137 = vmatmul.f32.gmra.mxu0 %v2022
      %v2138 = vpop.f32.mrf.mxu0
      %v2139 = vadd.f32 0.0, %v2138
      %2140 = vmatmul.f32.gmra.mxu0 %v2025
      %v2141 = vpop.f32.mrf.mxu0
      %v2142 = vadd.f32 0.0, %v2141
      %2143 = vmatmul.f32.gmra.mxu0 %v2028
      %v2144 = vpop.f32.mrf.mxu0
      %v2145 = vadd.f32 0.0, %v2144
      %2146 = vmatmul.f32.gmra.mxu0 %v2031
      %v2147 = vpop.f32.mrf.mxu0
      %v2148 = vadd.f32 0.0, %v2147
      %2149 = vmatmul.f32.gmra.mxu0 %v2034
      %v2150 = vpop.f32.mrf.mxu0
      %v2151 = vadd.f32 0.0, %v2150
      %2152 = vmatmul.f32.gmra.mxu0 %v2037
      %v2153 = vpop.f32.mrf.mxu0
      %v2154 = vadd.f32 0.0, %v2153
      %2155 = vmatmul.f32.gmra.mxu0 %v2040
      %v2156 = vpop.f32.mrf.mxu0
      %v2157 = vadd.f32 0.0, %v2156
      %2158 = vmatmul.f32.gmra.mxu0 %v2043
      %v2159 = vpop.f32.mrf.mxu0
      %v2160 = vadd.f32 0.0, %v2159
      %2161 = vmatmul.f32.gmra.mxu0 %v2046
      %v2162 = vpop.f32.mrf.mxu0
      %v2163 = vadd.f32 0.0, %v2162
      %2164 = vmatmul.f32.gmra.mxu0 %v2049
      %v2165 = vpop.f32.mrf.mxu0
      %v2166 = vadd.f32 0.0, %v2165
      %2167 = vmatmul.f32.gmra.mxu0 %v2052
      %v2168 = vpop.f32.mrf.mxu0
      %v2169 = vadd.f32 0.0, %v2168
      %2170 = vmatmul.f32.gmra.mxu0 %v2055
      %v2171 = vpop.f32.mrf.mxu0
      %v2172 = vadd.f32 0.0, %v2171
      %2173 = vmatmul.f32.gmra.mxu0 %v2058
      %v2174 = vpop.f32.mrf.mxu0
      %v2175 = vadd.f32 0.0, %v2174
      %2176 = vmatmul.f32.gmra.mxu0 %v2061
      %v2177 = vpop.f32.mrf.mxu0
      %v2178 = vadd.f32 0.0, %v2177
      %2179 = vmatmul.f32.gmra.mxu0 %v2064
      %v2180 = vpop.f32.mrf.mxu0
      %v2181 = vadd.f32 0.0, %v2180
      %2182 = vmatmul.f32.gmra.mxu0 %v2067
      %v2183 = vpop.f32.mrf.mxu0
      %v2184 = vadd.f32 0.0, %v2183
      %2185 = vdwg.mxu0
      %2186 = vst.msk [vmem:[%s208] sm:$0xff] %vm215, %v2091
      %2187 = vst.msk [vmem:[%s208 + $0x8] sm:$0xff] %vm215, %v2094
      %2188 = vst.msk [vmem:[%s208 + $0x10] sm:$0xff] %vm215, %v2097
      %2189 = vst.msk [vmem:[%s208 + $0x18] sm:$0xff] %vm215, %v2100
      %2190 = vst.msk [vmem:[%s208 + $0x20] sm:$0xff] %vm215, %v2103
      %2191 = vst.msk [vmem:[%s208 + $0x28] sm:$0xff] %vm215, %v2106
      %2192 = vst.msk [vmem:[%s208 + $0x30] sm:$0xff] %vm215, %v2109
      %2193 = vst.msk [vmem:[%s208 + $0x38] sm:$0xff] %vm215, %v2112
      %2194 = vst.msk [vmem:[%s208 + $0x40] sm:$0xff] %vm215, %v2115
      %2195 = vst.msk [vmem:[%s208 + $0x48] sm:$0xff] %vm215, %v2118
      %2196 = vst.msk [vmem:[%s208 + $0x50] sm:$0xff] %vm215, %v2121
      %2197 = vst.msk [vmem:[%s208 + $0x58] sm:$0xff] %vm215, %v2124
      %2198 = vst.msk [vmem:[%s208 + $0x60] sm:$0xff] %vm215, %v2127
      %2199 = vst.msk [vmem:[%s208 + $0x68] sm:$0xff] %vm215, %v2130
      %2200 = vst.msk [vmem:[%s208 + $0x70] sm:$0xff] %vm215, %v2133
      %2201 = vst.msk [vmem:[%s208 + $0x78] sm:$0xff] %vm215, %v2136
      %2202 = vst.msk [vmem:[%s208 + $0x80] sm:$0xff] %vm215, %v2139
      %2203 = vst.msk [vmem:[%s208 + $0x88] sm:$0xff] %vm215, %v2142
      %2204 = vst.msk [vmem:[%s208 + $0x90] sm:$0xff] %vm215, %v2145
      %2205 = vst.msk [vmem:[%s208 + $0x98] sm:$0xff] %vm215, %v2148
      %2206 = vst.msk [vmem:[%s208 + $0xa0] sm:$0xff] %vm215, %v2151
      %2207 = vst.msk [vmem:[%s208 + $0xa8] sm:$0xff] %vm215, %v2154
      %2208 = vst.msk [vmem:[%s208 + $0xb0] sm:$0xff] %vm215, %v2157
      %2209 = vst.msk [vmem:[%s208 + $0xb8] sm:$0xff] %vm215, %v2160
      %2210 = vst.msk [vmem:[%s208 + $0xc0] sm:$0xff] %vm215, %v2163
      %2211 = vst.msk [vmem:[%s208 + $0xc8] sm:$0xff] %vm215, %v2166
      %2212 = vst.msk [vmem:[%s208 + $0xd0] sm:$0xff] %vm215, %v2169
      %2213 = vst.msk [vmem:[%s208 + $0xd8] sm:$0xff] %vm215, %v2172
      %2214 = vst.msk [vmem:[%s208 + $0xe0] sm:$0xff] %vm215, %v2175
      %2215 = vst.msk [vmem:[%s208 + $0xe8] sm:$0xff] %vm215, %v2178
      %2216 = vst.msk [vmem:[%s208 + $0xf0] sm:$0xff] %vm215, %v2181
      %2217 = vst.msk [vmem:[%s208 + $0xf8] sm:$0xff] %vm215, %v2184
      %v2218 = vsel %vm215, %v2091, 0.0
      %v2219 = vsel %vm215, %v2094, 0.0
      %v2220 = vadd.f32 %v2218, %v2219
      %v2221 = vsel %vm215, %v2097, 0.0
      %v2222 = vadd.f32 %v2220, %v2221
      %v2223 = vsel %vm215, %v2100, 0.0
      %v2224 = vadd.f32 %v2222, %v2223
      %v2225 = vsel %vm215, %v2103, 0.0
      %v2226 = vadd.f32 %v2224, %v2225
      %v2227 = vsel %vm215, %v2106, 0.0
      %v2228 = vadd.f32 %v2226, %v2227
      %v2229 = vsel %vm215, %v2109, 0.0
      %v2230 = vadd.f32 %v2228, %v2229
      %v2231 = vsel %vm215, %v2112, 0.0
      %v2232 = vadd.f32 %v2230, %v2231
      %v2233 = vsel %vm215, %v2115, 0.0
      %v2234 = vadd.f32 %v2232, %v2233
      %v2235 = vsel %vm215, %v2118, 0.0
      %v2236 = vadd.f32 %v2234, %v2235
      %v2237 = vsel %vm215, %v2121, 0.0
      %v2238 = vadd.f32 %v2236, %v2237
      %v2239 = vsel %vm215, %v2124, 0.0
      %v2240 = vadd.f32 %v2238, %v2239
      %v2241 = vsel %vm215, %v2127, 0.0
      %v2242 = vadd.f32 %v2240, %v2241
      %v2243 = vsel %vm215, %v2130, 0.0
      %v2244 = vadd.f32 %v2242, %v2243
      %v2245 = vsel %vm215, %v2133, 0.0
      %v2246 = vadd.f32 %v2244, %v2245
      %v2247 = vsel %vm215, %v2136, 0.0
      %v2248 = vadd.f32 %v2246, %v2247
      %v2249 = vsel %vm215, %v2139, 0.0
      %v2250 = vadd.f32 %v2248, %v2249
      %v2251 = vsel %vm215, %v2142, 0.0
      %v2252 = vadd.f32 %v2250, %v2251
      %v2253 = vsel %vm215, %v2145, 0.0
      %v2254 = vadd.f32 %v2252, %v2253
      %v2255 = vsel %vm215, %v2148, 0.0
      %v2256 = vadd.f32 %v2254, %v2255
      %v2257 = vsel %vm215, %v2151, 0.0
      %v2258 = vadd.f32 %v2256, %v2257
      %v2259 = vsel %vm215, %v2154, 0.0
      %v2260 = vadd.f32 %v2258, %v2259
      %v2261 = vsel %vm215, %v2157, 0.0
      %v2262 = vadd.f32 %v2260, %v2261
      %v2263 = vsel %vm215, %v2160, 0.0
      %v2264 = vadd.f32 %v2262, %v2263
      %v2265 = vsel %vm215, %v2163, 0.0
      %v2266 = vadd.f32 %v2264, %v2265
      %v2267 = vsel %vm215, %v2166, 0.0
      %v2268 = vadd.f32 %v2266, %v2267
      %v2269 = vsel %vm215, %v2169, 0.0
      %v2270 = vadd.f32 %v2268, %v2269
      %v2271 = vsel %vm215, %v2172, 0.0
      %v2272 = vadd.f32 %v2270, %v2271
      %v2273 = vsel %vm215, %v2175, 0.0
      %v2274 = vadd.f32 %v2272, %v2273
      %v2275 = vsel %vm215, %v2178, 0.0
      %v2276 = vadd.f32 %v2274, %v2275
      %v2277 = vsel %vm215, %v2181, 0.0
      %v2278 = vadd.f32 %v2276, %v2277
      %v2279 = vsel %vm215, %v2184, 0.0
      %v2280 = vadd.f32 %v2278, %v2279
      %v2281 = vrot.slane %v2280, 4
      %v2282 = vadd.f32 %v2280, %v2281
      %v2283 = vrot.slane %v2282, 2
      %v2284 = vadd.f32 %v2282, %v2283
      %v2285 = vrot.slane %v2284, 1
      %v2286 = vadd.f32 %v2284, %v2285
      %2287 = vst.msk [vmem:[%s211] sm:$0x1] %vm224, %v2286
      %v2288 = vmul.f32 %v2091, %v2091
      %v2289 = vmul.f32 %v2094, %v2094
      %v2290 = vmul.f32 %v2097, %v2097
      %v2291 = vmul.f32 %v2100, %v2100
      %v2292 = vmul.f32 %v2103, %v2103
      %v2293 = vmul.f32 %v2106, %v2106
      %v2294 = vmul.f32 %v2109, %v2109
      %v2295 = vmul.f32 %v2112, %v2112
      %v2296 = vmul.f32 %v2115, %v2115
      %v2297 = vmul.f32 %v2118, %v2118
      %v2298 = vmul.f32 %v2121, %v2121
      %v2299 = vmul.f32 %v2124, %v2124
      %v2300 = vmul.f32 %v2127, %v2127
      %v2301 = vmul.f32 %v2130, %v2130
      %v2302 = vmul.f32 %v2133, %v2133
      %v2303 = vmul.f32 %v2136, %v2136
      %v2304 = vmul.f32 %v2139, %v2139
      %v2305 = vmul.f32 %v2142, %v2142
      %v2306 = vmul.f32 %v2145, %v2145
      %v2307 = vmul.f32 %v2148, %v2148
      %v2308 = vmul.f32 %v2151, %v2151
      %v2309 = vmul.f32 %v2154, %v2154
      %v2310 = vmul.f32 %v2157, %v2157
      %v2311 = vmul.f32 %v2160, %v2160
      %v2312 = vmul.f32 %v2163, %v2163
      %v2313 = vmul.f32 %v2166, %v2166
      %v2314 = vmul.f32 %v2169, %v2169
      %v2315 = vmul.f32 %v2172, %v2172
      %v2316 = vmul.f32 %v2175, %v2175
      %v2317 = vmul.f32 %v2178, %v2178
      %v2318 = vmul.f32 %v2181, %v2181
      %v2319 = vmul.f32 %v2184, %v2184
      %v2320 = vsel %vm215, %v2288, 0.0
      %v2321 = vsel %vm215, %v2289, 0.0
      %v2322 = vadd.f32 %v2320, %v2321
      %v2323 = vsel %vm215, %v2290, 0.0
      %v2324 = vadd.f32 %v2322, %v2323
      %v2325 = vsel %vm215, %v2291, 0.0
      %v2326 = vadd.f32 %v2324, %v2325
      %v2327 = vsel %vm215, %v2292, 0.0
      %v2328 = vadd.f32 %v2326, %v2327
      %v2329 = vsel %vm215, %v2293, 0.0
      %v2330 = vadd.f32 %v2328, %v2329
      %v2331 = vsel %vm215, %v2294, 0.0
      %v2332 = vadd.f32 %v2330, %v2331
      %v2333 = vsel %vm215, %v2295, 0.0
      %v2334 = vadd.f32 %v2332, %v2333
      %v2335 = vsel %vm215, %v2296, 0.0
      %v2336 = vadd.f32 %v2334, %v2335
      %v2337 = vsel %vm215, %v2297, 0.0
      %v2338 = vadd.f32 %v2336, %v2337
      %v2339 = vsel %vm215, %v2298, 0.0
      %v2340 = vadd.f32 %v2338, %v2339
      %v2341 = vsel %vm215, %v2299, 0.0
      %v2342 = vadd.f32 %v2340, %v2341
      %v2343 = vsel %vm215, %v2300, 0.0
      %v2344 = vadd.f32 %v2342, %v2343
      %v2345 = vsel %vm215, %v2301, 0.0
      %v2346 = vadd.f32 %v2344, %v2345
      %v2347 = vsel %vm215, %v2302, 0.0
      %v2348 = vadd.f32 %v2346, %v2347
      %v2349 = vsel %vm215, %v2303, 0.0
      %v2350 = vadd.f32 %v2348, %v2349
      %v2351 = vsel %vm215, %v2304, 0.0
      %v2352 = vadd.f32 %v2350, %v2351
      %v2353 = vsel %vm215, %v2305, 0.0
      %v2354 = vadd.f32 %v2352, %v2353
      %v2355 = vsel %vm215, %v2306, 0.0
      %v2356 = vadd.f32 %v2354, %v2355
      %v2357 = vsel %vm215, %v2307, 0.0
      %v2358 = vadd.f32 %v2356, %v2357
      %v2359 = vsel %vm215, %v2308, 0.0
      %v2360 = vadd.f32 %v2358, %v2359
      %v2361 = vsel %vm215, %v2309, 0.0
      %v2362 = vadd.f32 %v2360, %v2361
      %v2363 = vsel %vm215, %v2310, 0.0
      %v2364 = vadd.f32 %v2362, %v2363
      %v2365 = vsel %vm215, %v2311, 0.0
      %v2366 = vadd.f32 %v2364, %v2365
      %v2367 = vsel %vm215, %v2312, 0.0
      %v2368 = vadd.f32 %v2366, %v2367
      %v2369 = vsel %vm215, %v2313, 0.0
      %v2370 = vadd.f32 %v2368, %v2369
      %v2371 = vsel %vm215, %v2314, 0.0
      %v2372 = vadd.f32 %v2370, %v2371
      %v2373 = vsel %vm215, %v2315, 0.0
      %v2374 = vadd.f32 %v2372, %v2373
      %v2375 = vsel %vm215, %v2316, 0.0
      %v2376 = vadd.f32 %v2374, %v2375
      %v2377 = vsel %vm215, %v2317, 0.0
      %v2378 = vadd.f32 %v2376, %v2377
      %v2379 = vsel %vm215, %v2318, 0.0
      %v2380 = vadd.f32 %v2378, %v2379
      %v2381 = vsel %vm215, %v2319, 0.0
      %v2382 = vadd.f32 %v2380, %v2381
      %v2383 = vrot.slane %v2382, 4
      %v2384 = vadd.f32 %v2382, %v2383
      %v2385 = vrot.slane %v2384, 2
      %v2386 = vadd.f32 %v2384, %v2385
      %v2387 = vrot.slane %v2386, 1
      %v2388 = vadd.f32 %v2386, %v2387
      %2389 = vst.msk [vmem:[%s214] sm:$0x1] %vm224, %v2388
      %p2390 = scmp.lt.s32.totalorder %s16, 1
      %s2391 = scalar_select %p2390, %s16, 1
      %s2392 = smul.addr %s2391, 32
      %s2393 = smul.addr %s2392, 8
      %s2394 = scalar_lea.vmem %s2, %s2393
      %p2395 = scmp.lt.s32.totalorder %s16, 1
      %s2396 = scalar_select %p2395, %s16, 1
      %s2397 = scalar_lea.vmem %s3, %s2396
      %p2398 = scmp.lt.s32.totalorder %s16, 1
      %s2399 = scalar_select %p2398, %s16, 1
      %s2400 = scalar_lea.vmem %s4, %s2399
      // Predicated region
      $region29: #{residual_conv_block.3} parent=27 // pred_check
        %p2401 = pneg %p81
      $region30: #{residual_conv_block.3} parent=27 // pred_check_branch
        %2403 = sbr.rel (%p2401) target = $region32
      $region31: #{residual_conv_block.3} parent=27 // pred_region
        _
      $region32: #{residual_conv_block.3} parent=27 // pred_fallthru
        _
      // Predicated region
      $region33: #{residual_conv_block.3} parent=27 // pred_check
        %p2404 = pneg %p107
      $region34: #{residual_conv_block.3} parent=27 // pred_check_branch
        %2406 = sbr.rel (%p2404) target = $region36
      $region35: #{residual_conv_block.3} parent=27 // pred_region
        _
      $region36: #{residual_conv_block.3} parent=27 // pred_fallthru
        _
      // Predicated region
      $region37: #{residual_conv_block.3} parent=27 // pred_check
        %p2407 = pneg %p133
      $region38: #{residual_conv_block.3} parent=27 // pred_check_branch
        %2409 = sbr.rel (%p2407) target = $region40
      $region39: #{residual_conv_block.3} parent=27 // pred_region
        _
      $region40: #{residual_conv_block.3} parent=27 // pred_fallthru
        _
    $region28: #{residual_conv_block.3} parent=5 // pred_fallthru
      _
    %p2410 = scmp.le.s32.totalorder 2, %s11
    // Predicated region
    $region41: #{residual_conv_block.3} parent=5 // pred_check
      %p2411 = pneg %p2410
    $region42: #{residual_conv_block.3} parent=5 // pred_check_branch
      %2413 = sbr.rel (%p2411) target = $region44
    $region43: #{residual_conv_block.3} parent=5 // pred_region
      %s2414 = ssub.s32 %s11, 2
      // Predicated region
      $region45: #{residual_conv_block.3} parent=43 // pred_check
        %p2415 = pneg %p87
      $region46: #{residual_conv_block.3} parent=43 // pred_check_branch
        %2417 = sbr.rel (%p2415) target = $region48
      $region47: #{residual_conv_block.3} parent=43 // pred_region
        %p2418 = scmp.lt.s32.totalorder %s17, 1
        %s2419 = scalar_select %p2418, %s17, 1
        %s2420 = smul.addr %s2419, 32
        %s2421 = smul.addr %s2420, 8
        %s2422 = scalar_lea.vmem %s2, %s2421
      $region48: #{residual_conv_block.3} parent=43 // pred_fallthru
        _
      // Predicated region
      $region49: #{residual_conv_block.3} parent=43 // pred_check
        %p2423 = pneg %p113
      $region50: #{residual_conv_block.3} parent=43 // pred_check_branch
        %2425 = sbr.rel (%p2423) target = $region52
      $region51: #{residual_conv_block.3} parent=43 // pred_region
        %p2426 = scmp.lt.s32.totalorder %s17, 1
        %s2427 = scalar_select %p2426, %s17, 1
        %s2428 = scalar_lea.vmem %s3, %s2427
      $region52: #{residual_conv_block.3} parent=43 // pred_fallthru
        _
      // Predicated region
      $region53: #{residual_conv_block.3} parent=43 // pred_check
        %p2429 = pneg %p139
      $region54: #{residual_conv_block.3} parent=43 // pred_check_branch
        %2431 = sbr.rel (%p2429) target = $region56
      $region55: #{residual_conv_block.3} parent=43 // pred_region
        %p2432 = scmp.lt.s32.totalorder %s17, 1
        %s2433 = scalar_select %p2432, %s17, 1
        %s2434 = scalar_lea.vmem %s4, %s2433
      $region56: #{residual_conv_block.3} parent=43 // pred_fallthru
        _
    $region44: #{residual_conv_block.3} parent=5 // pred_fallthru
      _
  $region6: #{residual_conv_block.3} parent=0 // loop_footer
    %s15 = sadd.s32 1, %s11
  $region7: #{residual_conv_block.3} parent=0 // loop_footer_branch
    %10 = sbr.rel target = $region3
  $region8: #{residual_conv_block.3} parent=0 // loop_exit
    _

// kernel: residual_conv_block.4
$region0: #{residual_conv_block.4}
  #allocation0 [shape = 'u32[]', space=smem, size = 0x4, offset = 0x4, fixed_abs, tag = 'smem constant byte address 0x4 - core index']
  #allocation1 [shape = 'u32[72,128]{1,0:T(1,128)}', space=vmem, size = 0x9000, scoped, tag = 'internal scratch']
  #allocation2 [shape = 'f32[18,18,4]{2,1,0:T(8,128)}', space=vmem, size = 0x36000, scoped, tag = 'scratch operand']
  #allocation3 [shape = 'f32[256,36]{1,0:T(8,128)}', space=vmem, size = 0x20000, scoped, tag = 'scratch operand']
  %s0 = inlined_call_operand.vmem [shape: f32[2,16,16,4], index: 0, kind: input, shape index: {}]
  %s1 = inlined_call_operand.vmem [shape: f32[36,4], index: 1, kind: input, shape index: {}]
  %s2 = inlined_call_operand.vmem [shape: f32[1,4], index: 2, kind: input, shape index: {}]
  %s3 = inlined_call_operand.vmem [shape: f32[1,4], index: 3, kind: input, shape index: {}]
  %s4 = inlined_call_operand.vmem [shape: f32[1,4], index: 4, kind: input, shape index: {}]
  %s5 = inlined_call_operand.vmem [shape: f32[2,16,16,4], index: 5, kind: output, shape index: {0}]
  %s6 = inlined_call_operand.vmem [shape: f32[2,1,4], index: 6, kind: output, shape index: {1}]
  %s7 = inlined_call_operand.vmem [shape: f32[2,1,4], index: 7, kind: output, shape index: {2}]
  %8 = xla_tuple %s5, %s6, %s7
  %s9 = sld [smem:[#allocation0]]
  $region69: #{residual_conv_block.4} parent=0
    _
  %s11 = ssub.s32 1, %s9
  %s12 = scalar_select 0, %s11, %s9
  loop: start=0, step=1, limit=4
  $region2: #{residual_conv_block.4} parent=0 // loop_pre_header
    _
  $region3: #{residual_conv_block.4} parent=0 // loop_header
    %s14 = sphi 0, %s18
    %p15 = scmp.ge.s32.totalorder %s14, 4
    %s24 = sphi 0, %s26
    %s27 = sphi 0, %s24
    %s28 = sphi 0, %s27
    %s44 = sphi 0, %s28
    %s48 = sphi 0, %s48
    %s50 = sphi 0, %s48
    %s51 = sphi 0, %s50
    %s65 = sphi 0, %s51
    %s69 = sphi 0, %s69
    %s71 = sphi 0, %s69
    %s72 = sphi 0, %s71
    %s86 = sphi 0, %s72
    %s90 = sphi 0, %s90
    %s92 = sphi 0, %s90
    %s93 = sphi 0, %s92
    %s107 = sphi 0, %s93
    %s111 = sphi 0, %s111
    %s113 = sphi 0, %s111
    %s114 = sphi 0, %s113
    %s128 = sphi 0, %s114
    %s134 = sphi 0, %s136
    %s137 = sphi 0, %s134
    %s138 = sphi 0, %s137
    %s154 = sphi 0, %s138
    %s160 = sphi 0, %s162
    %s163 = sphi 0, %s160
    %s164 = sphi 0, %s163
    %s180 = sphi 0, %s164
    %s186 = sphi 0, %s188
    %s189 = sphi 0, %s186
    %s190 = sphi 0, %s189
    %s206 = sphi 0, %s190
  $region4: #{residual_conv_block.4} parent=0 // loop_header_branch
    %17 = sbr.rel (%p15) target = $region8
  $region5: #{residual_conv_block.4} parent=0 // loop_body
    %s19 = ssub.s32 %s14, 1
    %s20 = ssub.s32 %s14, 2
    %s21 = sadd.s32 %s14, 1
    %s22 = ssub.s32 %s14, %s21
    %p23 = scmp.eq.s32.totalorder %s22, 0
    %s25 = sadd.s32 %s24, 1
    %s26 = scalar_select %p23, %s24, %s25
    %p29 = pneg %p23
    %p30 = scmp.eq.s32.totalorder %s14, 1
    %p31 = por %p29, %p30
    %p32 = scmp.ne.s32.totalorder %s24, %s27
    %p33 = scmp.eq.s32.totalorder %s14, 0
    %p34 = por %p32, %p33
    %p35 = scmp.ne.s32.totalorder %s24, %s27
    %p36 = scmp.eq.s32.totalorder %s19, 1
    %p37 = por %p35, %p36
    %p38 = scmp.ne.s32.totalorder %s27, %s28
    %p39 = scmp.eq.s32.totalorder %s19, 0
    %p40 = por %p38, %p39
    %p41 = scmp.ne.s32.totalorder %s27, %s28
    %p42 = scmp.eq.s32.totalorder %s20, 1
    %p43 = por %p41, %p42
    %p45 = scmp.ne.s32.totalorder %s28, %s44
    %p46 = scmp.eq.s32.totalorder %s20, 0
    %p47 = por %p45, %p46
    %s49 = sadd.s32 %s48, 1
    %p52 = scmp.eq.s32.totalorder %s14, 1
    %p53 = scmp.ne.s32.totalorder %s48, %s50
    %p54 = scmp.eq.s32.totalorder %s14, 0
    %p55 = por %p53, %p54
    %p56 = scmp.ne.s32.totalorder %s48, %s50
    %p57 = scmp.eq.s32.totalorder %s19, 1
    %p58 = por %p56, %p57
    %p59 = scmp.ne.s32.totalorder %s50, %s51
    %p60 = scmp.eq.s32.totalorder %s19, 0
    %p61 = por %p59, %p60
    %p62 = scmp.ne.s32.totalorder %s50, %s51
    %p63 = scmp.eq.s32.totalorder %s20, 1
    %p64 = por %p62, %p63
    %p66 = scmp.ne.s32.totalorder %s51, %s65
    %p67 = scmp.eq.s32.totalorder %s20, 0
    %p68 = por %p66, %p67
    %s70 = sadd.s32 %s69, 1
    %p73 = scmp.eq.s32.totalorder %s14, 1
    %p74 = scmp.ne.s32.totalorder %s69, %s71
    %p75 = scmp.eq.s32.totalorder %s14, 0
    %p76 = por %p74, %p75
    %p77 = scmp.ne.s32.totalorder %s69, %s71
    %p78 = scmp.eq.s32.totalorder %s19, 1
    %p79 = por %p77, %p78
    %p80 = scmp.ne.s32.totalorder %s71, %s72
    %p81 = scmp.eq.s32.totalorder %s19, 0
    %p82 = por %p80, %p81
    %p83 = scmp.ne.s32.totalorder %s71, %s72
    %p84 = scmp.eq.s32.totalorder %s20, 1
    %p85 = por %p83, %p84
    %p87 = scmp.ne.s32.totalorder %s72, %s86
    %p88 = scmp.eq.s32.totalorder %s20, 0
    %p89 = por %p87, %p88
    %s91 = sadd.s32 %s90, 1
    %p94 = scmp.eq.s32.totalorder %s14, 1
    %p95 = scmp.ne.s32.totalorder %s90, %s92
    %p96 = scmp.eq.s32.totalorder %s14, 0
    %p97 = por %p95, %p96
    %p98 = scmp.ne.s32.totalorder %s90, %s92
    %p99 = scmp.eq.s32.totalorder %s19, 1
    %p100 = por %p98, %p99
    %p101 = scmp.ne.s32.totalorder %s92, %s93
    %p102 = scmp.eq.s32.totalorder %s19, 0
    %p103 = por %p101, %p102
    %p104 = scmp.ne.s32.totalorder %s92, %s93
    %p105 = scmp.eq.s32.totalorder %s20, 1
    %p106 = por %p104, %p105
    %p108 = scmp.ne.s32.totalorder %s93, %s107
    %p109 = scmp.eq.s32.totalorder %s20, 0
    %p110 = por %p108, %p109
    %s112 = sadd.s32 %s111, 1
    %p115 = scmp.eq.s32.totalorder %s14, 1
    %p116 = scmp.ne.s32.totalorder %s111, %s113
    %p117 = scmp.eq.s32.totalorder %s14, 0
    %p118 = por %p116, %p117
    %p119 = scmp.ne.s32.totalorder %s111, %s113
    %p120 = scmp.eq.s32.totalorder %s19, 1
    %p121 = por %p119, %p120
    %p122 = scmp.ne.s32.totalorder %s113, %s114
    %p123 = scmp.eq.s32.totalorder %s19, 0
    %p124 = por %p122, %p123
    %p125 = scmp.ne.s32.totalorder %s113, %s114
    %p126 = scmp.eq.s32.totalorder %s20, 1
    %p127 = por %p125, %p126
    %p129 = scmp.ne.s32.totalorder %s114, %s128
    %p130 = scmp.eq.s32.totalorder %s20, 0
    %p131 = por %p129, %p130
    %s132 = ssub.s32 %s14, %s21
    %p133 = scmp.eq.s32.totalorder %s132, 0
    %s135 = sadd.s32 %s134, 1
    %s136 = scalar_select %p133, %s134, %s135
    %p139 = pneg %p133
    %p140 = scmp.eq.s32.totalorder %s14, 1
    %p141 = por %p139, %p140
    %p142 = scmp.ne.s32.totalorder %s134, %s137
    %p143 = scmp.eq.s32.totalorder %s14, 0
    %p144 = por %p142, %p143
    %p145 = scmp.ne.s32.totalorder %s134, %s137
    %p146 = scmp.eq.s32.totalorder %s19, 1
    %p147 = por %p145, %p146
    %p148 = scmp.ne.s32.totalorder %s137, %s138
    %p149 = scmp.eq.s32.totalorder %s19, 0
    %p150 = por %p148, %p149
    %p151 = scmp.ne.s32.totalorder %s137, %s138
    %p152 = scmp.eq.s32.totalorder %s20, 1
    %p153 = por %p151, %p152
    %p155 = scmp.ne.s32.totalorder %s138, %s154
    %p156 = scmp.eq.s32.totalorder %s20, 0
    %p157 = por %p155, %p156
    %s158 = ssub.s32 %s14, %s21
    %p159 = scmp.eq.s32.totalorder %s158, 0
    %s161 = sadd.s32 %s160, 1
    %s162 = scalar_select %p159, %s160, %s161
    %p165 = pneg %p159
    %p166 = scmp.eq.s32.totalorder %s14, 1
    %p167 = por %p165, %p166
    %p168 = scmp.ne.s32.totalorder %s160, %s163
    %p169 = scmp.eq.s32.totalorder %s14, 0
    %p170 = por %p168, %p169
    %p171 = scmp.ne.s32.totalorder %s160, %s163
    %p172 = scmp.eq.s32.totalorder %s19, 1
    %p173 = por %p171, %p172
    %p174 = scmp.ne.s32.totalorder %s163, %s164
    %p175 = scmp.eq.s32.totalorder %s19, 0
    %p176 = por %p174, %p175
    %p177 = scmp.ne.s32.totalorder %s163, %s164
    %p178 = scmp.eq.s32.totalorder %s20, 1
    %p179 = por %p177, %p178
    %p181 = scmp.ne.s32.totalorder %s164, %s180
    %p182 = scmp.eq.s32.totalorder %s20, 0
    %p183 = por %p181, %p182
    %s184 = ssub.s32 %s14, %s21
    %p185 = scmp.eq.s32.totalorder %s184, 0
    %s187 = sadd.s32 %s186, 1
    %s188 = scalar_select %p185, %s186, %s187
    %p191 = pneg %p185
    %p192 = scmp.eq.s32.totalorder %s14, 1
    %p193 = por %p191, %p192
    %p194 = scmp.ne.s32.totalorder %s186, %s189
    %p195 = scmp.eq.s32.totalorder %s14, 0
    %p196 = por %p194, %p195
    %p197 = scmp.ne.s32.totalorder %s186, %s189
    %p198 = scmp.eq.s32.totalorder %s19, 1
    %p199 = por %p197, %p198
    %p200 = scmp.ne.s32.totalorder %s189, %s190
    %p201 = scmp.eq.s32.totalorder %s19, 0
    %p202 = por %p200, %p201
    %p203 = scmp.ne.s32.totalorder %s189, %s190
    %p204 = scmp.eq.s32.totalorder %s20, 1
    %p205 = por %p203, %p204
    %p207 = scmp.ne.s32.totalorder %s190, %s206
    %p208 = scmp.eq.s32.totalorder %s20, 0
    %p209 = por %p207, %p208
    %p210 = scmp.le.s32.totalorder 1, %s14
    %p211 = scmp.lt.s32.totalorder %s14, 3
    %p212 = pnand %p210, %p211
    %p213 = pneg %p212
    // Predicated region
    $region9: #{residual_conv_block.4} parent=5 // pred_check
      _
    $region10: #{residual_conv_block.4} parent=5 // pred_check_branch
      %215 = sbr.rel (%p212) target = $region12
    $region11: #{residual_conv_block.4} parent=5 // pred_region
      %s216 = ssub.s32 %s14, 1
      // Predicated region
      $region13: #{residual_conv_block.4} parent=11 // pred_check
        %p217 = pneg %p61
      $region14: #{residual_conv_block.4} parent=11 // pred_check_branch
        %219 = sbr.rel (%p217) target = $region16
      $region15: #{residual_conv_block.4} parent=11 // pred_region
        _
      $region16: #{residual_conv_block.4} parent=11 // pred_fallthru
        _
      // Predicated region
      $region17: #{residual_conv_block.4} parent=11 // pred_check
        %p220 = pneg %p82
      $region18: #{residual_conv_block.4} parent=11 // pred_check_branch
        %222 = sbr.rel (%p220) target = $region20
      $region19: #{residual_conv_block.4} parent=11 // pred_region
        _
      $region20: #{residual_conv_block.4} parent=11 // pred_fallthru
        _
      // Predicated region
      $region21: #{residual_conv_block.4} parent=11 // pred_check
        %p223 = pneg %p103
      $region22: #{residual_conv_block.4} parent=11 // pred_check_branch
        %225 = sbr.rel (%p223) target = $region24
      $region23: #{residual_conv_block.4} parent=11 // pred_region
        _
      $region24: #{residual_conv_block.4} parent=11 // pred_fallthru
        _
      // Predicated region
      $region25: #{residual_conv_block.4} parent=11 // pred_check
        %p226 = pneg %p124
      $region26: #{residual_conv_block.4} parent=11 // pred_check_branch
        %228 = sbr.rel (%p226) target = $region28
      $region27: #{residual_conv_block.4} parent=11 // pred_region
        _
      $region28: #{residual_conv_block.4} parent=11 // pred_fallthru
        _
    $region12: #{residual_conv_block.4} parent=5 // pred_fallthru
      _
    %p229 = scmp.lt.s32.totalorder %s14, 2
    // Predicated region
    $region29: #{residual_conv_block.4} parent=5 // pred_check
      %p230 = pneg %p229
    $region30: #{residual_conv_block.4} parent=5 // pred_check_branch
      %232 = sbr.rel (%p230) target = $region32
    $region31: #{residual_conv_block.4} parent=5 // pred_region
      // Predicated region
      $region33: #{residual_conv_block.4} parent=31 // pred_check
        %p233 = pneg %p34
      $region34: #{residual_conv_block.4} parent=31 // pred_check_branch
        %235 = sbr.rel (%p233) target = $region36
      $region35: #{residual_conv_block.4} parent=31 // pred_region
        %p236 = scmp.lt.s32.totalorder %s14, 1
        %s237 = scalar_select %p236, %s14, 1
        %s238 = smul.addr %s237, 32
        %s239 = smul.addr %s238, 8
        %s240 = scalar_lea.vmem %s0, %s239
      $region36: #{residual_conv_block.4} parent=31 // pred_fallthru
        _
    $region32: #{residual_conv_block.4} parent=5 // pred_fallthru
      _
    %p241 = scmp.le.s32.totalorder 1, %s14
    %p242 = scmp.lt.s32.totalorder %s14, 3
    %p243 = pnand %p241, %p242
    %p244 = pneg %p243
    // Predicated region
    $region37: #{residual_conv_block.4} parent=5 // pred_check
      _
    $region38: #{residual_conv_block.4} parent=5 // pred_check_branch
      %246 = sbr.rel (%p243) target = $region40
    $region39: #{residual_conv_block.4} parent=5 // pred_region
      %s247 = ssub.s32 %s14, 1
      %p248 = scmp.lt.s32.totalorder %s19, 1
      %s249 = scalar_select %p248, %s19, 1
      %s250 = smul.addr %s249, 32
      %s251 = smul.addr %s250, 8
      %s252 = scalar_lea.vmem %s0, %s251
      %p253 = pneg %p40
      %p254 = pneg %p37
      %p255 = pneg %p61
      %p256 = pneg %p58
      %p257 = pneg %p82
      %p258 = pneg %p79
      %p259 = pneg %p103
      %p260 = pneg %p100
      %p261 = pneg %p124
      %p262 = pneg %p121
      %p263 = pneg %p150
      %p264 = pneg %p147
      %p265 = scmp.lt.s32.totalorder %s19, 1
      %s266 = scalar_select %p265, %s19, 1
      %s267 = smul.addr %s266, 32
      %s268 = smul.addr %s267, 8
      %s269 = scalar_lea.vmem %s5, %s268
      %p270 = pneg %p176
      %p271 = pneg %p173
      %p272 = scmp.lt.s32.totalorder %s19, 1
      %s273 = scalar_select %p272, %s19, 1
      %s274 = scalar_lea.vmem %s6, %s273
      %p275 = pneg %p202
      %p276 = pneg %p199
      %p277 = scmp.lt.s32.totalorder %s19, 1
      %s278 = scalar_select %p277, %s19, 1
      %s279 = scalar_lea.vmem %s7, %s278
      %p280 = scmp.lt.s32.totalorder %s19, 1
      %s281 = scalar_select %p280, %s19, 1
      %s282 = smul.addr %s281, 32
      %s283 = smul.addr %s282, 8
      %s284 = scalar_lea.vmem %s0, %s283
      %p285 = scmp.lt.s32.totalorder %s19, 1
      %s286 = scalar_select %p285, %s19, 1
      %s287 = smul.addr %s286, 32
      %s288 = smul.addr %s287, 8
      %s289 = scalar_lea.vmem %s5, %s288
      %p290 = scmp.lt.s32.totalorder %s19, 1
      %s291 = scalar_select %p290, %s19, 1
      %s292 = scalar_lea.vmem %s6, %s291
      %p293 = scmp.lt.s32.totalorder %s19, 1
      %s294 = scalar_select %p293, %s19, 1
      %s295 = scalar_lea.vmem %s7, %s294
      %v296 = vld [vmem:[%s284] sm:$0xff]
      %v297 = vld [vmem:[%s284 + $0x8] sm:$0xff]
      %v298 = vld [vmem:[%s284 + $0x10] sm:$0xff]
      %v299 = vld [vmem:[%s284 + $0x18] sm:$0xff]
      %v300 = vld [vmem:[%s284 + $0x20] sm:$0xff]
      %v301 = vld [vmem:[%s284 + $0x28] sm:$0xff]
      %v302 = vld [vmem:[%s284 + $0x30] sm:$0xff]
      %v303 = vld [vmem:[%s284 + $0x38] sm:$0xff]
      %v304 = vld [vmem:[%s284 + $0x40] sm:$0xff]
      %v305 = vld [vmem:[%s284 + $0x48] sm:$0xff]
      %v306 = vld [vmem:[%s284 + $0x50] sm:$0xff]
      %v307 = vld [vmem:[%s284 + $0x58] sm:$0xff]
      %v308 = vld [vmem:[%s284 + $0x60] sm:$0xff]
      %v309 = vld [vmem:[%s284 + $0x68] sm:$0xff]
      %v310 = vld [vmem:[%s284 + $0x70] sm:$0xff]
      %v311 = vld [vmem:[%s284 + $0x78] sm:$0xff]
      %v312 = vld [vmem:[%s284 + $0x80] sm:$0xff]
      %v313 = vld [vmem:[%s284 + $0x88] sm:$0xff]
      %v314 = vld [vmem:[%s284 + $0x90] sm:$0xff]
      %v315 = vld [vmem:[%s284 + $0x98] sm:$0xff]
      %v316 = vld [vmem:[%s284 + $0xa0] sm:$0xff]
      %v317 = vld [vmem:[%s284 + $0xa8] sm:$0xff]
      %v318 = vld [vmem:[%s284 + $0xb0] sm:$0xff]
      %v319 = vld [vmem:[%s284 + $0xb8] sm:$0xff]
      %v320 = vld [vmem:[%s284 + $0xc0] sm:$0xff]
      %v321 = vld [vmem:[%s284 + $0xc8] sm:$0xff]
      %v322 = vld [vmem:[%s284 + $0xd0] sm:$0xff]
      %v323 = vld [vmem:[%s284 + $0xd8] sm:$0xff]
      %v324 = vld [vmem:[%s284 + $0xe0] sm:$0xff]
      %v325 = vld [vmem:[%s284 + $0xe8] sm:$0xff]
      %v326 = vld [vmem:[%s284 + $0xf0] sm:$0xff]
      %v327 = vld [vmem:[%s284 + $0xf8] sm:$0xff]
      %v328 = vld [vmem:[%s2] sm:$0x1]
      %v330 = vperm.slane %v328, 0
      %v332 = vmul.f32 %v296, %v330
      %v333 = vmul.f32 %v297, %v330
      %v334 = vmul.f32 %v298, %v330
      %v335 = vmul.f32 %v299, %v330
      %v336 = vmul.f32 %v300, %v330
      %v337 = vmul.f32 %v301, %v330
      %v338 = vmul.f32 %v302, %v330
      %v339 = vmul.f32 %v303, %v330
      %v340 = vmul.f32 %v304, %v330
      %v341 = vmul.f32 %v305, %v330
      %v342 = vmul.f32 %v306, %v330
      %v343 = vmul.f32 %v307, %v330
      %v344 = vmul.f32 %v308, %v330
      %v345 = vmul.f32 %v309, %v330
      %v346 = vmul.f32 %v310, %v330
      %v347 = vmul.f32 %v311, %v330
      %v348 = vmul.f32 %v312, %v330
      %v349 = vmul.f32 %v313, %v330
      %v350 = vmul.f32 %v314, %v330
      %v351 = vmul.f32 %v315, %v330
      %v352 = vmul.f32 %v316, %v330
      %v353 = vmul.f32 %v317, %v330
      %v354 = vmul.f32 %v318, %v330
      %v355 = vmul.f32 %v319, %v330
      %v356 = vmul.f32 %v320, %v330
      %v357 = vmul.f32 %v321, %v330
      %v358 = vmul.f32 %v322, %v330
      %v359 = vmul.f32 %v323, %v330
      %v360 = vmul.f32 %v324, %v330
      %v361 = vmul.f32 %v325, %v330
      %v362 = vmul.f32 %v326, %v330
      %v363 = vmul.f32 %v327, %v330
      %v364 = vld [vmem:[%s3] sm:$0x1]
      %v366 = vperm.slane %v364, 0
      %v368 = vadd.f32 %v332, %v366
      %v369 = vadd.f32 %v333, %v366
      %v370 = vadd.f32 %v334, %v366
      %v371 = vadd.f32 %v335, %v366
      %v372 = vadd.f32 %v336, %v366
      %v373 = vadd.f32 %v337, %v366
      %v374 = vadd.f32 %v338, %v366
      %v375 = vadd.f32 %v339, %v366
      %v376 = vadd.f32 %v340, %v366
      %v377 = vadd.f32 %v341, %v366
      %v378 = vadd.f32 %v342, %v366
      %v379 = vadd.f32 %v343, %v366
      %v380 = vadd.f32 %v344, %v366
      %v381 = vadd.f32 %v345, %v366
      %v382 = vadd.f32 %v346, %v366
      %v383 = vadd.f32 %v347, %v366
      %v384 = vadd.f32 %v348, %v366
      %v385 = vadd.f32 %v349, %v366
      %v386 = vadd.f32 %v350, %v366
      %v387 = vadd.f32 %v351, %v366
      %v388 = vadd.f32 %v352, %v366
      %v389 = vadd.f32 %v353, %v366
      %v390 = vadd.f32 %v354, %v366
      %v391 = vadd.f32 %v355, %v366
      %v392 = vadd.f32 %v356, %v366
      %v393 = vadd.f32 %v357, %v366
      %v394 = vadd.f32 %v358, %v366
      %v395 = vadd.f32 %v359, %v366
      %v396 = vadd.f32 %v360, %v366
      %v397 = vadd.f32 %v361, %v366
      %v398 = vadd.f32 %v362, %v366
      %v399 = vadd.f32 %v363, %v366
      %v400 = vmax.f32 %v368, 0.0
      %v401 = vmax.f32 %v369, 0.0
      %v402 = vmax.f32 %v370, 0.0
      %v403 = vmax.f32 %v371, 0.0
      %v404 = vmax.f32 %v372, 0.0
      %v405 = vmax.f32 %v373, 0.0
      %v406 = vmax.f32 %v374, 0.0
      %v407 = vmax.f32 %v375, 0.0
      %v408 = vmax.f32 %v376, 0.0
      %v409 = vmax.f32 %v377, 0.0
      %v410 = vmax.f32 %v378, 0.0
      %v411 = vmax.f32 %v379, 0.0
      %v412 = vmax.f32 %v380, 0.0
      %v413 = vmax.f32 %v381, 0.0
      %v414 = vmax.f32 %v382, 0.0
      %v415 = vmax.f32 %v383, 0.0
      %v416 = vmax.f32 %v384, 0.0
      %v417 = vmax.f32 %v385, 0.0
      %v418 = vmax.f32 %v386, 0.0
      %v419 = vmax.f32 %v387, 0.0
      %v420 = vmax.f32 %v388, 0.0
      %v421 = vmax.f32 %v389, 0.0
      %v422 = vmax.f32 %v390, 0.0
      %v423 = vmax.f32 %v391, 0.0
      %v424 = vmax.f32 %v392, 0.0
      %v425 = vmax.f32 %v393, 0.0
      %v426 = vmax.f32 %v394, 0.0
      %v427 = vmax.f32 %v395, 0.0
      %v428 = vmax.f32 %v396, 0.0
      %v429 = vmax.f32 %v397, 0.0
      %v430 = vmax.f32 %v398, 0.0
      %v431 = vmax.f32 %v399, 0.0
      %v432 = vld [vmem:[%s4] sm:$0x1]
      %v433 = vmin.f32 %v368, 0.0
      %v434 = vmin.f32 %v369, 0.0
      %v435 = vmin.f32 %v370, 0.0
      %v436 = vmin.f32 %v371, 0.0
      %v437 = vmin.f32 %v372, 0.0
      %v438 = vmin.f32 %v373, 0.0
      %v439 = vmin.f32 %v374, 0.0
      %v440 = vmin.f32 %v375, 0.0
      %v441 = vmin.f32 %v376, 0.0
      %v442 = vmin.f32 %v377, 0.0
      %v443 = vmin.f32 %v378, 0.0
      %v444 = vmin.f32 %v379, 0.0
      %v445 = vmin.f32 %v380, 0.0
      %v446 = vmin.f32 %v381, 0.0
      %v447 = vmin.f32 %v382, 0.0
      %v448 = vmin.f32 %v383, 0.0
      %v449 = vmin.f32 %v384, 0.0
      %v450 = vmin.f32 %v385, 0.0
      %v451 = vmin.f32 %v386, 0.0
      %v452 = vmin.f32 %v387, 0.0
      %v453 = vmin.f32 %v388, 0.0
      %v454 = vmin.f32 %v389, 0.0
      %v455 = vmin.f32 %v390, 0.0
      %v456 = vmin.f32 %v391, 0.0
      %v457 = vmin.f32 %v392, 0.0
      %v458 = vmin.f32 %v393, 0.0
      %v459 = vmin.f32 %v394, 0.0
      %v460 = vmin.f32 %v395, 0.0
      %v461 = vmin.f32 %v396, 0.0
      %v462 = vmin.f32 %v397, 0.0
      %v463 = vmin.f32 %v398, 0.0
      %v464 = vmin.f32 %v399, 0.0
      %v466 = vperm.slane %v432, 0
      %v468 = vmul.f32 %v466, %v433
      %v469 = vmul.f32 %v466, %v434
      %v470 = vmul.f32 %v466, %v435
      %v471 = vmul.f32 %v466, %v436
      %v472 = vmul.f32 %v466, %v437
      %v473 = vmul.f32 %v466, %v438
      %v474 = vmul.f32 %v466, %v439
      %v475 = vmul.f32 %v466, %v440
      %v476 = vmul.f32 %v466, %v441
      %v477 = vmul.f32 %v466, %v442
      %v478 = vmul.f32 %v466, %v443
      %v479 = vmul.f32 %v466, %v444
      %v480 = vmul.f32 %v466, %v445
      %v481 = vmul.f32 %v466, %v446
      %v482 = vmul.f32 %v466, %v447
      %v483 = vmul.f32 %v466, %v448
      %v484 = vmul.f32 %v466, %v449
      %v485 = vmul.f32 %v466, %v450
      %v486 = vmul.f32 %v466, %v451
      %v487 = vmul.f32 %v466, %v452
      %v488 = vmul.f32 %v466, %v453
      %v489 = vmul.f32 %v466, %v454
      %v490 = vmul.f32 %v466, %v455
      %v491 = vmul.f32 %v466, %v456
      %v492 = vmul.f32 %v466, %v457
      %v493 = vmul.f32 %v466, %v458
      %v494 = vmul.f32 %v466, %v459
      %v495 = vmul.f32 %v466, %v460
      %v496 = vmul.f32 %v466, %v461
      %v497 = vmul.f32 %v466, %v462
      %v498 = vmul.f32 %v466, %v463
      %v499 = vmul.f32 %v466, %v464
      %v500 = vadd.f32 %v400, %v468
      %v501 = vadd.f32 %v401, %v469
      %v502 = vadd.f32 %v402, %v470
      %v503 = vadd.f32 %v403, %v471
      %v504 = vadd.f32 %v404, %v472
      %v505 = vadd.f32 %v405, %v473
      %v506 = vadd.f32 %v406, %v474
      %v507 = vadd.f32 %v407, %v475
      %v508 = vadd.f32 %v408, %v476
      %v509 = vadd.f32 %v409, %v477
      %v510 = vadd.f32 %v410, %v478
      %v511 = vadd.f32 %v411, %v479
      %v512 = vadd.f32 %v412, %v480
      %v513 = vadd.f32 %v413, %v481
      %v514 = vadd.f32 %v414, %v482
      %v515 = vadd.f32 %v415, %v483
      %v516 = vadd.f32 %v416, %v484
      %v517 = vadd.f32 %v417, %v485
      %v518 = vadd.f32 %v418, %v486
      %v519 = vadd.f32 %v419, %v487
      %v520 = vadd.f32 %v420, %v488
      %v521 = vadd.f32 %v421, %v489
      %v522 = vadd.f32 %v422, %v490
      %v523 = vadd.f32 %v423, %v491
      %v524 = vadd.f32 %v424, %v492
      %v525 = vadd.f32 %v425, %v493
      %v526 = vadd.f32 %v426, %v494
      %v527 = vadd.f32 %v427, %v495
      %v528 = vadd.f32 %v428, %v496
      %v529 = vadd.f32 %v429, %v497
      %v530 = vadd.f32 %v430, %v498
      %v531 = vadd.f32 %v431, %v499
      %vm532 = vcmask 31744
      %533 = vst.msk [vmem:[#allocation2] sm:$0xff] %vm532, 0.0
      %534 = vst.msk [vmem:[#allocation2 + $0x8] sm:$0xff] %vm532, 0.0
      %vm535 = vcmask 25600
      %536 = vst.msk [vmem:[#allocation2 + $0x10] sm:$0x3] %vm535, 0.0
      %s537 = scalar_lea.vmem [#allocation2], 408
      %538 = vst.msk [vmem:[%s537] sm:$0xff] %vm532, 0.0
      %539 = vst.msk [vmem:[%s537 + $0x8] sm:$0xff] %vm532, 0.0
      %540 = vst.msk [vmem:[%s537 + $0x10] sm:$0x3] %vm535, 0.0
      %vm541 = vcmask 24576
      %542 = vst.msk [vmem:[#allocation2] sm:$0x1] %vm541, 0.0
      %543 = vst.msk [vmem:[#allocation2 + $0x18] sm:$0x1] %vm541, 0.0
      %544 = vst.msk [vmem:[#allocation2 + $0x30] sm:$0x1] %vm541, 0.0
      %545 = vst.msk [vmem:[#allocation2 + $0x48] sm:$0x1] %vm541, 0.0
      %546 = vst.msk [vmem:[#allocation2 + $0x60] sm:$0x1] %vm541, 0.0
      %547 = vst.msk [vmem:[#allocation2 + $0x78] sm:$0x1] %vm541, 0.0
      %548 = vst.msk [vmem:[#allocation2 + $0x90] sm:$0x1] %vm541, 0.0
      %549 = vst.msk [vmem:[#allocation2 + $0xa8] sm:$0x1] %vm541, 0.0
      %550 = vst.msk [vmem:[#allocation2 + $0xc0] sm:$0x1] %vm541, 0.0
      %551 = vst.msk [vmem:[#allocation2 + $0xd8] sm:$0x1] %vm541, 0.0
      %552 = vst.msk [vmem:[#allocation2 + $0xf0] sm:$0x1] %vm541, 0.0
      %553 = vst.msk [vmem:[#allocation2 + $0x108] sm:$0x1] %vm541, 0.0
      %554 = vst.msk [vmem:[#allocation2 + $0x120] sm:$0x1] %vm541, 0.0
      %555 = vst.msk [vmem:[#allocation2 + $0x138] sm:$0x1] %vm541, 0.0
      %556 = vst.msk [vmem:[#allocation2 + $0x150] sm:$0x1] %vm541, 0.0
      %557 = vst.msk [vmem:[#allocation2 + $0x168] sm:$0x1] %vm541, 0.0
      %558 = vst.msk [vmem:[#allocation2 + $0x180] sm:$0x1] %vm541, 0.0
      %559 = vst.msk [vmem:[#allocation2 + $0x198] sm:$0x1] %vm541, 0.0
      %560 = vst.msk [vmem:[#allocation2 + $0x11] sm:$0x1] %vm541, 0.0
      %561 = vst.msk [vmem:[#allocation2 + $0x29] sm:$0x1] %vm541, 0.0
      %562 = vst.msk [vmem:[#allocation2 + $0x41] sm:$0x1] %vm541, 0.0
      %563 = vst.msk [vmem:[#allocation2 + $0x59] sm:$0x1] %vm541, 0.0
      %564 = vst.msk [vmem:[#allocation2 + $0x71] sm:$0x1] %vm541, 0.0
      %565 = vst.msk [vmem:[#allocation2 + $0x89] sm:$0x1] %vm541, 0.0
      %566 = vst.msk [vmem:[#allocation2 + $0xa1] sm:$0x1] %vm541, 0.0
      %567 = vst.msk [vmem:[#allocation2 + $0xb9] sm:$0x1] %vm541, 0.0
      %568 = vst.msk [vmem:[#allocation2 + $0xd1] sm:$0x1] %vm541, 0.0
      %569 = vst.msk [vmem:[#allocation2 + $0xe9] sm:$0x1] %vm541, 0.0
      %570 = vst.msk [vmem:[#allocation2 + $0x101] sm:$0x1] %vm541, 0.0
      %571 = vst.msk [vmem:[#allocation2 + $0x119] sm:$0x1] %vm541, 0.0
      %572 = vst.msk [vmem:[#allocation2 + $0x131] sm:$0x1] %vm541, 0.0
      %573 = vst.msk [vmem:[#allocation2 + $0x149] sm:$0x1] %vm541, 0.0
      %574 = vst.msk [vmem:[#allocation2 + $0x161] sm:$0x1] %vm541, 0.0
      %575 = vst.msk [vmem:[#allocation2 + $0x179] sm:$0x1] %vm541, 0.0
      %576 = vst.msk [vmem:[#allocation2 + $0x191] sm:$0x1] %vm541, 0.0
      %577 = vst.msk [vmem:[#allocation2 + $0x1a9] sm:$0x1] %vm541, 0.0
      %s578 = scalar_lea.vmem [#allocation2], 24
      %579 = vst.msk [vmem:[%s578 + $0x1] sm:$0xff] %vm532, %v500
      %580 = vst.msk [vmem:[%s578 + $0x9] sm:$0xff] %vm532, %v501
      %581 = vst.msk [vmem:[%s578 + $0x19] sm:$0xff] %vm532, %v502
      %582 = vst.msk [vmem:[%s578 + $0x21] sm:$0xff] %vm532, %v503
      %583 = vst.msk [vmem:[%s578 + $0x31] sm:$0xff] %vm532, %v504
      %584 = vst.msk [vmem:[%s578 + $0x39] sm:$0xff] %vm532, %v505
      %585 = vst.msk [vmem:[%s578 + $0x49] sm:$0xff] %vm532, %v506
      %586 = vst.msk [vmem:[%s578 + $0x51] sm:$0xff] %vm532, %v507
      %587 = vst.msk [vmem:[%s578 + $0x61] sm:$0xff] %vm532, %v508
      %588 = vst.msk [vmem:[%s578 + $0x69] sm:$0xff] %vm532, %v509
      %589 = vst.msk [vmem:[%s578 + $0x79] sm:$0xff] %vm532, %v510
      %590 = vst.msk [vmem:[%s578 + $0x81] sm:$0xff] %vm532, %v511
      %591 = vst.msk [vmem:[%s578 + $0x91] sm:$0xff] %vm532, %v512
      %592 = vst.msk [vmem:[%s578 + $0x99] sm:$0xff] %vm532, %v513
      %593 = vst.msk [vmem:[%s578 + $0xa9] sm:$0xff] %vm532, %v514
      %594 = vst.msk [vmem:[%s578 + $0xb1] sm:$0xff] %vm532, %v515
      %595 = vst.msk [vmem:[%s578 + $0xc1] sm:$0xff] %vm532, %v516
      %596 = vst.msk [vmem:[%s578 + $0xc9] sm:$0xff] %vm532, %v517
      %597 = vst.msk [vmem:[%s578 + $0xd9] sm:$0xff] %vm532, %v518
      %598 = vst.msk [vmem:[%s578 + $0xe1] sm:$0xff] %vm532, %v519
      %599 = vst.msk [vmem:[%s578 + $0xf1] sm:$0xff] %vm532, %v520
      %600 = vst.msk [vmem:[%s578 + $0xf9] sm:$0xff] %vm532, %v521
      %601 = vst.msk [vmem:[%s578 + $0x109] sm:$0xff] %vm532, %v522
      %602 = vst.msk [vmem:[%s578 + $0x111] sm:$0xff] %vm532, %v523
      %603 = vst.msk [vmem:[%s578 + $0x121] sm:$0xff] %vm532, %v524
      %604 = vst.msk [vmem:[%s578 + $0x129] sm:$0xff] %vm532, %v525
      %605 = vst.msk [vmem:[%s578 + $0x139] sm:$0xff] %vm532, %v526
      %606 = vst.msk [vmem:[%s578 + $0x141] sm:$0xff] %vm532, %v527
      %607 = vst.msk [vmem:[%s578 + $0x151] sm:$0xff] %vm532, %v528
      %608 = vst.msk [vmem:[%s578 + $0x159] sm:$0xff] %vm532, %v529
      %609 = vst.msk [vmem:[%s578 + $0x169] sm:$0xff] %vm532, %v530
      %610 = vst.msk [vmem:[%s578 + $0x171] sm:$0xff] %vm532, %v531
      %v611 = vld [vmem:[#allocation2] sm:$0xff]
      %v612 = vld [vmem:[#allocation2 + $0x8] sm:$0xff]
      %v613 = vld [vmem:[#allocation2 + $0x18] sm:$0xff]
      %v614 = vld [vmem:[#allocation2 + $0x20] sm:$0xff]
      %v615 = vld [vmem:[#allocation2 + $0x30] sm:$0xff]
      %v616 = vld [vmem:[#allocation2 + $0x38] sm:$0xff]
      %v617 = vld [vmem:[#allocation2 + $0x48] sm:$0xff]
      %v618 = vld [vmem:[#allocation2 + $0x50] sm:$0xff]
      %v619 = vld [vmem:[#allocation2 + $0x60] sm:$0xff]
      %v620 = vld [vmem:[#allocation2 + $0x68] sm:$0xff]
      %v621 = vld [vmem:[#allocation2 + $0x78] sm:$0xff]
      %v622 = vld [vmem:[#allocation2 + $0x80] sm:$0xff]
      %v623 = vld [vmem:[#allocation2 + $0x90] sm:$0xff]
      %v624 = vld [vmem:[#allocation2 + $0x98] sm:$0xff]
      %v625 = vld [vmem:[#allocation2 + $0xa8] sm:$0xff]
      %v626 = vld [vmem:[#allocation2 + $0xb0] sm:$0xff]
      %v627 = vld [vmem:[#allocation2 + $0xc0] sm:$0xff]
      %v628 = vld [vmem:[#allocation2 + $0xc8] sm:$0xff]
      %v629 = vld [vmem:[#allocation2 + $0xd8] sm:$0xff]
      %v630 = vld [vmem:[#allocation2 + $0xe0] sm:$0xff]
      %v631 = vld [vmem:[#allocation2 + $0xf0] sm:$0xff]
      %v632 = vld [vmem:[#allocation2 + $0xf8] sm:$0xff]
      %v633 = vld [vmem:[#allocation2 + $0x108] sm:$0xff]
      %v634 = vld [vmem:[#allocation2 + $0x110] sm:$0xff]
      %v635 = vld [vmem:[#allocation2 + $0x120] sm:$0xff]
      %v636 = vld [vmem:[#allocation2 + $0x128] sm:$0xff]
      %v637 = vld [vmem:[#allocation2 + $0x138] sm:$0xff]
      %v638 = vld [vmem:[#allocation2 + $0x140] sm:$0xff]
      %v639 = vld [vmem:[#allocation2 + $0x150] sm:$0xff]
      %v640 = vld [vmem:[#allocation2 + $0x158] sm:$0xff]
      %v641 = vld [vmem:[#allocation2 + $0x168] sm:$0xff]
      %v642 = vld [vmem:[#allocation2 + $0x170] sm:$0xff]
      %643 = vst.msk [vmem:[#allocation3] sm:$0xff] %vm532, %v611
      %644 = vst.msk [vmem:[#allocation3 + $0x8] sm:$0xff] %vm532, %v612
      %645 = vst.msk [vmem:[#allocation3 + $0x10] sm:$0xff] %vm532, %v613
      %646 = vst.msk [vmem:[#allocation3 + $0x18] sm:$0xff] %vm532, %v614
      %647 = vst.msk [vmem:[#allocation3 + $0x20] sm:$0xff] %vm532, %v615
      %648 = vst.msk [vmem:[#allocation3 + $0x28] sm:$0xff] %vm532, %v616
      %649 = vst.msk [vmem:[#allocation3 + $0x30] sm:$0xff] %vm532, %v617
      %650 = vst.msk [vmem:[#allocation3 + $0x38] sm:$0xff] %vm532, %v618
      %651 = vst.msk [vmem:[#allocation3 + $0x40] sm:$0xff] %vm532, %v619
      %652 = vst.msk [vmem:[#allocation3 + $0x48] sm:$0xff] %vm532, %v620
      %653 = vst.msk [vmem:[#allocation3 + $0x50] sm:$0xff] %vm532, %v621
      %654 = vst.msk [vmem:[#allocation3 + $0x58] sm:$0xff] %vm532, %v622
      %655 = vst.msk [vmem:[#allocation3 + $0x60] sm:$0xff] %vm532, %v623
      %656 = vst.msk [vmem:[#allocation3 + $0x68] sm:$0xff] %vm532, %v624
      %657 = vst.msk [vmem:[#allocation3 + $0x70] sm:$0xff] %vm532, %v625
      %658 = vst.msk [vmem:[#allocation3 + $0x78] sm:$0xff] %vm532, %v626
      %659 = vst.msk [vmem:[#allocation3 + $0x80] sm:$0xff] %vm532, %v627
      %660 = vst.msk [vmem:[#allocation3 + $0x88] sm:$0xff] %vm532, %v628
      %661 = vst.msk [vmem:[#allocation3 + $0x90] sm:$0xff] %vm532, %v629
      %662 = vst.msk [vmem:[#allocation3 + $0x98] sm:$0xff] %vm532, %v630
      %663 = vst.msk [vmem:[#allocation3 + $0xa0] sm:$0xff] %vm532, %v631
      %664 = vst.msk [vmem:[#allocation3 + $0xa8] sm:$0xff] %vm532, %v632
      %665 = vst.msk [vmem:[#allocation3 + $0xb0] sm:$0xff] %vm532, %v633
      %666 = vst.msk [vmem:[#allocation3 + $0xb8] sm:$0xff] %vm532, %v634
      %667 = vst.msk [vmem:[#allocation3 + $0xc0] sm:$0xff] %vm532, %v635
      %668 = vst.msk [vmem:[#allocation3 + $0xc8] sm:$0xff] %vm532, %v636
      %669 = vst.msk [vmem:[#allocation3 + $0xd0] sm:$0xff] %vm532, %v637
      %670 = vst.msk [vmem:[#allocation3 + $0xd8] sm:$0xff] %vm532, %v638
      %671 = vst.msk [vmem:[#allocation3 + $0xe0] sm:$0xff] %vm532, %v639
      %672 = vst.msk [vmem:[#allocation3 + $0xe8] sm:$0xff] %vm532, %v640
      %673 = vst.msk [vmem:[#allocation3 + $0xf0] sm:$0xff] %vm532, %v641
      %674 = vst.msk [vmem:[#allocation3 + $0xf8] sm:$0xff] %vm532, %v642
      %v675 = vld [vmem:[#allocation2 + $0x1] sm:$0xff]
      %v676 = vld [vmem:[#allocation2 + $0x9] sm:$0xff]
      %v677 = vld [vmem:[#allocation2 + $0x19] sm:$0xff]
      %v678 = vld [vmem:[#allocation2 + $0x21] sm:$0xff]
      %v679 = vld [vmem:[#allocation2 + $0x31] sm:$0xff]
      %v680 = vld [vmem:[#allocation2 + $0x39] sm:$0xff]
      %v681 = vld [vmem:[#allocation2 + $0x49] sm:$0xff]
      %v682 = vld [vmem:[#allocation2 + $0x51] sm:$0xff]
      %v683 = vld [vmem:[#allocation2 + $0x61] sm:$0xff]
      %v684 = vld [vmem:[#allocation2 + $0x69] sm:$0xff]
      %v685 = vld [vmem:[#allocation2 + $0x79] sm:$0xff]
      %v686 = vld [vmem:[#allocation2 + $0x81] sm:$0xff]
      %v687 = vld [vmem:[#allocation2 + $0x91] sm:$0xff]
      %v688 = vld [vmem:[#allocation2 + $0x99] sm:$0xff]
      %v689 = vld [vmem:[#allocation2 + $0xa9] sm:$0xff]
      %v690 = vld [vmem:[#allocation2 + $0xb1] sm:$0xff]
      %v691 = vld [vmem:[#allocation2 + $0xc1] sm:$0xff]
      %v692 = vld [vmem:[#allocation2 + $0xc9] sm:$0xff]
      %v693 = vld [vmem:[#allocation2 + $0xd9] sm:$0xff]
      %v694 = vld [vmem:[#allocation2 + $0xe1] sm:$0xff]
      %v695 = vld [vmem:[#allocation2 + $0xf1] sm:$0xff]
      %v696 = vld [vmem:[#allocation2 + $0xf9] sm:$0xff]
      %v697 = vld [vmem:[#allocation2 + $0x109] sm:$0xff]
      %v698 = vld [vmem:[#allocation2 + $0x111] sm:$0xff]
      %v699 = vld [vmem:[#allocation2 + $0x121] sm:$0xff]
      %v700 = vld [vmem:[#allocation2 + $0x129] sm:$0xff]
      %v701 = vld [vmem:[#allocation2 + $0x139] sm:$0xff]
      %v702 = vld [vmem:[#allocation2 + $0x141] sm:$0xff]
      %v703 = vld [vmem:[#allocation2 + $0x151] sm:$0xff]
      %v704 = vld [vmem:[#allocation2 + $0x159] sm:$0xff]
      %v705 = vld [vmem:[#allocation2 + $0x169] sm:$0xff]
      %v706 = vld [vmem:[#allocation2 + $0x171] sm:$0xff]
      %739 = vrot.lane.b32.xlu0 %v675, 4
      %v740 = vpop.permute.xlu0 %739
      %741 = vrot.lane.b32.xlu0 %v676, 4
      %v742 = vpop.permute.xlu0 %741
      %743 = vrot.lane.b32.xlu0 %v677, 4
      %v744 = vpop.permute.xlu0 %743
      %745 = vrot.lane.b32.xlu0 %v678, 4
      %v746 = vpop.permute.xlu0 %745
      %747 = vrot.lane.b32.xlu0 %v679, 4
      %v748 = vpop.permute.xlu0 %747
      %749 = vrot.lane.b32.xlu0 %v680, 4
      %v750 = vpop.permute.xlu0 %749
      %751 = vrot.lane.b32.xlu0 %v681, 4
      %v752 = vpop.permute.xlu0 %751
      %753 = vrot.lane.b32.xlu0 %v682, 4
      %v754 = vpop.permute.xlu0 %753
      %755 = vrot.lane.b32.xlu0 %v683, 4
      %v756 = vpop.permute.xlu0 %755
      %757 = vrot.lane.b32.xlu0 %v684, 4
      %v758 = vpop.permute.xlu0 %757
      %759 = vrot.lane.b32.xlu0 %v685, 4
      %v760 = vpop.permute.xlu0 %759
      %761 = vrot.lane.b32.xlu0 %v686, 4
      %v762 = vpop.permute.xlu0 %761
      %763 = vrot.lane.b32.xlu0 %v687, 4
      %v764 = vpop.permute.xlu0 %763
      %765 = vrot.lane.b32.xlu0 %v688, 4
      %v766 = vpop.permute.xlu0 %765
      %767 = vrot.lane.b32.xlu0 %v689, 4
      %v768 = vpop.permute.xlu0 %767
      %769 = vrot.lane.b32.xlu0 %v690, 4
      %v770 = vpop.permute.xlu0 %769
      %771 = vrot.lane.b32.xlu0 %v691, 4
      %v772 = vpop.permute.xlu0 %771
      %773 = vrot.lane.b32.xlu0 %v692, 4
      %v774 = vpop.permute.xlu0 %773
      %775 = vrot.lane.b32.xlu0 %v693, 4
      %v776 = vpop.permute.xlu0 %775
      %777 = vrot.lane.b32.xlu0 %v694, 4
      %v778 = vpop.permute.xlu0 %777
      %779 = vrot.lane.b32.xlu0 %v695, 4
      %v780 = vpop.permute.xlu0 %779
      %781 = vrot.lane.b32.xlu0 %v696, 4
      %v782 = vpop.permute.xlu0 %781
      %783 = vrot.lane.b32.xlu0 %v697, 4
      %v784 = vpop.permute.xlu0 %783
      %785 = vrot.lane.b32.xlu0 %v698, 4
      %v786 = vpop.permute.xlu0 %785
      %787 = vrot.lane.b32.xlu0 %v699, 4
      %v788 = vpop.permute.xlu0 %787
      %789 = vrot.lane.b32.xlu0 %v700, 4
      %v790 = vpop.permute.xlu0 %789
      %791 = vrot.lane.b32.xlu0 %v701, 4
      %v792 = vpop.permute.xlu0 %791
      %793 = vrot.lane.b32.xlu0 %v702, 4
      %v794 = vpop.permute.xlu0 %793
      %795 = vrot.lane.b32.xlu0 %v703, 4
      %v796 = vpop.permute.xlu0 %795
      %797 = vrot.lane.b32.xlu0 %v704, 4
      %v798 = vpop.permute.xlu0 %797
      %799 = vrot.lane.b32.xlu0 %v705, 4
      %v800 = vpop.permute.xlu0 %799
      %801 = vrot.lane.b32.xlu0 %v706, 4
      %v802 = vpop.permute.xlu0 %801
      %vm835 = vcmask 64544
      %836 = vst.msk [vmem:[#allocation3] sm:$0xff] %vm835, %v740
      %837 = vst.msk [vmem:[#allocation3 + $0x8] sm:$0xff] %vm835, %v742
      %838 = vst.msk [vmem:[#allocation3 + $0x10] sm:$0xff] %vm835, %v744
      %839 = vst.msk [vmem:[#allocation3 + $0x18] sm:$0xff] %vm835, %v746
      %840 = vst.msk [vmem:[#allocation3 + $0x20] sm:$0xff] %vm835, %v748
      %841 = vst.msk [vmem:[#allocation3 + $0x28] sm:$0xff] %vm835, %v750
      %842 = vst.msk [vmem:[#allocation3 + $0x30] sm:$0xff] %vm835, %v752
      %843 = vst.msk [vmem:[#allocation3 + $0x38] sm:$0xff] %vm835, %v754
      %844 = vst.msk [vmem:[#allocation3 + $0x40] sm:$0xff] %vm835, %v756
      %845 = vst.msk [vmem:[#allocation3 + $0x48] sm:$0xff] %vm835, %v758
      %846 = vst.msk [vmem:[#allocation3 + $0x50] sm:$0xff] %vm835, %v760
      %847 = vst.msk [vmem:[#allocation3 + $0x58] sm:$0xff] %vm835, %v762
      %848 = vst.msk [vmem:[#allocation3 + $0x60] sm:$0xff] %vm835, %v764
      %849 = vst.msk [vmem:[#allocation3 + $0x68] sm:$0xff] %vm835, %v766
      %850 = vst.msk [vmem:[#allocation3 + $0x70] sm:$0xff] %vm835, %v768
      %851 = vst.msk [vmem:[#allocation3 + $0x78] sm:$0xff] %vm835, %v770
      %852 = vst.msk [vmem:[#allocation3 + $0x80] sm:$0xff] %vm835, %v772
      %853 = vst.msk [vmem:[#allocation3 + $0x88] sm:$0xff] %vm835, %v774
      %854 = vst.msk [vmem:[#allocation3 + $0x90] sm:$0xff] %vm835, %v776
      %855 = vst.msk [vmem:[#allocation3 + $0x98] sm:$0xff] %vm835, %v778
      %856 = vst.msk [vmem:[#allocation3 + $0xa0] sm:$0xff] %vm835, %v780
      %857 = vst.msk [vmem:[#allocation3 + $0xa8] sm:$0xff] %vm835, %v782
      %858 = vst.msk [vmem:[#allocation3 + $0xb0] sm:$0xff] %vm835, %v784
      %859 = vst.msk [vmem:[#allocation3 + $0xb8] sm:$0xff] %vm835, %v786
      %860 = vst.msk [vmem:[#allocation3 + $0xc0] sm:$0xff] %vm835, %v788
      %861 = vst.msk [vmem:[#allocation3 + $0xc8] sm:$0xff] %vm835, %v790
      %862 = vst.msk [vmem:[#allocation3 + $0xd0] sm:$0xff] %vm835, %v792
      %863 = vst.msk [vmem:[#allocation3 + $0xd8] sm:$0xff] %vm835, %v794
      %864 = vst.msk [vmem:[#allocation3 + $0xe0] sm:$0xff] %vm835, %v796
      %865 = vst.msk [vmem:[#allocation3 + $0xe8] sm:$0xff] %vm835, %v798
      %866 = vst.msk [vmem:[#allocation3 + $0xf0] sm:$0xff] %vm835, %v800
      %867 = vst.msk [vmem:[#allocation3 + $0xf8] sm:$0xff] %vm835, %v802
      %v868 = vld [vmem:[#allocation2 + $0x2] sm:$0xff]
      %v869 = vld [vmem:[#allocation2 + $0xa] sm:$0xff]
      %v870 = vld [vmem:[#allocation2 + $0x1a] sm:$0xff]
      %v871 = vld [vmem:[#allocation2 + $0x22] sm:$0xff]
      %v872 = vld [vmem:[#allocation2 + $0x32] sm:$0xff]
      %v873 = vld [vmem:[#allocation2 + $0x3a] sm:$0xff]
      %v874 = vld [vmem:[#allocation2 + $0x4a] sm:$0xff]
      %v875 = vld [vmem:[#allocation2 + $0x52] sm:$0xff]
      %v876 = vld [vmem:[#allocation2 + $0x62] sm:$0xff]
      %v877 = vld [vmem:[#allocation2 + $0x6a] sm:$0xff]
      %v878 = vld [vmem:[#allocation2 + $0x7a] sm:$0xff]
      %v879 = vld [vmem:[#allocation2 + $0x82] sm:$0xff]
      %v880 = vld [vmem:[#allocation2 + $0x92] sm:$0xff]
      %v881 = vld [vmem:[#allocation2 + $0x9a] sm:$0xff]
      %v882 = vld [vmem:[#allocation2 + $0xaa] sm:$0xff]
      %v883 = vld [vmem:[#allocation2 + $0xb2] sm:$0xff]
      %v884 = vld [vmem:[#allocation2 + $0xc2] sm:$0xff]
      %v885 = vld [vmem:[#allocation2 + $0xca] sm:$0xff]
      %v886 = vld [vmem:[#allocation2 + $0xda] sm:$0xff]
      %v887 = vld [vmem:[#allocation2 + $0xe2] sm:$0xff]
      %v888 = vld [vmem:[#allocation2 + $0xf2] sm:$0xff]
      %v889 = vld [vmem:[#allocation2 + $0xfa] sm:$0xff]
      %v890 = vld [vmem:[#allocation2 + $0x10a] sm:$0xff]
      %v891 = vld [vmem:[#allocation2 + $0x112] sm:$0xff]
      %v892 = vld [vmem:[#allocation2 + $0x122] sm:$0xff]
      %v893 = vld [vmem:[#allocation2 + $0x12a] sm:$0xff]
      %v894 = vld [vmem:[#allocation2 + $0x13a] sm:$0xff]
      %v895 = vld [vmem:[#allocation2 + $0x142] sm:$0xff]
      %v896 = vld [vmem:[#allocation2 + $0x152] sm:$0xff]
      %v897 = vld [vmem:[#allocation2 + $0x15a] sm:$0xff]
      %v898 = vld [vmem:[#allocation2 + $0x16a] sm:$0xff]
      %v899 = vld [vmem:[#allocation2 + $0x172] sm:$0xff]
      %932 = vrot.lane.b32.xlu0 %v868, 8
      %v933 = vpop.permute.xlu0 %932
      %934 = vrot.lane.b32.xlu0 %v869, 8
      %v935 = vpop.permute.xlu0 %934
      %936 = vrot.lane.b32.xlu0 %v870, 8
      %v937 = vpop.permute.xlu0 %936
      %938 = vrot.lane.b32.xlu0 %v871, 8
      %v939 = vpop.permute.xlu0 %938
      %940 = vrot.lane.b32.xlu0 %v872, 8
      %v941 = vpop.permute.xlu0 %940
      %942 = vrot.lane.b32.xlu0 %v873, 8
      %v943 = vpop.permute.xlu0 %942
      %944 = vrot.lane.b32.xlu0 %v874, 8
      %v945 = vpop.permute.xlu0 %944
      %946 = vrot.lane.b32.xlu0 %v875, 8
      %v947 = vpop.permute.xlu0 %946
      %948 = vrot.lane.b32.xlu0 %v876, 8
      %v949 = vpop.permute.xlu0 %948
      %950 = vrot.lane.b32.xlu0 %v877, 8
      %v951 = vpop.permute.xlu0 %950
      %952 = vrot.lane.b32.xlu0 %v878, 8
      %v953 = vpop.permute.xlu0 %952
      %954 = vrot.lane.b32.xlu0 %v879, 8
      %v955 = vpop.permute.xlu0 %954
      %956 = vrot.lane.b32.xlu0 %v880, 8
      %v957 = vpop.permute.xlu0 %956
      %958 = vrot.lane.b32.xlu0 %v881, 8
      %v959 = vpop.permute.xlu0 %958
      %960 = vrot.lane.b32.xlu0 %v882, 8
      %v961 = vpop.permute.xlu0 %960
      %962 = vrot.lane.b32.xlu0 %v883, 8
      %v963 = vpop.permute.xlu0 %962
      %964 = vrot.lane.b32.xlu0 %v884, 8
      %v965 = vpop.permute.xlu0 %964
      %966 = vrot.lane.b32.xlu0 %v885, 8
      %v967 = vpop.permute.xlu0 %966
      %968 = vrot.lane.b32.xlu0 %v886, 8
      %v969 = vpop.permute.xlu0 %968
      %970 = vrot.lane.b32.xlu0 %v887, 8
      %v971 = vpop.permute.xlu0 %970
      %972 = vrot.lane.b32.xlu0 %v888, 8
      %v973 = vpop.permute.xlu0 %972
      %974 = vrot.lane.b32.xlu0 %v889, 8
      %v975 = vpop.permute.xlu0 %974
      %976 = vrot.lane.b32.xlu0 %v890, 8
      %v977 = vpop.permute.xlu0 %976
      %978 = vrot.lane.b32.xlu0 %v891, 8
      %v979 = vpop.permute.xlu0 %978
      %980 = vrot.lane.b32.xlu0 %v892, 8
      %v981 = vpop.permute.xlu0 %980
      %982 = vrot.lane.b32.xlu0 %v893, 8
      %v983 = vpop.permute.xlu0 %982
      %984 = vrot.lane.b32.xlu0 %v894, 8
      %v985 = vpop.permute.xlu0 %984
      %986 = vrot.lane.b32.xlu0 %v895, 8
      %v987 = vpop.permute.xlu0 %986
      %988 = vrot.lane.b32.xlu0 %v896, 8
      %v989 = vpop.permute.xlu0 %988
      %990 = vrot.lane.b32.xlu0 %v897, 8
      %v991 = vpop.permute.xlu0 %990
      %992 = vrot.lane.b32.xlu0 %v898, 8
      %v993 = vpop.permute.xlu0 %992
      %994 = vrot.lane.b32.xlu0 %v899, 8
      %v995 = vpop.permute.xlu0 %994
      %vm1028 = vcmask 97344
      %1029 = vst.msk [vmem:[#allocation3] sm:$0xff] %vm1028, %v933
      %1030 = vst.msk [vmem:[#allocation3 + $0x8] sm:$0xff] %vm1028, %v935
      %1031 = vst.msk [vmem:[#allocation3 + $0x10] sm:$0xff] %vm1028, %v937
      %1032 = vst.msk [vmem:[#allocation3 + $0x18] sm:$0xff] %vm1028, %v939
      %1033 = vst.msk [vmem:[#allocation3 + $0x20] sm:$0xff] %vm1028, %v941
      %1034 = vst.msk [vmem:[#allocation3 + $0x28] sm:$0xff] %vm1028, %v943
      %1035 = vst.msk [vmem:[#allocation3 + $0x30] sm:$0xff] %vm1028, %v945
      %1036 = vst.msk [vmem:[#allocation3 + $0x38] sm:$0xff] %vm1028, %v947
      %1037 = vst.msk [vmem:[#allocation3 + $0x40] sm:$0xff] %vm1028, %v949
      %1038 = vst.msk [vmem:[#allocation3 + $0x48] sm:$0xff] %vm1028, %v951
      %1039 = vst.msk [vmem:[#allocation3 + $0x50] sm:$0xff] %vm1028, %v953
      %1040 = vst.msk [vmem:[#allocation3 + $0x58] sm:$0xff] %vm1028, %v955
      %1041 = vst.msk [vmem:[#allocation3 + $0x60] sm:$0xff] %vm1028, %v957
      %1042 = vst.msk [vmem:[#allocation3 + $0x68] sm:$0xff] %vm1028, %v959
      %1043 = vst.msk [vmem:[#allocation3 + $0x70] sm:$0xff] %vm1028, %v961
      %1044 = vst.msk [vmem:[#allocation3 + $0x78] sm:$0xff] %vm1028, %v963
      %1045 = vst.msk [vmem:[#allocation3 + $0x80] sm:$0xff] %vm1028, %v965
      %1046 = vst.msk [vmem:[#allocation3 + $0x88] sm:$0xff] %vm1028, %v967
      %1047 = vst.msk [vmem:[#allocation3 + $0x90] sm:$0xff] %vm1028, %v969
      %1048 = vst.msk [vmem:[#allocation3 + $0x98] sm:$0xff] %vm1028, %v971
      %1049 = vst.msk [vmem:[#allocation3 + $0xa0] sm:$0xff] %vm1028, %v973
      %1050 = vst.msk [vmem:[#allocation3 + $0xa8] sm:$0xff] %vm1028, %v975
      %1051 = vst.msk [vmem:[#allocation3 + $0xb0] sm:$0xff] %vm1028, %v977
      %1052 = vst.msk [vmem:[#allocation3 + $0xb8] sm:$0xff] %vm1028, %v979
      %1053 = vst.msk [vmem:[#allocation3 + $0xc0] sm:$0xff] %vm1028, %v981
      %1054 = vst.msk [vmem:[#allocation3 + $0xc8] sm:$0xff] %vm1028, %v983
      %1055 = vst.msk [vmem:[#allocation3 + $0xd0] sm:$0xff] %vm1028, %v985
      %1056 = vst.msk [vmem:[#allocation3 + $0xd8] sm:$0xff] %vm1028, %v987
      %1057 = vst.msk [vmem:[#allocation3 + $0xe0] sm:$0xff] %vm1028, %v989
      %1058 = vst.msk [vmem:[#allocation3 + $0xe8] sm:$0xff] %vm1028, %v991
      %1059 = vst.msk [vmem:[#allocation3 + $0xf0] sm:$0xff] %vm1028, %v993
      %1060 = vst.msk [vmem:[#allocation3 + $0xf8] sm:$0xff] %vm1028, %v995
      %v1061 = vld [vmem:[%s578] sm:$0xff]
      %v1062 = vld [vmem:[%s578 + $0x8] sm:$0xff]
      %v1063 = vld [vmem:[%s578 + $0x18] sm:$0xff]
      %v1064 = vld [vmem:[%s578 + $0x20] sm:$0xff]
      %v1065 = vld [vmem:[%s578 + $0x30] sm:$0xff]
      %v1066 = vld [vmem:[%s578 + $0x38] sm:$0xff]
      %v1067 = vld [vmem:[%s578 + $0x48] sm:$0xff]
      %v1068 = vld [vmem:[%s578 + $0x50] sm:$0xff]
      %v1069 = vld [vmem:[%s578 + $0x60] sm:$0xff]
      %v1070 = vld [vmem:[%s578 + $0x68] sm:$0xff]
      %v1071 = vld [vmem:[%s578 + $0x78] sm:$0xff]
      %v1072 = vld [vmem:[%s578 + $0x80] sm:$0xff]
      %v1073 = vld [vmem:[%s578 + $0x90] sm:$0xff]
      %v1074 = vld [vmem:[%s578 + $0x98] sm:$0xff]
      %v1075 = vld [vmem:[%s578 + $0xa8] sm:$0xff]
      %v1076 = vld [vmem:[%s578 + $0xb0] sm:$0xff]
      %v1077 = vld [vmem:[%s578 + $0xc0] sm:$0xff]
      %v1078 = vld [vmem:[%s578 + $0xc8] sm:$0xff]
      %v1079 = vld [vmem:[%s578 + $0xd8] sm:$0xff]
      %v1080 = vld [vmem:[%s578 + $0xe0] sm:$0xff]
      %v1081 = vld [vmem:[%s578 + $0xf0] sm:$0xff]
      %v1082 = vld [vmem:[%s578 + $0xf8] sm:$0xff]
      %v1083 = vld [vmem:[%s578 + $0x108] sm:$0xff]
      %v1084 = vld [vmem:[%s578 + $0x110] sm:$0xff]
      %v1085 = vld [vmem:[%s578 + $0x120] sm:$0xff]
      %v1086 = vld [vmem:[%s578 + $0x128] sm:$0xff]
      %v1087 = vld [vmem:[%s578 + $0x138] sm:$0xff]
      %v1088 = vld [vmem:[%s578 + $0x140] sm:$0xff]
      %v1089 = vld [vmem:[%s578 + $0x150] sm:$0xff]
      %v1090 = vld [vmem:[%s578 + $0x158] sm:$0xff]
      %v1091 = vld [vmem:[%s578 + $0x168] sm:$0xff]
      %v1092 = vld [vmem:[%s578 + $0x170] sm:$0xff]
      %1125 = vrot.lane.b32.xlu0 %v1061, 12
      %v1126 = vpop.permute.xlu0 %1125
      %1127 = vrot.lane.b32.xlu0 %v1062, 12
      %v1128 = vpop.permute.xlu0 %1127
      %1129 = vrot.lane.b32.xlu0 %v1063, 12
      %v1130 = vpop.permute.xlu0 %1129
      %1131 = vrot.lane.b32.xlu0 %v1064, 12
      %v1132 = vpop.permute.xlu0 %1131
      %1133 = vrot.lane.b32.xlu0 %v1065, 12
      %v1134 = vpop.permute.xlu0 %1133
      %1135 = vrot.lane.b32.xlu0 %v1066, 12
      %v1136 = vpop.permute.xlu0 %1135
      %1137 = vrot.lane.b32.xlu0 %v1067, 12
      %v1138 = vpop.permute.xlu0 %1137
      %1139 = vrot.lane.b32.xlu0 %v1068, 12
      %v1140 = vpop.permute.xlu0 %1139
      %1141 = vrot.lane.b32.xlu0 %v1069, 12
      %v1142 = vpop.permute.xlu0 %1141
      %1143 = vrot.lane.b32.xlu0 %v1070, 12
      %v1144 = vpop.permute.xlu0 %1143
      %1145 = vrot.lane.b32.xlu0 %v1071, 12
      %v1146 = vpop.permute.xlu0 %1145
      %1147 = vrot.lane.b32.xlu0 %v1072, 12
      %v1148 = vpop.permute.xlu0 %1147
      %1149 = vrot.lane.b32.xlu0 %v1073, 12
      %v1150 = vpop.permute.xlu0 %1149
      %1151 = vrot.lane.b32.xlu0 %v1074, 12
      %v1152 = vpop.permute.xlu0 %1151
      %1153 = vrot.lane.b32.xlu0 %v1075, 12
      %v1154 = vpop.permute.xlu0 %1153
      %1155 = vrot.lane.b32.xlu0 %v1076, 12
      %v1156 = vpop.permute.xlu0 %1155
      %1157 = vrot.lane.b32.xlu0 %v1077, 12
      %v1158 = vpop.permute.xlu0 %1157
      %1159 = vrot.lane.b32.xlu0 %v1078, 12
      %v1160 = vpop.permute.xlu0 %1159
      %1161 = vrot.lane.b32.xlu0 %v1079, 12
      %v1162 = vpop.permute.xlu0 %1161
      %1163 = vrot.lane.b32.xlu0 %v1080, 12
      %v1164 = vpop.permute.xlu0 %1163
      %1165 = vrot.lane.b32.xlu0 %v1081, 12
      %v1166 = vpop.permute.xlu0 %1165
      %1167 = vrot.lane.b32.xlu0 %v1082, 12
      %v1168 = vpop.permute.xlu0 %1167
      %1169 = vrot.lane.b32.xlu0 %v1083, 12
      %v1170 = vpop.permute.xlu0 %1169
      %1171 = vrot.lane.b32.xlu0 %v1084, 12
      %v1172 = vpop.permute.xlu0 %1171
      %1173 = vrot.lane.b32.xlu0 %v1085, 12
      %v1174 = vpop.permute.xlu0 %1173
      %1175 = vrot.lane.b32.xlu0 %v1086, 12
      %v1176 = vpop.permute.xlu0 %1175
      %1177 = vrot.lane.b32.xlu0 %v1087, 12
      %v1178 = vpop.permute.xlu0 %1177
      %1179 = vrot.lane.b32.xlu0 %v1088, 12
      %v1180 = vpop.permute.xlu0 %1179
      %1181 = vrot.lane.b32.xlu0 %v1089, 12
      %v1182 = vpop.permute.xlu0 %1181
      %1183 = vrot.lane.b32.xlu0 %v1090, 12
      %v1184 = vpop.permute.xlu0 %1183
      %1185 = vrot.lane.b32.xlu0 %v1091, 12
      %v1186 = vpop.permute.xlu0 %1185
      %1187 = vrot.lane.b32.xlu0 %v1092, 12
      %v1188 = vpop.permute.xlu0 %1187
      %vm1221 = vcmask 130144
      %1222 = vst.msk [vmem:[#allocation3] sm:$0xff] %vm1221, %v1126
      %1223 = vst.msk [vmem:[#allocation3 + $0x8] sm:$0xff] %vm1221, %v1128
      %1224 = vst.msk [vmem:[#allocation3 + $0x10] sm:$0xff] %vm1221, %v1130
      %1225 = vst.msk [vmem:[#allocation3 + $0x18] sm:$0xff] %vm1221, %v1132
      %1226 = vst.msk [vmem:[#allocation3 + $0x20] sm:$0xff] %vm1221, %v1134
      %1227 = vst.msk [vmem:[#allocation3 + $0x28] sm:$0xff] %vm1221, %v1136
      %1228 = vst.msk [vmem:[#allocation3 + $0x30] sm:$0xff] %vm1221, %v1138
      %1229 = vst.msk [vmem:[#allocation3 + $0x38] sm:$0xff] %vm1221, %v1140
      %1230 = vst.msk [vmem:[#allocation3 + $0x40] sm:$0xff] %vm1221, %v1142
      %1231 = vst.msk [vmem:[#allocation3 + $0x48] sm:$0xff] %vm1221, %v1144
      %1232 = vst.msk [vmem:[#allocation3 + $0x50] sm:$0xff] %vm1221, %v1146
      %1233 = vst.msk [vmem:[#allocation3 + $0x58] sm:$0xff] %vm1221, %v1148
      %1234 = vst.msk [vmem:[#allocation3 + $0x60] sm:$0xff] %vm1221, %v1150
      %1235 = vst.msk [vmem:[#allocation3 + $0x68] sm:$0xff] %vm1221, %v1152
      %1236 = vst.msk [vmem:[#allocation3 + $0x70] sm:$0xff] %vm1221, %v1154
      %1237 = vst.msk [vmem:[#allocation3 + $0x78] sm:$0xff] %vm1221, %v1156
      %1238 = vst.msk [vmem:[#allocation3 + $0x80] sm:$0xff] %vm1221, %v1158
      %1239 = vst.msk [vmem:[#allocation3 + $0x88] sm:$0xff] %vm1221, %v1160
      %1240 = vst.msk [vmem:[#allocation3 + $0x90] sm:$0xff] %vm1221, %v1162
      %1241 = vst.msk [vmem:[#allocation3 + $0x98] sm:$0xff] %vm1221, %v1164
      %1242 = vst.msk [vmem:[#allocation3 + $0xa0] sm:$0xff] %vm1221, %v1166
      %1243 = vst.msk [vmem:[#allocation3 + $0xa8] sm:$0xff] %vm1221, %v1168
      %1244 = vst.msk [vmem:[#allocation3 + $0xb0] sm:$0xff] %vm1221, %v1170
      %1245 = vst.msk [vmem:[#allocation3 + $0xb8] sm:$0xff] %vm1221, %v1172
      %1246 = vst.msk [vmem:[#allocation3 + $0xc0] sm:$0xff] %vm1221, %v1174
      %1247 = vst.msk [vmem:[#allocation3 + $0xc8] sm:$0xff] %vm1221, %v1176
      %1248 = vst.msk [vmem:[#allocation3 + $0xd0] sm:$0xff] %vm1221, %v1178
      %1249 = vst.msk [vmem:[#allocation3 + $0xd8] sm:$0xff] %vm1221, %v1180
      %1250 = vst.msk [vmem:[#allocation3 + $0xe0] sm:$0xff] %vm1221, %v1182
      %1251 = vst.msk [vmem:[#allocation3 + $0xe8] sm:$0xff] %vm1221, %v1184
      %1252 = vst.msk [vmem:[#allocation3 + $0xf0] sm:$0xff] %vm1221, %v1186
      %1253 = vst.msk [vmem:[#allocation3 + $0xf8] sm:$0xff] %vm1221, %v1188
      %v1254 = vld [vmem:[%s578 + $0x1] sm:$0xff]
      %v1255 = vld [vmem:[%s578 + $0x9] sm:$0xff]
      %v1256 = vld [vmem:[%s578 + $0x19] sm:$0xff]
      %v1257 = vld [vmem:[%s578 + $0x21] sm:$0xff]
      %v1258 = vld [vmem:[%s578 + $0x31] sm:$0xff]
      %v1259 = vld [vmem:[%s578 + $0x39] sm:$0xff]
      %v1260 = vld [vmem:[%s578 + $0x49] sm:$0xff]
      %v1261 = vld [vmem:[%s578 + $0x51] sm:$0xff]
      %v1262 = vld [vmem:[%s578 + $0x61] sm:$0xff]
      %v1263 = vld [vmem:[%s578 + $0x69] sm:$0xff]
      %v1264 = vld [vmem:[%s578 + $0x79] sm:$0xff]
      %v1265 = vld [vmem:[%s578 + $0x81] sm:$0xff]
      %v1266 = vld [vmem:[%s578 + $0x91] sm:$0xff]
      %v1267 = vld [vmem:[%s578 + $0x99] sm:$0xff]
      %v1268 = vld [vmem:[%s578 + $0xa9] sm:$0xff]
      %v1269 = vld [vmem:[%s578 + $0xb1] sm:$0xff]
      %v1270 = vld [vmem:[%s578 + $0xc1] sm:$0xff]
      %v1271 = vld [vmem:[%s578 + $0xc9] sm:$0xff]
      %v1272 = vld [vmem:[%s578 + $0xd9] sm:$0xff]
      %v1273 = vld [vmem:[%s578 + $0xe1] sm:$0xff]
      %v1274 = vld [vmem:[%s578 + $0xf1] sm:$0xff]
      %v1275 = vld [vmem:[%s578 + $0xf9] sm:$0xff]
      %v1276 = vld [vmem:[%s578 + $0x109] sm:$0xff]
      %v1277 = vld [vmem:[%s578 + $0x111] sm:$0xff]
      %v1278 = vld [vmem:[%s578 + $0x121] sm:$0xff]
      %v1279 = vld [vmem:[%s578 + $0x129] sm:$0xff]
      %v1280 = vld [vmem:[%s578 + $0x139] sm:$0xff]
      %v1281 = vld [vmem:[%s578 + $0x141] sm:$0xff]
      %v1282 = vld [vmem:[%s578 + $0x151] sm:$0xff]
      %v1283 = vld [vmem:[%s578 + $0x159] sm:$0xff]
      %v1284 = vld [vmem:[%s578 + $0x169] sm:$0xff]
      %v1285 = vld [vmem:[%s578 + $0x171] sm:$0xff]
      %1318 = vrot.lane.b32.xlu0 %v1254, 16
      %v1319 = vpop.permute.xlu0 %1318
      %1320 = vrot.lane.b32.xlu0 %v1255, 16
      %v1321 = vpop.permute.xlu0 %1320
      %1322 = vrot.lane.b32.xlu0 %v1256, 16
      %v1323 = vpop.permute.xlu0 %1322
      %1324 = vrot.lane.b32.xlu0 %v1257, 16
      %v1325 = vpop.permute.xlu0 %1324
      %1326 = vrot.lane.b32.xlu0 %v1258, 16
      %v1327 = vpop.permute.xlu0 %1326
      %1328 = vrot.lane.b32.xlu0 %v1259, 16
      %v1329 = vpop.permute.xlu0 %1328
      %1330 = vrot.lane.b32.xlu0 %v1260, 16
      %v1331 = vpop.permute.xlu0 %1330
      %1332 = vrot.lane.b32.xlu0 %v1261, 16
      %v1333 = vpop.permute.xlu0 %1332
      %1334 = vrot.lane.b32.xlu0 %v1262, 16
      %v1335 = vpop.permute.xlu0 %1334
      %1336 = vrot.lane.b32.xlu0 %v1263, 16
      %v1337 = vpop.permute.xlu0 %1336
      %1338 = vrot.lane.b32.xlu0 %v1264, 16
      %v1339 = vpop.permute.xlu0 %1338
      %1340 = vrot.lane.b32.xlu0 %v1265, 16
      %v1341 = vpop.permute.xlu0 %1340
      %1342 = vrot.lane.b32.xlu0 %v1266, 16
      %v1343 = vpop.permute.xlu0 %1342
      %1344 = vrot.lane.b32.xlu0 %v1267, 16
      %v1345 = vpop.permute.xlu0 %1344
      %1346 = vrot.lane.b32.xlu0 %v1268, 16
      %v1347 = vpop.permute.xlu0 %1346
      %1348 = vrot.lane.b32.xlu0 %v1269, 16
      %v1349 = vpop.permute.xlu0 %1348
      %1350 = vrot.lane.b32.xlu0 %v1270, 16
      %v1351 = vpop.permute.xlu0 %1350
      %1352 = vrot.lane.b32.xlu0 %v1271, 16
      %v1353 = vpop.permute.xlu0 %1352
      %1354 = vrot.lane.b32.xlu0 %v1272, 16
      %v1355 = vpop.permute.xlu0 %1354
      %1356 = vrot.lane.b32.xlu0 %v1273, 16
      %v1357 = vpop.permute.xlu0 %1356
      %1358 = vrot.lane.b32.xlu0 %v1274, 16
      %v1359 = vpop.permute.xlu0 %1358
      %1360 = vrot.lane.b32.xlu0 %v1275, 16
      %v1361 = vpop.permute.xlu0 %1360
      %1362 = vrot.lane.b32.xlu0 %v1276, 16
      %v1363 = vpop.permute.xlu0 %1362
      %1364 = vrot.lane.b32.xlu0 %v1277, 16
      %v1365 = vpop.permute.xlu0 %1364
      %1366 = vrot.lane.b32.xlu0 %v1278, 16
      %v1367 = vpop.permute.xlu0 %1366
      %1368 = vrot.lane.b32.xlu0 %v1279, 16
      %v1369 = vpop.permute.xlu0 %1368
      %1370 = vrot.lane.b32.xlu0 %v1280, 16
      %v1371 = vpop.permute.xlu0 %1370
      %1372 = vrot.lane.b32.xlu0 %v1281, 16
      %v1373 = vpop.permute.xlu0 %1372
      %1374 = vrot.lane.b32.xlu0 %v1282, 16
      %v1375 = vpop.permute.xlu0 %1374
      %1376 = vrot.lane.b32.xlu0 %v1283, 16
      %v1377 = vpop.permute.xlu0 %1376
      %1378 = vrot.lane.b32.xlu0 %v1284, 16
      %v1379 = vpop.permute.xlu0 %1378
      %1380 = vrot.lane.b32.xlu0 %v1285, 16
      %v1381 = vpop.permute.xlu0 %1380
      %vm1414 = vcmask 162944
      %1415 = vst.msk [vmem:[#allocation3] sm:$0xff] %vm1414, %v1319
      %1416 = vst.msk [vmem:[#allocation3 + $0x8] sm:$0xff] %vm1414, %v1321
      %1417 = vst.msk [vmem:[#allocation3 + $0x10] sm:$0xff] %vm1414, %v1323
      %1418 = vst.msk [vmem:[#allocation3 + $0x18] sm:$0xff] %vm1414, %v1325
      %1419 = vst.msk [vmem:[#allocation3 + $0x20] sm:$0xff] %vm1414, %v1327
      %1420 = vst.msk [vmem:[#allocation3 + $0x28] sm:$0xff] %vm1414, %v1329
      %1421 = vst.msk [vmem:[#allocation3 + $0x30] sm:$0xff] %vm1414, %v1331
      %1422 = vst.msk [vmem:[#allocation3 + $0x38] sm:$0xff] %vm1414, %v1333
      %1423 = vst.msk [vmem:[#allocation3 + $0x40] sm:$0xff] %vm1414, %v1335
      %1424 = vst.msk [vmem:[#allocation3 + $0x48] sm:$0xff] %vm1414, %v1337
      %1425 = vst.msk [vmem:[#allocation3 + $0x50] sm:$0xff] %vm1414, %v1339
      %1426 = vst.msk [vmem:[#allocation3 + $0x58] sm:$0xff] %vm1414, %v1341
      %1427 = vst.msk [vmem:[#allocation3 + $0x60] sm:$0xff] %vm1414, %v1343
      %1428 = vst.msk [vmem:[#allocation3 + $0x68] sm:$0xff] %vm1414, %v1345
      %1429 = vst.msk [vmem:[#allocation3 + $0x70] sm:$0xff] %vm1414, %v1347
      %1430 = vst.msk [vmem:[#allocation3 + $0x78] sm:$0xff] %vm1414, %v1349
      %1431 = vst.msk [vmem:[#allocation3 + $0x80] sm:$0xff] %vm1414, %v1351
      %1432 = vst.msk [vmem:[#allocation3 + $0x88] sm:$0xff] %vm1414, %v1353
      %1433 = vst.msk [vmem:[#allocation3 + $0x90] sm:$0xff] %vm1414, %v1355
      %1434 = vst.msk [vmem:[#allocation3 + $0x98] sm:$0xff] %vm1414, %v1357
      %1435 = vst.msk [vmem:[#allocation3 + $0xa0] sm:$0xff] %vm1414, %v1359
      %1436 = vst.msk [vmem:[#allocation3 + $0xa8] sm:$0xff] %vm1414, %v1361
      %1437 = vst.msk [vmem:[#allocation3 + $0xb0] sm:$0xff] %vm1414, %v1363
      %1438 = vst.msk [vmem:[#allocation3 + $0xb8] sm:$0xff] %vm1414, %v1365
      %1439 = vst.msk [vmem:[#allocation3 + $0xc0] sm:$0xff] %vm1414, %v1367
      %1440 = vst.msk [vmem:[#allocation3 + $0xc8] sm:$0xff] %vm1414, %v1369
      %1441 = vst.msk [vmem:[#allocation3 + $0xd0] sm:$0xff] %vm1414, %v1371
      %1442 = vst.msk [vmem:[#allocation3 + $0xd8] sm:$0xff] %vm1414, %v1373
      %1443 = vst.msk [vmem:[#allocation3 + $0xe0] sm:$0xff] %vm1414, %v1375
      %1444 = vst.msk [vmem:[#allocation3 + $0xe8] sm:$0xff] %vm1414, %v1377
      %1445 = vst.msk [vmem:[#allocation3 + $0xf0] sm:$0xff] %vm1414, %v1379
      %1446 = vst.msk [vmem:[#allocation3 + $0xf8] sm:$0xff] %vm1414, %v1381
      %v1447 = vld [vmem:[%s578 + $0x2] sm:$0xff]
      %v1448 = vld [vmem:[%s578 + $0xa] sm:$0xff]
      %v1449 = vld [vmem:[%s578 + $0x1a] sm:$0xff]
      %v1450 = vld [vmem:[%s578 + $0x22] sm:$0xff]
      %v1451 = vld [vmem:[%s578 + $0x32] sm:$0xff]
      %v1452 = vld [vmem:[%s578 + $0x3a] sm:$0xff]
      %v1453 = vld [vmem:[%s578 + $0x4a] sm:$0xff]
      %v1454 = vld [vmem:[%s578 + $0x52] sm:$0xff]
      %v1455 = vld [vmem:[%s578 + $0x62] sm:$0xff]
      %v1456 = vld [vmem:[%s578 + $0x6a] sm:$0xff]
      %v1457 = vld [vmem:[%s578 + $0x7a] sm:$0xff]
      %v1458 = vld [vmem:[%s578 + $0x82] sm:$0xff]
      %v1459 = vld [vmem:[%s578 + $0x92] sm:$0xff]
      %v1460 = vld [vmem:[%s578 + $0x9a] sm:$0xff]
      %v1461 = vld [vmem:[%s578 + $0xaa] sm:$0xff]
      %v1462 = vld [vmem:[%s578 + $0xb2] sm:$0xff]
      %v1463 = vld [vmem:[%s578 + $0xc2] sm:$0xff]
      %v1464 = vld [vmem:[%s578 + $0xca] sm:$0xff]
      %v1465 = vld [vmem:[%s578 + $0xda] sm:$0xff]
      %v1466 = vld [vmem:[%s578 + $0xe2] sm:$0xff]
      %v1467 = vld [vmem:[%s578 + $0xf2] sm:$0xff]
      %v1468 = vld [vmem:[%s578 + $0xfa] sm:$0xff]
      %v1469 = vld [vmem:[%s578 + $0x10a] sm:$0xff]
      %v1470 = vld [vmem:[%s578 + $0x112] sm:$0xff]
      %v1471 = vld [vmem:[%s578 + $0x122] sm:$0xff]
      %v1472 = vld [vmem:[%s578 + $0x12a] sm:$0xff]
      %v1473 = vld [vmem:[%s578 + $0x13a] sm:$0xff]
      %v1474 = vld [vmem:[%s578 + $0x142] sm:$0xff]
      %v1475 = vld [vmem:[%s578 + $0x152] sm:$0xff]
      %v1476 = vld [vmem:[%s578 + $0x15a] sm:$0xff]
      %v1477 = vld [vmem:[%s578 + $0x16a] sm:$0xff]
      %v1478 = vld [vmem:[%s578 + $0x172] sm:$0xff]
      %1511 = vrot.lane.b32.xlu0 %v1447, 20
      %v1512 = vpop.permute.xlu0 %1511
      %1513 = vrot.lane.b32.xlu0 %v1448, 20
      %v1514 = vpop.permute.xlu0 %1513
      %1515 = vrot.lane.b32.xlu0 %v1449, 20
      %v1516 = vpop.permute.xlu0 %1515
      %1517 = vrot.lane.b32.xlu0 %v1450, 20
      %v1518 = vpop.permute.xlu0 %1517
      %1519 = vrot.lane.b32.xlu0 %v1451, 20
      %v1520 = vpop.permute.xlu0 %1519
      %1521 = vrot.lane.b32.xlu0 %v1452, 20
      %v1522 = vpop.permute.xlu0 %1521
      %1523 = vrot.lane.b32.xlu0 %v1453, 20
      %v1524 = vpop.permute.xlu0 %1523
      %1525 = vrot.lane.b32.xlu0 %v1454, 20
      %v1526 = vpop.permute.xlu0 %1525
      %1527 = vrot.lane.b32.xlu0 %v1455, 20
      %v1528 = vpop.permute.xlu0 %1527
      %1529 = vrot.lane.b32.xlu0 %v1456, 20
      %v1530 = vpop.permute.xlu0 %1529
      %1531 = vrot.lane.b32.xlu0 %v1457, 20
      %v1532 = vpop.permute.xlu0 %1531
      %1533 = vrot.lane.b32.xlu0 %v1458, 20
      %v1534 = vpop.permute.xlu0 %1533
      %1535 = vrot.lane.b32.xlu0 %v1459, 20
      %v1536 = vpop.permute.xlu0 %1535
      %1537 = vrot.lane.b32.xlu0 %v1460, 20
      %v1538 = vpop.permute.xlu0 %1537
      %1539 = vrot.lane.b32.xlu0 %v1461, 20
      %v1540 = vpop.permute.xlu0 %1539
      %1541 = vrot.lane.b32.xlu0 %v1462, 20
      %v1542 = vpop.permute.xlu0 %1541
      %1543 = vrot.lane.b32.xlu0 %v1463, 20
      %v1544 = vpop.permute.xlu0 %1543
      %1545 = vrot.lane.b32.xlu0 %v1464, 20
      %v1546 = vpop.permute.xlu0 %1545
      %1547 = vrot.lane.b32.xlu0 %v1465, 20
      %v1548 = vpop.permute.xlu0 %1547
      %1549 = vrot.lane.b32.xlu0 %v1466, 20
      %v1550 = vpop.permute.xlu0 %1549
      %1551 = vrot.lane.b32.xlu0 %v1467, 20
      %v1552 = vpop.permute.xlu0 %1551
      %1553 = vrot.lane.b32.xlu0 %v1468, 20
      %v1554 = vpop.permute.xlu0 %1553
      %1555 = vrot.lane.b32.xlu0 %v1469, 20
      %v1556 = vpop.permute.xlu0 %1555
      %1557 = vrot.lane.b32.xlu0 %v1470, 20
      %v1558 = vpop.permute.xlu0 %1557
      %1559 = vrot.lane.b32.xlu0 %v1471, 20
      %v1560 = vpop.permute.xlu0 %1559
      %1561 = vrot.lane.b32.xlu0 %v1472, 20
      %v1562 = vpop.permute.xlu0 %1561
      %1563 = vrot.lane.b32.xlu0 %v1473, 20
      %v1564 = vpop.permute.xlu0 %1563
      %1565 = vrot.lane.b32.xlu0 %v1474, 20
      %v1566 = vpop.permute.xlu0 %1565
      %1567 = vrot.lane.b32.xlu0 %v1475, 20
      %v1568 = vpop.permute.xlu0 %1567
      %1569 = vrot.lane.b32.xlu0 %v1476, 20
      %v1570 = vpop.permute.xlu0 %1569
      %1571 = vrot.lane.b32.xlu0 %v1477, 20
      %v1572 = vpop.permute.xlu0 %1571
      %1573 = vrot.lane.b32.xlu0 %v1478, 20
      %v1574 = vpop.permute.xlu0 %1573
      %vm1607 = vcmask 195744
      %1608 = vst.msk [vmem:[#allocation3] sm:$0xff] %vm1607, %v1512
      %1609 = vst.msk [vmem:[#allocation3 + $0x8] sm:$0xff] %vm1607, %v1514
      %1610 = vst.msk [vmem:[#allocation3 + $0x10] sm:$0xff] %vm1607, %v1516
      %1611 = vst.msk [vmem:[#allocation3 + $0x18] sm:$0xff] %vm1607, %v1518
      %1612 = vst.msk [vmem:[#allocation3 + $0x20] sm:$0xff] %vm1607, %v1520
      %1613 = vst.msk [vmem:[#allocation3 + $0x28] sm:$0xff] %vm1607, %v1522
      %1614 = vst.msk [vmem:[#allocation3 + $0x30] sm:$0xff] %vm1607, %v1524
      %1615 = vst.msk [vmem:[#allocation3 + $0x38] sm:$0xff] %vm1607, %v1526
      %1616 = vst.msk [vmem:[#allocation3 + $0x40] sm:$0xff] %vm1607, %v1528
      %1617 = vst.msk [vmem:[#allocation3 + $0x48] sm:$0xff] %vm1607, %v1530
      %1618 = vst.msk [vmem:[#allocation3 + $0x50] sm:$0xff] %vm1607, %v1532
      %1619 = vst.msk [vmem:[#allocation3 + $0x58] sm:$0xff] %vm1607, %v1534
      %1620 = vst.msk [vmem:[#allocation3 + $0x60] sm:$0xff] %vm1607, %v1536
      %1621 = vst.msk [vmem:[#allocation3 + $0x68] sm:$0xff] %vm1607, %v1538
      %1622 = vst.msk [vmem:[#allocation3 + $0x70] sm:$0xff] %vm1607, %v1540
      %1623 = vst.msk [vmem:[#allocation3 + $0x78] sm:$0xff] %vm1607, %v1542
      %1624 = vst.msk [vmem:[#allocation3 + $0x80] sm:$0xff] %vm1607, %v1544
      %1625 = vst.msk [vmem:[#allocation3 + $0x88] sm:$0xff] %vm1607, %v1546
      %1626 = vst.msk [vmem:[#allocation3 + $0x90] sm:$0xff] %vm1607, %v1548
      %1627 = vst.msk [vmem:[#allocation3 + $0x98] sm:$0xff] %vm1607, %v1550
      %1628 = vst.msk [vmem:[#allocation3 + $0xa0] sm:$0xff] %vm1607, %v1552
      %1629 = vst.msk [vmem:[#allocation3 + $0xa8] sm:$0xff] %vm1607, %v1554
      %1630 = vst.msk [vmem:[#allocation3 + $0xb0] sm:$0xff] %vm1607, %v1556
      %1631 = vst.msk [vmem:[#allocation3 + $0xb8] sm:$0xff] %vm1607, %v1558
      %1632 = vst.msk [vmem:[#allocation3 + $0xc0] sm:$0xff] %vm1607, %v1560
      %1633 = vst.msk [vmem:[#allocation3 + $0xc8] sm:$0xff] %vm1607, %v1562
      %1634 = vst.msk [vmem:[#allocation3 + $0xd0] sm:$0xff] %vm1607, %v1564
      %1635 = vst.msk [vmem:[#allocation3 + $0xd8] sm:$0xff] %vm1607, %v1566
      %1636 = vst.msk [vmem:[#allocation3 + $0xe0] sm:$0xff] %vm1607, %v1568
      %1637 = vst.msk [vmem:[#allocation3 + $0xe8] sm:$0xff] %vm1607, %v1570
      %1638 = vst.msk [vmem:[#allocation3 + $0xf0] sm:$0xff] %vm1607, %v1572
      %1639 = vst.msk [vmem:[#allocation3 + $0xf8] sm:$0xff] %vm1607, %v1574
      %s1640 = scalar_lea.vmem [#allocation2], 48
      %v1641 = vld [vmem:[%s1640] sm:$0xff]
      %v1642 = vld [vmem:[%s1640 + $0x8] sm:$0xff]
      %v1643 = vld [vmem:[%s1640 + $0x18] sm:$0xff]
      %v1644 = vld [vmem:[%s1640 + $0x20] sm:$0xff]
      %v1645 = vld [vmem:[%s1640 + $0x30] sm:$0xff]
      %v1646 = vld [vmem:[%s1640 + $0x38] sm:$0xff]
      %v1647 = vld [vmem:[%s1640 + $0x48] sm:$0xff]
      %v1648 = vld [vmem:[%s1640 + $0x50] sm:$0xff]
      %v1649 = vld [vmem:[%s1640 + $0x60] sm:$0xff]
      %v1650 = vld [vmem:[%s1640 + $0x68] sm:$0xff]
      %v1651 = vld [vmem:[%s1640 + $0x78] sm:$0xff]
      %v1652 = vld [vmem:[%s1640 + $0x80] sm:$0xff]
      %v1653 = vld [vmem:[%s1640 + $0x90] sm:$0xff]
      %v1654 = vld [vmem:[%s1640 + $0x98] sm:$0xff]
      %v1655 = vld [vmem:[%s1640 + $0xa8] sm:$0xff]
      %v1656 = vld [vmem:[%s1640 + $0xb0] sm:$0xff]
      %v1657 = vld [vmem:[%s1640 + $0xc0] sm:$0xff]
      %v1658 = vld [vmem:[%s1640 + $0xc8] sm:$0xff]
      %v1659 = vld [vmem:[%s1640 + $0xd8] sm:$0xff]
      %v1660 = vld [vmem:[%s1640 + $0xe0] sm:$0xff]
      %v1661 = vld [vmem:[%s1640 + $0xf0] sm:$0xff]
      %v1662 = vld [vmem:[%s1640 + $0xf8] sm:$0xff]
      %v1663 = vld [vmem:[%s1640 + $0x108] sm:$0xff]
      %v1664 = vld [vmem:[%s1640 + $0x110] sm:$0xff]
      %v1665 = vld [vmem:[%s1640 + $0x120] sm:$0xff]
      %v1666 = vld [vmem:[%s1640 + $0x128] sm:$0xff]
      %v1667 = vld [vmem:[%s1640 + $0x138] sm:$0xff]
      %v1668 = vld [vmem:[%s1640 + $0x140] sm:$0xff]
      %v1669 = vld [vmem:[%s1640 + $0x150] sm:$0xff]
      %v1670 = vld [vmem:[%s1640 + $0x158] sm:$0xff]
      %v1671 = vld [vmem:[%s1640 + $0x168] sm:$0xff]
      %v1672 = vld [vmem:[%s1640 + $0x170] sm:$0xff]
      %1705 = vrot.lane.b32.xlu0 %v1641, 24
      %v1706 = vpop.permute.xlu0 %1705
      %1707 = vrot.lane.b32.xlu0 %v1642, 24
      %v1708 = vpop.permute.xlu0 %1707
      %1709 = vrot.lane.b32.xlu0 %v1643, 24
      %v1710 = vpop.permute.xlu0 %1709
      %1711 = vrot.lane.b32.xlu0 %v1644, 24
      %v1712 = vpop.permute.xlu0 %1711
      %1713 = vrot.lane.b32.xlu0 %v1645, 24
      %v1714 = vpop.permute.xlu0 %1713
      %1715 = vrot.lane.b32.xlu0 %v1646, 24
      %v1716 = vpop.permute.xlu0 %1715
      %1717 = vrot.lane.b32.xlu0 %v1647, 24
      %v1718 = vpop.permute.xlu0 %1717
      %1719 = vrot.lane.b32.xlu0 %v1648, 24
      %v1720 = vpop.permute.xlu0 %1719
      %1721 = vrot.lane.b32.xlu0 %v1649, 24
      %v1722 = vpop.permute.xlu0 %1721
      %1723 = vrot.lane.b32.xlu0 %v1650, 24
      %v1724 = vpop.permute.xlu0 %1723
      %1725 = vrot.lane.b32.xlu0 %v1651, 24
      %v1726 = vpop.permute.xlu0 %1725
      %1727 = vrot.lane.b32.xlu0 %v1652, 24
      %v1728 = vpop.permute.xlu0 %1727
      %1729 = vrot.lane.b32.xlu0 %v1653, 24
      %v1730 = vpop.permute.xlu0 %1729
      %1731 = vrot.lane.b32.xlu0 %v1654, 24
      %v1732 = vpop.permute.xlu0 %1731
      %1733 = vrot.lane.b32.xlu0 %v1655, 24
      %v1734 = vpop.permute.xlu0 %1733
      %1735 = vrot.lane.b32.xlu0 %v1656, 24
      %v1736 = vpop.permute.xlu0 %1735
      %1737 = vrot.lane.b32.xlu0 %v1657, 24
      %v1738 = vpop.permute.xlu0 %1737
      %1739 = vrot.lane.b32.xlu0 %v1658, 24
      %v1740 = vpop.permute.xlu0 %1739
      %1741 = vrot.lane.b32.xlu0 %v1659, 24
      %v1742 = vpop.permute.xlu0 %1741
      %1743 = vrot.lane.b32.xlu0 %v1660, 24
      %v1744 = vpop.permute.xlu0 %1743
      %1745 = vrot.lane.b32.xlu0 %v1661, 24
      %v1746 = vpop.permute.xlu0 %1745
      %1747 = vrot.lane.b32.xlu0 %v1662, 24
      %v1748 = vpop.permute.xlu0 %1747
      %1749 = vrot.lane.b32.xlu0 %v1663, 24
      %v1750 = vpop.permute.xlu0 %1749
      %1751 = vrot.lane.b32.xlu0 %v1664, 24
      %v1752 = vpop.permute.xlu0 %1751
      %1753 = vrot.lane.b32.xlu0 %v1665, 24
      %v1754 = vpop.permute.xlu0 %1753
      %1755 = vrot.lane.b32.xlu0 %v1666, 24
      %v1756 = vpop.permute.xlu0 %1755
      %1757 = vrot.lane.b32.xlu0 %v1667, 24
      %v1758 = vpop.permute.xlu0 %1757
      %1759 = vrot.lane.b32.xlu0 %v1668, 24
      %v1760 = vpop.permute.xlu0 %1759
      %1761 = vrot.lane.b32.xlu0 %v1669, 24
      %v1762 = vpop.permute.xlu0 %1761
      %1763 = vrot.lane.b32.xlu0 %v1670, 24
      %v1764 = vpop.permute.xlu0 %1763
      %1765 = vrot.lane.b32.xlu0 %v1671, 24
      %v1766 = vpop.permute.xlu0 %1765
      %1767 = vrot.lane.b32.xlu0 %v1672, 24
      %v1768 = vpop.permute.xlu0 %1767
      %vm1801 = vcmask 228544
      %1802 = vst.msk [vmem:[#allocation3] sm:$0xff] %vm1801, %v1706
      %1803 = vst.msk [vmem:[#allocation3 + $0x8] sm:$0xff] %vm1801, %v1708
      %1804 = vst.msk [vmem:[#allocation3 + $0x10] sm:$0xff] %vm1801, %v1710
      %1805 = vst.msk [vmem:[#allocation3 + $0x18] sm:$0xff] %vm1801, %v1712
      %1806 = vst.msk [vmem:[#allocation3 + $0x20] sm:$0xff] %vm1801, %v1714
      %1807 = vst.msk [vmem:[#allocation3 + $0x28] sm:$0xff] %vm1801, %v1716
      %1808 = vst.msk [vmem:[#allocation3 + $0x30] sm:$0xff] %vm1801, %v1718
      %1809 = vst.msk [vmem:[#allocation3 + $0x38] sm:$0xff] %vm1801, %v1720
      %1810 = vst.msk [vmem:[#allocation3 + $0x40] sm:$0xff] %vm1801, %v1722
      %1811 = vst.msk [vmem:[#allocation3 + $0x48] sm:$0xff] %vm1801, %v1724
      %1812 = vst.msk [vmem:[#allocation3 + $0x50] sm:$0xff] %vm1801, %v1726
      %1813 = vst.msk [vmem:[#allocation3 + $0x58] sm:$0xff] %vm1801, %v1728
      %1814 = vst.msk [vmem:[#allocation3 + $0x60] sm:$0xff] %vm1801, %v1730
      %1815 = vst.msk [vmem:[#allocation3 + $0x68] sm:$0xff] %vm1801, %v1732
      %1816 = vst.msk [vmem:[#allocation3 + $0x70] sm:$0xff] %vm1801, %v1734
      %1817 = vst.msk [vmem:[#allocation3 + $0x78] sm:$0xff] %vm1801, %v1736
      %1818 = vst.msk [vmem:[#allocation3 + $0x80] sm:$0xff] %vm1801, %v1738
      %1819 = vst.msk [vmem:[#allocation3 + $0x88] sm:$0xff] %vm1801, %v1740
      %1820 = vst.msk [vmem:[#allocation3 + $0x90] sm:$0xff] %vm1801, %v1742
      %1821 = vst.msk [vmem:[#allocation3 + $0x98] sm:$0xff] %vm1801, %v1744
      %1822 = vst.msk [vmem:[#allocation3 + $0xa0] sm:$0xff] %vm1801, %v1746
      %1823 = vst.msk [vmem:[#allocation3 + $0xa8] sm:$0xff] %vm1801, %v1748
      %1824 = vst.msk [vmem:[#allocation3 + $0xb0] sm:$0xff] %vm1801, %v1750
      %1825 = vst.msk [vmem:[#allocation3 + $0xb8] sm:$0xff] %vm1801, %v1752
      %1826 = vst.msk [vmem:[#allocation3 + $0xc0] sm:$0xff] %vm1801, %v1754
      %1827 = vst.msk [vmem:[#allocation3 + $0xc8] sm:$0xff] %vm1801, %v1756
      %1828 = vst.msk [vmem:[#allocation3 + $0xd0] sm:$0xff] %vm1801, %v1758
      %1829 = vst.msk [vmem:[#allocation3 + $0xd8] sm:$0xff] %vm1801, %v1760
      %1830 = vst.msk [vmem:[#allocation3 + $0xe0] sm:$0xff] %vm1801, %v1762
      %1831 = vst.msk [vmem:[#allocation3 + $0xe8] sm:$0xff] %vm1801, %v1764
      %1832 = vst.msk [vmem:[#allocation3 + $0xf0] sm:$0xff] %vm1801, %v1766
      %1833 = vst.msk [vmem:[#allocation3 + $0xf8] sm:$0xff] %vm1801, %v1768
      %v1834 = vld [vmem:[%s1640 + $0x1] sm:$0xff]
      %v1835 = vld [vmem:[%s1640 + $0x9] sm:$0xff]
      %v1836 = vld [vmem:[%s1640 + $0x19] sm:$0xff]
      %v1837 = vld [vmem:[%s1640 + $0x21] sm:$0xff]
      %v1838 = vld [vmem:[%s1640 + $0x31] sm:$0xff]
      %v1839 = vld [vmem:[%s1640 + $0x39] sm:$0xff]
      %v1840 = vld [vmem:[%s1640 + $0x49] sm:$0xff]
      %v1841 = vld [vmem:[%s1640 + $0x51] sm:$0xff]
      %v1842 = vld [vmem:[%s1640 + $0x61] sm:$0xff]
      %v1843 = vld [vmem:[%s1640 + $0x69] sm:$0xff]
      %v1844 = vld [vmem:[%s1640 + $0x79] sm:$0xff]
      %v1845 = vld [vmem:[%s1640 + $0x81] sm:$0xff]
      %v1846 = vld [vmem:[%s1640 + $0x91] sm:$0xff]
      %v1847 = vld [vmem:[%s1640 + $0x99] sm:$0xff]
      %v1848 = vld [vmem:[%s1640 + $0xa9] sm:$0xff]
      %v1849 = vld [vmem:[%s1640 + $0xb1] sm:$0xff]
      %v1850 = vld [vmem:[%s1640 + $0xc1] sm:$0xff]
      %v1851 = vld [vmem:[%s1640 + $0xc9] sm:$0xff]
      %v1852 = vld [vmem:[%s1640 + $0xd9] sm:$0xff]
      %v1853 = vld [vmem:[%s1640 + $0xe1] sm:$0xff]
      %v1854 = vld [vmem:[%s1640 + $0xf1] sm:$0xff]
      %v1855 = vld [vmem:[%s1640 + $0xf9] sm:$0xff]
      %v1856 = vld [vmem:[%s1640 + $0x109] sm:$0xff]
      %v1857 = vld [vmem:[%s1640 + $0x111] sm:$0xff]
      %v1858 = vld [vmem:[%s1640 + $0x121] sm:$0xff]
      %v1859 = vld [vmem:[%s1640 + $0x129] sm:$0xff]
      %v1860 = vld [vmem:[%s1640 + $0x139] sm:$0xff]
      %v1861 = vld [vmem:[%s1640 + $0x141] sm:$0xff]
      %v1862 = vld [vmem:[%s1640 + $0x151] sm:$0xff]
      %v1863 = vld [vmem:[%s1640 + $0x159] sm:$0xff]
      %v1864 = vld [vmem:[%s1640 + $0x169] sm:$0xff]
      %v1865 = vld [vmem:[%s1640 + $0x171] sm:$0xff]
      %1898 = vrot.lane.b32.xlu0 %v1834, 28
      %v1899 = vpop.permute.xlu0 %1898
      %1900 = vrot.lane.b32.xlu0 %v1835, 28
      %v1901 = vpop.permute.xlu0 %1900
      %1902 = vrot.lane.b32.xlu0 %v1836, 28
      %v1903 = vpop.permute.xlu0 %1902
      %1904 = vrot.lane.b32.xlu0 %v1837, 28
      %v1905 = vpop.permute.xlu0 %1904
      %1906 = vrot.lane.b32.xlu0 %v1838, 28
      %v1907 = vpop.permute.xlu0 %1906
      %1908 = vrot.lane.b32.xlu0 %v1839, 28
      %v1909 = vpop.permute.xlu0 %1908
      %1910 = vrot.lane.b32.xlu0 %v1840, 28
      %v1911 = vpop.permute.xlu0 %1910
      %1912 = vrot.lane.b32.xlu0 %v1841, 28
      %v1913 = vpop.permute.xlu0 %1912
      %1914 = vrot.lane.b32.xlu0 %v1842, 28
      %v1915 = vpop.permute.xlu0 %1914
      %1916 = vrot.lane.b32.xlu0 %v1843, 28
      %v1917 = vpop.permute.xlu0 %1916
      %1918 = vrot.lane.b32.xlu0 %v1844, 28
      %v1919 = vpop.permute.xlu0 %1918
      %1920 = vrot.lane.b32.xlu0 %v1845, 28
      %v1921 = vpop.permute.xlu0 %1920
      %1922 = vrot.lane.b32.xlu0 %v1846, 28
      %v1923 = vpop.permute.xlu0 %1922
      %1924 = vrot.lane.b32.xlu0 %v1847, 28
      %v1925 = vpop.permute.xlu0 %1924
      %1926 = vrot.lane.b32.xlu0 %v1848, 28
      %v1927 = vpop.permute.xlu0 %1926
      %1928 = vrot.lane.b32.xlu0 %v1849, 28
      %v1929 = vpop.permute.xlu0 %1928
      %1930 = vrot.lane.b32.xlu0 %v1850, 28
      %v1931 = vpop.permute.xlu0 %1930
      %1932 = vrot.lane.b32.xlu0 %v1851, 28
      %v1933 = vpop.permute.xlu0 %1932
      %1934 = vrot.lane.b32.xlu0 %v1852, 28
      %v1935 = vpop.permute.xlu0 %1934
      %1936 = vrot.lane.b32.xlu0 %v1853, 28
      %v1937 = vpop.permute.xlu0 %1936
      %1938 = vrot.lane.b32.xlu0 %v1854, 28
      %v1939 = vpop.permute.xlu0 %1938
      %1940 = vrot.lane.b32.xlu0 %v1855, 28
      %v1941 = vpop.permute.xlu0 %1940
      %1942 = vrot.lane.b32.xlu0 %v1856, 28
      %v1943 = vpop.permute.xlu0 %1942
      %1944 = vrot.lane.b32.xlu0 %v1857, 28
      %v1945 = vpop.permute.xlu0 %1944
      %1946 = vrot.lane.b32.xlu0 %v1858, 28
      %v1947 = vpop.permute.xlu0 %1946
      %1948 = vrot.lane.b32.xlu0 %v1859, 28
      %v1949 = vpop.permute.xlu0 %1948
      %1950 = vrot.lane.b32.xlu0 %v1860, 28
      %v1951 = vpop.permute.xlu0 %1950
      %1952 = vrot.lane.b32.xlu0 %v1861, 28
      %v1953 = vpop.permute.xlu0 %1952
      %1954 = vrot.lane.b32.xlu0 %v1862, 28
      %v1955 = vpop.permute.xlu0 %1954
      %1956 = vrot.lane.b32.xlu0 %v1863, 28
      %v1957 = vpop.permute.xlu0 %1956
      %1958 = vrot.lane.b32.xlu0 %v1864, 28
      %v1959 = vpop.permute.xlu0 %1958
      %1960 = vrot.lane.b32.xlu0 %v1865, 28
      %v1961 = vpop.permute.xlu0 %1960
      %vm1994 = vcmask 261344
      %1995 = vst.msk [vmem:[#allocation3] sm:$0xff] %vm1994, %v1899
      %1996 = vst.msk [vmem:[#allocation3 + $0x8] sm:$0xff] %vm1994, %v1901
      %1997 = vst.msk [vmem:[#allocation3 + $0x10] sm:$0xff] %vm1994, %v1903
      %1998 = vst.msk [vmem:[#allocation3 + $0x18] sm:$0xff] %vm1994, %v1905
      %1999 = vst.msk [vmem:[#allocation3 + $0x20] sm:$0xff] %vm1994, %v1907
      %2000 = vst.msk [vmem:[#allocation3 + $0x28] sm:$0xff] %vm1994, %v1909
      %2001 = vst.msk [vmem:[#allocation3 + $0x30] sm:$0xff] %vm1994, %v1911
      %2002 = vst.msk [vmem:[#allocation3 + $0x38] sm:$0xff] %vm1994, %v1913
      %2003 = vst.msk [vmem:[#allocation3 + $0x40] sm:$0xff] %vm1994, %v1915
      %2004 = vst.msk [vmem:[#allocation3 + $0x48] sm:$0xff] %vm1994, %v1917
      %2005 = vst.msk [vmem:[#allocation3 + $0x50] sm:$0xff] %vm1994, %v1919
      %2006 = vst.msk [vmem:[#allocation3 + $0x58] sm:$0xff] %vm1994, %v1921
      %2007 = vst.msk [vmem:[#allocation3 + $0x60] sm:$0xff] %vm1994, %v1923
      %2008 = vst.msk [vmem:[#allocation3 + $0x68] sm:$0xff] %vm1994, %v1925
      %2009 = vst.msk [vmem:[#allocation3 + $0x70] sm:$0xff] %vm1994, %v1927
      %2010 = vst.msk [vmem:[#allocation3 + $0x78] sm:$0xff] %vm1994, %v1929
      %2011 = vst.msk [vmem:[#allocation3 + $0x80] sm:$0xff] %vm1994, %v1931
      %2012 = vst.msk [vmem:[#allocation3 + $0x88] sm:$0xff] %vm1994, %v1933
      %2013 = vst.msk [vmem:[#allocation3 + $0x90] sm:$0xff] %vm1994, %v1935
      %2014 = vst.msk [vmem:[#allocation3 + $0x98] sm:$0xff] %vm1994, %v1937
      %2015 = vst.msk [vmem:[#allocation3 + $0xa0] sm:$0xff] %vm1994, %v1939
      %2016 = vst.msk [vmem:[#allocation3 + $0xa8] sm:$0xff] %vm1994, %v1941
      %2017 = vst.msk [vmem:[#allocation3 + $0xb0] sm:$0xff] %vm1994, %v1943
      %2018 = vst.msk [vmem:[#allocation3 + $0xb8] sm:$0xff] %vm1994, %v1945
      %2019 = vst.msk [vmem:[#allocation3 + $0xc0] sm:$0xff] %vm1994, %v1947
      %2020 = vst.msk [vmem:[#allocation3 + $0xc8] sm:$0xff] %vm1994, %v1949
      %2021 = vst.msk [vmem:[#allocation3 + $0xd0] sm:$0xff] %vm1994, %v1951
      %2022 = vst.msk [vmem:[#allocation3 + $0xd8] sm:$0xff] %vm1994, %v1953
      %2023 = vst.msk [vmem:[#allocation3 + $0xe0] sm:$0xff] %vm1994, %v1955
      %2024 = vst.msk [vmem:[#allocation3 + $0xe8] sm:$0xff] %vm1994, %v1957
      %2025 = vst.msk [vmem:[#allocation3 + $0xf0] sm:$0xff] %vm1994, %v1959
      %2026 = vst.msk [vmem:[#allocation3 + $0xf8] sm:$0xff] %vm1994, %v1961
      %v2027 = vld [vmem:[%s1640 + $0x2] sm:$0xff]
      %v2028 = vld [vmem:[%s1640 + $0xa] sm:$0xff]
      %v2029 = vld [vmem:[%s1640 + $0x1a] sm:$0xff]
      %v2030 = vld [vmem:[%s1640 + $0x22] sm:$0xff]
      %v2031 = vld [vmem:[%s1640 + $0x32] sm:$0xff]
      %v2032 = vld [vmem:[%s1640 + $0x3a] sm:$0xff]
      %v2033 = vld [vmem:[%s1640 + $0x4a] sm:$0xff]
      %v2034 = vld [vmem:[%s1640 + $0x52] sm:$0xff]
      %v2035 = vld [vmem:[%s1640 + $0x62] sm:$0xff]
      %v2036 = vld [vmem:[%s1640 + $0x6a] sm:$0xff]
      %v2037 = vld [vmem:[%s1640 + $0x7a] sm:$0xff]
      %v2038 = vld [vmem:[%s1640 + $0x82] sm:$0xff]
      %v2039 = vld [vmem:[%s1640 + $0x92] sm:$0xff]
      %v2040 = vld [vmem:[%s1640 + $0x9a] sm:$0xff]
      %v2041 = vld [vmem:[%s1640 + $0xaa] sm:$0xff]
      %v2042 = vld [vmem:[%s1640 + $0xb2] sm:$0xff]
      %v2043 = vld [vmem:[%s1640 + $0xc2] sm:$0xff]
      %v2044 = vld [vmem:[%s1640 + $0xca] sm:$0xff]
      %v2045 = vld [vmem:[%s1640 + $0xda] sm:$0xff]
      %v2046 = vld [vmem:[%s1640 + $0xe2] sm:$0xff]
      %v2047 = vld [vmem:[%s1640 + $0xf2] sm:$0xff]
      %v2048 = vld [vmem:[%s1640 + $0xfa] sm:$0xff]
      %v2049 = vld [vmem:[%s1640 + $0x10a] sm:$0xff]
      %v2050 = vld [vmem:[%s1640 + $0x112] sm:$0xff]
      %v2051 = vld [vmem:[%s1640 + $0x122] sm:$0xff]
      %v2052 = vld [vmem:[%s1640 + $0x12a] sm:$0xff]
      %v2053 = vld [vmem:[%s1640 + $0x13a] sm:$0xff]
      %v2054 = vld [vmem:[%s1640 + $0x142] sm:$0xff]
      %v2055 = vld [vmem:[%s1640 + $0x152] sm:$0xff]
      %v2056 = vld [vmem:[%s1640 + $0x15a] sm:$0xff]
      %v2057 = vld [vmem:[%s1640 + $0x16a] sm:$0xff]
      %v2058 = vld [vmem:[%s1640 + $0x172] sm:$0xff]
      %2091 = vrot.lane.b32.xlu0 %v2027, 32
      %v2092 = vpop.permute.xlu0 %2091
      %2093 = vrot.lane.b32.xlu0 %v2028, 32
      %v2094 = vpop.permute.xlu0 %2093
      %2095 = vrot.lane.b32.xlu0 %v2029, 32
      %v2096 = vpop.permute.xlu0 %2095
      %2097 = vrot.lane.b32.xlu0 %v2030, 32
      %v2098 = vpop.permute.xlu0 %2097
      %2099 = vrot.lane.b32.xlu0 %v2031, 32
      %v2100 = vpop.permute.xlu0 %2099
      %2101 = vrot.lane.b32.xlu0 %v2032, 32
      %v2102 = vpop.permute.xlu0 %2101
      %2103 = vrot.lane.b32.xlu0 %v2033, 32
      %v2104 = vpop.permute.xlu0 %2103
      %2105 = vrot.lane.b32.xlu0 %v2034, 32
      %v2106 = vpop.permute.xlu0 %2105
      %2107 = vrot.lane.b32.xlu0 %v2035, 32
      %v2108 = vpop.permute.xlu0 %2107
      %2109 = vrot.lane.b32.xlu0 %v2036, 32
      %v2110 = vpop.permute.xlu0 %2109
      %2111 = vrot.lane.b32.xlu0 %v2037, 32
      %v2112 = vpop.permute.xlu0 %2111
      %2113 = vrot.lane.b32.xlu0 %v2038, 32
      %v2114 = vpop.permute.xlu0 %2113
      %2115 = vrot.lane.b32.xlu0 %v2039, 32
      %v2116 = vpop.permute.xlu0 %2115
      %2117 = vrot.lane.b32.xlu0 %v2040, 32
      %v2118 = vpop.permute.xlu0 %2117
      %2119 = vrot.lane.b32.xlu0 %v2041, 32
      %v2120 = vpop.permute.xlu0 %2119
      %2121 = vrot.lane.b32.xlu0 %v2042, 32
      %v2122 = vpop.permute.xlu0 %2121
      %2123 = vrot.lane.b32.xlu0 %v2043, 32
      %v2124 = vpop.permute.xlu0 %2123
      %2125 = vrot.lane.b32.xlu0 %v2044, 32
      %v2126 = vpop.permute.xlu0 %2125
      %2127 = vrot.lane.b32.xlu0 %v2045, 32
      %v2128 = vpop.permute.xlu0 %2127
      %2129 = vrot.lane.b32.xlu0 %v2046, 32
      %v2130 = vpop.permute.xlu0 %2129
      %2131 = vrot.lane.b32.xlu0 %v2047, 32
      %v2132 = vpop.permute.xlu0 %2131
      %2133 = vrot.lane.b32.xlu0 %v2048, 32
      %v2134 = vpop.permute.xlu0 %2133
      %2135 = vrot.lane.b32.xlu0 %v2049, 32
      %v2136 = vpop.permute.xlu0 %2135
      %2137 = vrot.lane.b32.xlu0 %v2050, 32
      %v2138 = vpop.permute.xlu0 %2137
      %2139 = vrot.lane.b32.xlu0 %v2051, 32
      %v2140 = vpop.permute.xlu0 %2139
      %2141 = vrot.lane.b32.xlu0 %v2052, 32
      %v2142 = vpop.permute.xlu0 %2141
      %2143 = vrot.lane.b32.xlu0 %v2053, 32
      %v2144 = vpop.permute.xlu0 %2143
      %2145 = vrot.lane.b32.xlu0 %v2054, 32
      %v2146 = vpop.permute.xlu0 %2145
      %2147 = vrot.lane.b32.xlu0 %v2055, 32
      %v2148 = vpop.permute.xlu0 %2147
      %2149 = vrot.lane.b32.xlu0 %v2056, 32
      %v2150 = vpop.permute.xlu0 %2149
      %2151 = vrot.lane.b32.xlu0 %v2057, 32
      %v2152 = vpop.permute.xlu0 %2151
      %2153 = vrot.lane.b32.xlu0 %v2058, 32
      %v2154 = vpop.permute.xlu0 %2153
      %vm2187 = vcmask 294144
      %2188 = vst.msk [vmem:[#allocation3] sm:$0xff] %vm2187, %v2092
      %2189 = vst.msk [vmem:[#allocation3 + $0x8] sm:$0xff] %vm2187, %v2094
      %2190 = vst.msk [vmem:[#allocation3 + $0x10] sm:$0xff] %vm2187, %v2096
      %2191 = vst.msk [vmem:[#allocation3 + $0x18] sm:$0xff] %vm2187, %v2098
      %2192 = vst.msk [vmem:[#allocation3 + $0x20] sm:$0xff] %vm2187, %v2100
      %2193 = vst.msk [vmem:[#allocation3 + $0x28] sm:$0xff] %vm2187, %v2102
      %2194 = vst.msk [vmem:[#allocation3 + $0x30] sm:$0xff] %vm2187, %v2104
      %2195 = vst.msk [vmem:[#allocation3 + $0x38] sm:$0xff] %vm2187, %v2106
      %2196 = vst.msk [vmem:[#allocation3 + $0x40] sm:$0xff] %vm2187, %v2108
      %2197 = vst.msk [vmem:[#allocation3 + $0x48] sm:$0xff] %vm2187, %v2110
      %2198 = vst.msk [vmem:[#allocation3 + $0x50] sm:$0xff] %vm2187, %v2112
      %2199 = vst.msk [vmem:[#allocation3 + $0x58] sm:$0xff] %vm2187, %v2114
      %2200 = vst.msk [vmem:[#allocation3 + $0x60] sm:$0xff] %vm2187, %v2116
      %2201 = vst.msk [vmem:[#allocation3 + $0x68] sm:$0xff] %vm2187, %v2118
      %2202 = vst.msk [vmem:[#allocation3 + $0x70] sm:$0xff] %vm2187, %v2120
      %2203 = vst.msk [vmem:[#allocation3 + $0x78] sm:$0xff] %vm2187, %v2122
      %2204 = vst.msk [vmem:[#allocation3 + $0x80] sm:$0xff] %vm2187, %v2124
      %2205 = vst.msk [vmem:[#allocation3 + $0x88] sm:$0xff] %vm2187, %v2126
      %2206 = vst.msk [vmem:[#allocation3 + $0x90] sm:$0xff] %vm2187, %v2128
      %2207 = vst.msk [vmem:[#allocation3 + $0x98] sm:$0xff] %vm2187, %v2130
      %2208 = vst.msk [vmem:[#allocation3 + $0xa0] sm:$0xff] %vm2187, %v2132
      %2209 = vst.msk [vmem:[#allocation3 + $0xa8] sm:$0xff] %vm2187, %v2134
      %2210 = vst.msk [vmem:[#allocation3 + $0xb0] sm:$0xff] %vm2187, %v2136
      %2211 = vst.msk [vmem:[#allocation3 + $0xb8] sm:$0xff] %vm2187, %v2138
      %2212 = vst.msk [vmem:[#allocation3 + $0xc0] sm:$0xff] %vm2187, %v2140
      %2213 = vst.msk [vmem:[#allocation3 + $0xc8] sm:$0xff] %vm2187, %v2142
      %2214 = vst.msk [vmem:[#allocation3 + $0xd0] sm:$0xff] %vm2187, %v2144
      %2215 = vst.msk [vmem:[#allocation3 + $0xd8] sm:$0xff] %vm2187, %v2146
      %2216 = vst.msk [vmem:[#allocation3 + $0xe0] sm:$0xff] %vm2187, %v2148
      %2217 = vst.msk [vmem:[#allocation3 + $0xe8] sm:$0xff] %vm2187, %v2150
      %2218 = vst.msk [vmem:[#allocation3 + $0xf0] sm:$0xff] %vm2187, %v2152
      %2219 = vst.msk [vmem:[#allocation3 + $0xf8] sm:$0xff] %vm2187, %v2154
      %v2220 = vld [vmem:[#allocation3] sm:$0xff]
      %v2221 = vld [vmem:[#allocation3 + $0x8] sm:$0xff]
      %v2222 = vld [vmem:[#allocation3 + $0x10] sm:$0xff]
      %v2223 = vld [vmem:[#allocation3 + $0x18] sm:$0xff]
      %v2224 = vld [vmem:[#allocation3 + $0x20] sm:$0xff]
      %v2225 = vld [vmem:[#allocation3 + $0x28] sm:$0xff]
      %v2226 = vld [vmem:[#allocation3 + $0x30] sm:$0xff]
      %v2227 = vld [vmem:[#allocation3 + $0x38] sm:$0xff]
      %v2228 = vld [vmem:[#allocation3 + $0x40] sm:$0xff]
      %v2229 = vld [vmem:[#allocation3 + $0x48] sm:$0xff]
      %v2230 = vld [vmem:[#allocation3 + $0x50] sm:$0xff]
      %v2231 = vld [vmem:[#allocation3 + $0x58] sm:$0xff]
      %v2232 = vld [vmem:[#allocation3 + $0x60] sm:$0xff]
      %v2233 = vld [vmem:[#allocation3 + $0x68] sm:$0xff]
      %v2234 = vld [vmem:[#allocation3 + $0x70] sm:$0xff]
      %v2235 = vld [vmem:[#allocation3 + $0x78] sm:$0xff]
      %v2236 = vld [vmem:[#allocation3 + $0x80] sm:$0xff]
      %v2237 = vld [vmem:[#allocation3 + $0x88] sm:$0xff]
      %v2238 = vld [vmem:[#allocation3 + $0x90] sm:$0xff]
      %v2239 = vld [vmem:[#allocation3 + $0x98] sm:$0xff]
      %v2240 = vld [vmem:[#allocation3 + $0xa0] sm:$0xff]
      %v2241 = vld [vmem:[#allocation3 + $0xa8] sm:$0xff]
      %v2242 = vld [vmem:[#allocation3 + $0xb0] sm:$0xff]
      %v2243 = vld [vmem:[#allocation3 + $0xb8] sm:$0xff]
      %v2244 = vld [vmem:[#allocation3 + $0xc0] sm:$0xff]
      %v2245 = vld [vmem:[#allocation3 + $0xc8] sm:$0xff]
      %v2246 = vld [vmem:[#allocation3 + $0xd0] sm:$0xff]
      %v2247 = vld [vmem:[#allocation3 + $0xd8] sm:$0xff]
      %v2248 = vld [vmem:[#allocation3 + $0xe0] sm:$0xff]
      %v2249 = vld [vmem:[#allocation3 + $0xe8] sm:$0xff]
      %v2250 = vld [vmem:[#allocation3 + $0xf0] sm:$0xff]
      %v2251 = vld [vmem:[#allocation3 + $0xf8] sm:$0xff]
      %v2252 = vld [vmem:[%s1] sm:$0xff]
      %v2253 = vld [vmem:[%s1 + $0x8] sm:$0xff]
      %v2254 = vld [vmem:[%s1 + $0x10] sm:$0xff]
      %v2255 = vld [vmem:[%s1 + $0x18] sm:$0xff]
      %v2256 = vld [vmem:[%s1 + $0x20] sm:$0xf]
      %vm2257 = vcmask 293888
      %v2259 = vsel %vm2257, %v2220, 0
      %v2262 = vsel %vm2257, %v2221, 0
      %v2265 = vsel %vm2257, %v2222, 0
      %v2268 = vsel %vm2257, %v2223, 0
      %v2271 = vsel %vm2257, %v2224, 0
      %v2274 = vsel %vm2257, %v2225, 0
      %v2277 = vsel %vm2257, %v2226, 0
      %v2280 = vsel %vm2257, %v2227, 0
      %v2283 = vsel %vm2257, %v2228, 0
      %v2286 = vsel %vm2257, %v2229, 0
      %v2289 = vsel %vm2257, %v2230, 0
      %v2292 = vsel %vm2257, %v2231, 0
      %v2295 = vsel %vm2257, %v2232, 0
      %v2298 = vsel %vm2257, %v2233, 0
      %v2301 = vsel %vm2257, %v2234, 0
      %v2304 = vsel %vm2257, %v2235, 0
      %v2307 = vsel %vm2257, %v2236, 0
      %v2310 = vsel %vm2257, %v2237, 0
      %v2313 = vsel %vm2257, %v2238, 0
      %v2316 = vsel %vm2257, %v2239, 0
      %v2319 = vsel %vm2257, %v2240, 0
      %v2322 = vsel %vm2257, %v2241, 0
      %v2325 = vsel %vm2257, %v2242, 0
      %v2328 = vsel %vm2257, %v2243, 0
      %v2331 = vsel %vm2257, %v2244, 0
      %v2334 = vsel %vm2257, %v2245, 0
      %v2337 = vsel %vm2257, %v2246, 0
      %v2340 = vsel %vm2257, %v2247, 0
      %v2343 = vsel %vm2257, %v2248, 0
      %v2346 = vsel %vm2257, %v2249, 0
      %v2349 = vsel %vm2257, %v2250, 0
      %v2352 = vsel %vm2257, %v2251, 0
      %vm2354 = vcmask 1043456
      %v2356 = vsel %vm2354, %v2256, 0
      %2358 = vmatpush.msra.mxu0 0.0
      %2359 = vmatpush.msra.mxu0 0.0
      %2360 = vmatpush.msra.mxu0 0.0
      %2361 = vmatpush.msra.mxu0 0.0
      %2362 = vmatpush.msra.mxu0 0.0
      %2363 = vmatpush.msra.mxu0 0.0
      %2364 = vmatpush.msra.mxu0 0.0
      %2365 = vmatpush.msra.mxu0 0.0
      %2366 = vmatpush.msra.mxu0 0.0
      %2367 = vmatpush.msra.mxu0 0.0
      %2368 = vmatpush.msra.mxu0 0.0
      %2369 = vmatpush.msra.mxu0 %v2356
      %2370 = vmatpush.msra.mxu0 %v2255
      %2371 = vmatpush.msra.mxu0 %v2254
      %2372 = vmatpush.msra.mxu0 %v2253
      %2373 = vmatpush.msra.mxu0 %v2252
      %2374 = vmatmul.f32.gmra.mxu0 %v2259
      %v2375 = vpop.f32.mrf.mxu0
      %v2376 = vadd.f32 0.0, %v2375
      %2377 = vmatmul.f32.gmra.mxu0 %v2262
      %v2378 = vpop.f32.mrf.mxu0
      %v2379 = vadd.f32 0.0, %v2378
      %2380 = vmatmul.f32.gmra.mxu0 %v2265
      %v2381 = vpop.f32.mrf.mxu0
      %v2382 = vadd.f32 0.0, %v2381
      %2383 = vmatmul.f32.gmra.mxu0 %v2268
      %v2384 = vpop.f32.mrf.mxu0
      %v2385 = vadd.f32 0.0, %v2384
      %2386 = vmatmul.f32.gmra.mxu0 %v2271
      %v2387 = vpop.f32.mrf.mxu0
      %v2388 = vadd.f32 0.0, %v2387
      %2389 = vmatmul.f32.gmra.mxu0 %v2274
      %v2390 = vpop.f32.mrf.mxu0
      %v2391 = vadd.f32 0.0, %v2390
      %2392 = vmatmul.f32.gmra.mxu0 %v2277
      %v2393 = vpop.f32.mrf.mxu0
      %v2394 = vadd.f32 0.0, %v2393
      %2395 = vmatmul.f32.gmra.mxu0 %v2280
      %v2396 = vpop.f32.mrf.mxu0
      %v2397 = vadd.f32 0.0, %v2396
      %2398 = vmatmul.f32.gmra.mxu0 %v2283
      %v2399 = vpop.f32.mrf.mxu0
      %v2400 = vadd.f32 0.0, %v2399
      %2401 = vmatmul.f32.gmra.mxu0 %v2286
      %v2402 = vpop.f32.mrf.mxu0
      %v2403 = vadd.f32 0.0, %v2402
      %2404 = vmatmul.f32.gmra.mxu0 %v2289
      %v2405 = vpop.f32.mrf.mxu0
      %v2406 = vadd.f32 0.0, %v2405
      %2407 = vmatmul.f32.gmra.mxu0 %v2292
      %v2408 = vpop.f32.mrf.mxu0
      %v2409 = vadd.f32 0.0, %v2408
      %2410 = vmatmul.f32.gmra.mxu0 %v2295
      %v2411 = vpop.f32.mrf.mxu0
      %v2412 = vadd.f32 0.0, %v2411
      %2413 = vmatmul.f32.gmra.mxu0 %v2298
      %v2414 = vpop.f32.mrf.mxu0
      %v2415 = vadd.f32 0.0, %v2414
      %2416 = vmatmul.f32.gmra.mxu0 %v2301
      %v2417 = vpop.f32.mrf.mxu0
      %v2418 = vadd.f32 0.0, %v2417
      %2419 = vmatmul.f32.gmra.mxu0 %v2304
      %v2420 = vpop.f32.mrf.mxu0
      %v2421 = vadd.f32 0.0, %v2420
      %2422 = vmatmul.f32.gmra.mxu0 %v2307
      %v2423 = vpop.f32.mrf.mxu0
      %v2424 = vadd.f32 0.0, %v2423
      %2425 = vmatmul.f32.gmra.mxu0 %v2310
      %v2426 = vpop.f32.mrf.mxu0
      %v2427 = vadd.f32 0.0, %v2426
      %2428 = vmatmul.f32.gmra.mxu0 %v2313
      %v2429 = vpop.f32.mrf.mxu0
      %v2430 = vadd.f32 0.0, %v2429
      %2431 = vmatmul.f32.gmra.mxu0 %v2316
      %v2432 = vpop.f32.mrf.mxu0
      %v2433 = vadd.f32 0.0, %v2432
      %2434 = vmatmul.f32.gmra.mxu0 %v2319
      %v2435 = vpop.f32.mrf.mxu0
      %v2436 = vadd.f32 0.0, %v2435
      %2437 = vmatmul.f32.gmra.mxu0 %v2322
      %v2438 = vpop.f32.mrf.mxu0
      %v2439 = vadd.f32 0.0, %v2438
      %2440 = vmatmul.f32.gmra.mxu0 %v2325
      %v2441 = vpop.f32.mrf.mxu0
      %v2442 = vadd.f32 0.0, %v2441
      %2443 = vmatmul.f32.gmra.mxu0 %v2328
      %v2444 = vpop.f32.mrf.mxu0
      %v2445 = vadd.f32 0.0, %v2444
      %2446 = vmatmul.f32.gmra.mxu0 %v2331
      %v2447 = vpop.f32.mrf.mxu0
      %v2448 = vadd.f32 0.0, %v2447
      %2449 = vmatmul.f32.gmra.mxu0 %v2334
      %v2450 = vpop.f32.mrf.mxu0
      %v2451 = vadd.f32 0.0, %v2450
      %2452 = vmatmul.f32.gmra.mxu0 %v2337
      %v2453 = vpop.f32.mrf.mxu0
      %v2454 = vadd.f32 0.0, %v2453
      %2455 = vmatmul.f32.gmra.mxu0 %v2340
      %v2456 = vpop.f32.mrf.mxu0
      %v2457 = vadd.f32 0.0, %v2456
      %2458 = vmatmul.f32.gmra.mxu0 %v2343
      %v2459 = vpop.f32.mrf.mxu0
      %v2460 = vadd.f32 0.0, %v2459
      %2461 = vmatmul.f32.gmra.mxu0 %v2346
      %v2462 = vpop.f32.mrf.mxu0
      %v2463 = vadd.f32 0.0, %v2462
      %2464 = vmatmul.f32.gmra.mxu0 %v2349
      %v2465 = vpop.f32.mrf.mxu0
      %v2466 = vadd.f32 0.0, %v2465
      %2467 = vmatmul.f32.gmra.mxu0 %v2352
      %v2468 = vpop.f32.mrf.mxu0
      %v2469 = vadd.f32 0.0, %v2468
      %2470 = vdwg.mxu0
      %2471 = vst.msk [vmem:[%s289] sm:$0xff] %vm532, %v2376
      %2472 = vst.msk [vmem:[%s289 + $0x8] sm:$0xff] %vm532, %v2379
      %2473 = vst.msk [vmem:[%s289 + $0x10] sm:$0xff] %vm532, %v2382
      %2474 = vst.msk [vmem:[%s289 + $0x18] sm:$0xff] %vm532, %v2385
      %2475 = vst.msk [vmem:[%s289 + $0x20] sm:$0xff] %vm532, %v2388
      %2476 = vst.msk [vmem:[%s289 + $0x28] sm:$0xff] %vm532, %v2391
      %2477 = vst.msk [vmem:[%s289 + $0x30] sm:$0xff] %vm532, %v2394
      %2478 = vst.msk [vmem:[%s289 + $0x38] sm:$0xff] %vm532, %v2397
      %2479 = vst.msk [vmem:[%s289 + $0x40] sm:$0xff] %vm532, %v2400
      %2480 = vst.msk [vmem:[%s289 + $0x48] sm:$0xff] %vm532, %v2403
      %2481 = vst.msk [vmem:[%s289 + $0x50] sm:$0xff] %vm532, %v2406
      %2482 = vst.msk [vmem:[%s289 + $0x58] sm:$0xff] %vm532, %v2409
      %2483 = vst.msk [vmem:[%s289 + $0x60] sm:$0xff] %vm532, %v2412
      %2484 = vst.msk [vmem:[%s289 + $0x68] sm:$0xff] %vm532, %v2415
      %2485 = vst.msk [vmem:[%s289 + $0x70] sm:$0xff] %vm532, %v2418
      %2486 = vst.msk [vmem:[%s289 + $0x78] sm:$0xff] %vm532, %v2421
      %2487 = vst.msk [vmem:[%s289 + $0x80] sm:$0xff] %vm532, %v2424
      %2488 = vst.msk [vmem:[%s289 + $0x88] sm:$0xff] %vm532, %v2427
      %2489 = vst.msk [vmem:[%s289 + $0x90] sm:$0xff] %vm532, %v2430
      %2490 = vst.msk [vmem:[%s289 + $0x98] sm:$0xff] %vm532, %v2433
      %2491 = vst.msk [vmem:[%s289 + $0xa0] sm:$0xff] %vm532, %v2436
      %2492 = vst.msk [vmem:[%s289 + $0xa8] sm:$0xff] %vm532, %v2439
      %2493 = vst.msk [vmem:[%s289 + $0xb0] sm:$0xff] %vm532, %v2442
      %2494 = vst.msk [vmem:[%s289 + $0xb8] sm:$0xff] %vm532, %v2445
      %2495 = vst.msk [vmem:[%s289 + $0xc0] sm:$0xff] %vm532, %v2448
      %2496 = vst.msk [vmem:[%s289 + $0xc8] sm:$0xff] %vm532, %v2451
      %2497 = vst.msk [vmem:[%s289 + $0xd0] sm:$0xff] %vm532, %v2454
      %2498 = vst.msk [vmem:[%s289 + $0xd8] sm:$0xff] %vm532, %v2457
      %2499 = vst.msk [vmem:[%s289 + $0xe0] sm:$0xff] %vm532, %v2460
      %2500 = vst.msk [vmem:[%s289 + $0xe8] sm:$0xff] %vm532, %v2463
      %2501 = vst.msk [vmem:[%s289 + $0xf0] sm:$0xff] %vm532, %v2466
      %2502 = vst.msk [vmem:[%s289 + $0xf8] sm:$0xff] %vm532, %v2469
      %v2503 = vsel %vm532, %v2376, 0.0
      %v2504 = vsel %vm532, %v2379, 0.0
      %v2505 = vadd.f32 %v2503, %v2504
      %v2506 = vsel %vm532, %v2382, 0.0
      %v2507 = vadd.f32 %v2505, %v2506
      %v2508 = vsel %vm532, %v2385, 0.0
      %v2509 = vadd.f32 %v2507, %v2508
      %v2510 = vsel %vm532, %v2388, 0.0
      %v2511 = vadd.f32 %v2509, %v2510
      %v2512 = vsel %vm532, %v2391, 0.0
      %v2513 = vadd.f32 %v2511, %v2512
      %v2514 = vsel %vm532, %v2394, 0.0
      %v2515 = vadd.f32 %v2513, %v2514
      %v2516 = vsel %vm532, %v2397, 0.0
      %v2517 = vadd.f32 %v2515, %v2516
      %v2518 = vsel %vm532, %v2400, 0.0
      %v2519 = vadd.f32 %v2517, %v2518
      %v2520 = vsel %vm532, %v2403, 0.0
      %v2521 = vadd.f32 %v2519, %v2520
      %v2522 = vsel %vm532, %v2406, 0.0
      %v2523 = vadd.f32 %v2521, %v2522
      %v2524 = vsel %vm532, %v2409, 0.0
      %v2525 = vadd.f32 %v2523, %v2524
      %v2526 = vsel %vm532, %v2412, 0.0
      %v2527 = vadd.f32 %v2525, %v2526
      %v2528 = vsel %vm532, %v2415, 0.0
      %v2529 = vadd.f32 %v2527, %v2528
      %v2530 = vsel %vm532, %v2418, 0.0
      %v2531 = vadd.f32 %v2529, %v2530
      %v2532 = vsel %vm532, %v2421, 0.0
      %v2533 = vadd.f32 %v2531, %v2532
      %v2534 = vsel %vm532, %v2424, 0.0
      %v2535 = vadd.f32 %v2533, %v2534
      %v2536 = vsel %vm532, %v2427, 0.0
      %v2537 = vadd.f32 %v2535, %v2536
      %v2538 = vsel %vm532, %v2430, 0.0
      %v2539 = vadd.f32 %v2537, %v2538
      %v2540 = vsel %vm532, %v2433, 0.0
      %v2541 = vadd.f32 %v2539, %v2540
      %v2542 = vsel %vm532, %v2436, 0.0
      %v2543 = vadd.f32 %v2541, %v2542
      %v2544 = vsel %vm532, %v2439, 0.0
      %v2545 = vadd.f32 %v2543, %v2544
      %v2546 = vsel %vm532, %v2442, 0.0
      %v2547 = vadd.f32 %v2545, %v2546
      %v2548 = vsel %vm532, %v2445, 0.0
      %v2549 = vadd.f32 %v2547, %v2548
      %v2550 = vsel %vm532, %v2448, 0.0
      %v2551 = vadd.f32 %v2549, %v2550
      %v2552 = vsel %vm532, %v2451, 0.0
      %v2553 = vadd.f32 %v2551, %v2552
      %v2554 = vsel %vm532, %v2454, 0.0
      %v2555 = vadd.f32 %v2553, %v2554
      %v2556 = vsel %vm532, %v2457, 0.0
      %v2557 = vadd.f32 %v2555, %v2556
      %v2558 = vsel %vm532, %v2460, 0.0
      %v2559 = vadd.f32 %v2557, %v2558
      %v2560 = vsel %vm532, %v2463, 0.0
      %v2561 = vadd.f32 %v2559, %v2560
      %v2562 = vsel %vm532, %v2466, 0.0
      %v2563 = vadd.f32 %v2561, %v2562
      %v2564 = vsel %vm532, %v2469, 0.0
      %v2565 = vadd.f32 %v2563, %v2564
      %v2566 = vrot.slane %v2565, 4
      %v2567 = vadd.f32 %v2565, %v2566
      %v2568 = vrot.slane %v2567, 2
      %v2569 = vadd.f32 %v2567, %v2568
      %v2570 = vrot.slane %v2569, 1
      %v2571 = vadd.f32 %v2569, %v2570
      %2572 = vst.msk [vmem:[%s292] sm:$0x1] %vm541, %v2571
      %v2573 = vmul.f32 %v2376, %v2376
      %v2574 = vmul.f32 %v2379, %v2379
      %v2575 = vmul.f32 %v2382, %v2382
      %v2576 = vmul.f32 %v2385, %v2385
      %v2577 = vmul.f32 %v2388, %v2388
      %v2578 = vmul.f32 %v2391, %v2391
      %v2579 = vmul.f32 %v2394, %v2394
      %v2580 = vmul.f32 %v2397, %v2397
      %v2581 = vmul.f32 %v2400, %v2400
      %v2582 = vmul.f32 %v2403, %v2403
      %v2583 = vmul.f32 %v2406, %v2406
      %v2584 = vmul.f32 %v2409, %v2409
      %v2585 = vmul.f32 %v2412, %v2412
      %v2586 = vmul.f32 %v2415, %v2415
      %v2587 = vmul.f32 %v2418, %v2418
      %v2588 = vmul.f32 %v2421, %v2421
      %v2589 = vmul.f32 %v2424, %v2424
      %v2590 = vmul.f32 %v2427, %v2427
      %v2591 = vmul.f32 %v2430, %v2430
      %v2592 = vmul.f32 %v2433, %v2433
      %v2593 = vmul.f32 %v2436, %v2436
      %v2594 = vmul.f32 %v2439, %v2439
      %v2595 = vmul.f32 %v2442, %v2442
      %v2596 = vmul.f32 %v2445, %v2445
      %v2597 = vmul.f32 %v2448, %v2448
      %v2598 = vmul.f32 %v2451, %v2451
      %v2599 = vmul.f32 %v2454, %v2454
      %v2600 = vmul.f32 %v2457, %v2457
      %v2601 = vmul.f32 %v2460, %v2460
      %v2602 = vmul.f32 %v2463, %v2463
      %v2603 = vmul.f32 %v2466, %v2466
      %v2604 = vmul.f32 %v2469, %v2469
      %v2605 = vsel %vm532, %v2573, 0.0
      %v2606 = vsel %vm532, %v2574, 0.0
      %v2607 = vadd.f32 %v2605, %v2606
      %v2608 = vsel %vm532, %v2575, 0.0
      %v2609 = vadd.f32 %v2607, %v2608
      %v2610 = vsel %vm532, %v2576, 0.0
      %v2611 = vadd.f32 %v2609, %v2610
      %v2612 = vsel %vm532, %v2577, 0.0
      %v2613 = vadd.f32 %v2611, %v2612
      %v2614 = vsel %vm532, %v2578, 0.0
      %v2615 = vadd.f32 %v2613, %v2614
      %v2616 = vsel %vm532, %v2579, 0.0
      %v2617 = vadd.f32 %v2615, %v2616
      %v2618 = vsel %vm532, %v2580, 0.0
      %v2619 = vadd.f32 %v2617, %v2618
      %v2620 = vsel %vm532, %v2581, 0.0
      %v2621 = vadd.f32 %v2619, %v2620
      %v2622 = vsel %vm532, %v2582, 0.0
      %v2623 = vadd.f32 %v2621, %v2622
      %v2624 = vsel %vm532, %v2583, 0.0
      %v2625 = vadd.f32 %v2623, %v2624
      %v2626 = vsel %vm532, %v2584, 0.0
      %v2627 = vadd.f32 %v2625, %v2626
      %v2628 = vsel %vm532, %v2585, 0.0
      %v2629 = vadd.f32 %v2627, %v2628
      %v2630 = vsel %vm532, %v2586, 0.0
      %v2631 = vadd.f32 %v2629, %v2630
      %v2632 = vsel %vm532, %v2587, 0.0
      %v2633 = vadd.f32 %v2631, %v2632
      %v2634 = vsel %vm532, %v2588, 0.0
      %v2635 = vadd.f32 %v2633, %v2634
      %v2636 = vsel %vm532, %v2589, 0.0
      %v2637 = vadd.f32 %v2635, %v2636
      %v2638 = vsel %vm532, %v2590, 0.0
      %v2639 = vadd.f32 %v2637, %v2638
      %v2640 = vsel %vm532, %v2591, 0.0
      %v2641 = vadd.f32 %v2639, %v2640
      %v2642 = vsel %vm532, %v2592, 0.0
      %v2643 = vadd.f32 %v2641, %v2642
      %v2644 = vsel %vm532, %v2593, 0.0
      %v2645 = vadd.f32 %v2643, %v2644
      %v2646 = vsel %vm532, %v2594, 0.0
      %v2647 = vadd.f32 %v2645, %v2646
      %v2648 = vsel %vm532, %v2595, 0.0
      %v2649 = vadd.f32 %v2647, %v2648
      %v2650 = vsel %vm532, %v2596, 0.0
      %v2651 = vadd.f32 %v2649, %v2650
      %v2652 = vsel %vm532, %v2597, 0.0
      %v2653 = vadd.f32 %v2651, %v2652
      %v2654 = vsel %vm532, %v2598, 0.0
      %v2655 = vadd.f32 %v2653, %v2654
      %v2656 = vsel %vm532, %v2599, 0.0
      %v2657 = vadd.f32 %v2655, %v2656
      %v2658 = vsel %vm532, %v2600, 0.0
      %v2659 = vadd.f32 %v2657, %v2658
      %v2660 = vsel %vm532, %v2601, 0.0
      %v2661 = vadd.f32 %v2659, %v2660
      %v2662 = vsel %vm532, %v2602, 0.0
      %v2663 = vadd.f32 %v2661, %v2662
      %v2664 = vsel %vm532, %v2603, 0.0
      %v2665 = vadd.f32 %v2663, %v2664
      %v2666 = vsel %vm532, %v2604, 0.0
      %v2667 = vadd.f32 %v2665, %v2666
      %v2668 = vrot.slane %v2667, 4
      %v2669 = vadd.f32 %v2667, %v2668
      %v2670 = vrot.slane %v2669, 2
      %v2671 = vadd.f32 %v2669, %v2670
      %v2672 = vrot.slane %v2671, 1
      %v2673 = vadd.f32 %v2671, %v2672
      %2674 = vst.msk [vmem:[%s295] sm:$0x1] %vm541, %v2673
      %p2675 = scmp.lt.s32.totalorder %s19, 1
      %s2676 = scalar_select %p2675, %s19, 1
      %s2677 = smul.addr %s2676, 32
      %s2678 = smul.addr %s2677, 8
      %s2679 = scalar_lea.vmem %s5, %s2678
      %p2680 = scmp.lt.s32.totalorder %s19, 1
      %s2681 = scalar_select %p2680, %s19, 1
      %s2682 = scalar_lea.vmem %s6, %s2681
      %p2683 = scmp.lt.s32.totalorder %s19, 1
      %s2684 = scalar_select %p2683, %s19, 1
      %s2685 = scalar_lea.vmem %s7, %s2684
      // Predicated region
      $region41: #{residual_conv_block.4} parent=39 // pred_check
        %p2686 = pneg %p147
      $region42: #{residual_conv_block.4} parent=39 // pred_check_branch
        %2688 = sbr.rel (%p2686) target = $region44
      $region43: #{residual_conv_block.4} parent=39 // pred_region
        _
      $region44: #{residual_conv_block.4} parent=39 // pred_fallthru
        _
      // Predicated region
      $region45: #{residual_conv_block.4} parent=39 // pred_check
        %p2689 = pneg %p173
      $region46: #{residual_conv_block.4} parent=39 // pred_check_branch
        %2691 = sbr.rel (%p2689) target = $region48
      $region47: #{residual_conv_block.4} parent=39 // pred_region
        _
      $region48: #{residual_conv_block.4} parent=39 // pred_fallthru
        _
      // Predicated region
      $region49: #{residual_conv_block.4} parent=39 // pred_check
        %p2692 = pneg %p199
      $region50: #{residual_conv_block.4} parent=39 // pred_check_branch
        %2694 = sbr.rel (%p2692) target = $region52
      $region51: #{residual_conv_block.4} parent=39 // pred_region
        _
      $region52: #{residual_conv_block.4} parent=39 // pred_fallthru
        _
    $region40: #{residual_conv_block.4} parent=5 // pred_fallthru
      _
    %p2695 = scmp.le.s32.totalorder 2, %s14
    // Predicated region
    $region53: #{residual_conv_block.4} parent=5 // pred_check
      %p2696 = pneg %p2695
    $region54: #{residual_conv_block.4} parent=5 // pred_check_branch
      %2698 = sbr.rel (%p2696) target = $region56
    $region55: #{residual_conv_block.4} parent=5 // pred_region
      %s2699 = ssub.s32 %s14, 2
      // Predicated region
      $region57: #{residual_conv_block.4} parent=55 // pred_check
        %p2700 = pneg %p153
      $region58: #{residual_conv_block.4} parent=55 // pred_check_branch
        %2702 = sbr.rel (%p2700) target = $region60
      $region59: #{residual_conv_block.4} parent=55 // pred_region
        %p2703 = scmp.lt.s32.totalorder %s20, 1
        %s2704 = scalar_select %p2703, %s20, 1
        %s2705 = smul.addr %s2704, 32
        %s2706 = smul.addr %s2705, 8
        %s2707 = scalar_lea.vmem %s5, %s2706
      $region60: #{residual_conv_block.4} parent=55 // pred_fallthru
        _
      // Predicated region
      $region61: #{residual_conv_block.4} parent=55 // pred_check
        %p2708 = pneg %p179
      $region62: #{residual_conv_block.4} parent=55 // pred_check_branch
        %2710 = sbr.rel (%p2708) target = $region64
      $region63: #{residual_conv_block.4} parent=55 // pred_region
        %p2711 = scmp.lt.s32.totalorder %s20, 1
        %s2712 = scalar_select %p2711, %s20, 1
        %s2713 = scalar_lea.vmem %s6, %s2712
      $region64: #{residual_conv_block.4} parent=55 // pred_fallthru
        _
      // Predicated region
      $region65: #{residual_conv_block.4} parent=55 // pred_check
        %p2714 = pneg %p205
      $region66: #{residual_conv_block.4} parent=55 // pred_check_branch
        %2716 = sbr.rel (%p2714) target = $region68
      $region67: #{residual_conv_block.4} parent=55 // pred_region
        %p2717 = scmp.lt.s32.totalorder %s20, 1
        %s2718 = scalar_select %p2717, %s20, 1
        %s2719 = scalar_lea.vmem %s7, %s2718
      $region68: #{residual_conv_block.4} parent=55 // pred_fallthru
        _
    $region56: #{residual_conv_block.4} parent=5 // pred_fallthru
      _
  $region6: #{residual_conv_block.4} parent=0 // loop_footer
    %s18 = sadd.s32 1, %s14
  $region7: #{residual_conv_block.4} parent=0 // loop_footer_branch
    %13 = sbr.rel target = $region3
  $region8: #{residual_conv_block.4} parent=0 // loop_exit
    _

</llo_original>
